<compile_context>
chip_gen: v6e
topology: v6e:2x2x1
jax: 0.10.0
libtpu: 0.0.40
codegen_flags: <defaults>
</compile_context>

<pallas_src>
import functools
import math

import jax
import jax.numpy as jnp
from jax import lax
from jax.experimental import pallas as pl
from jax.experimental.pallas import tpu as pltpu

# ----------------------------- config ("args") -------------------------------
SIZE = 16              # args.size
SINCOS_SCALE = 3       # args.sincos_scale -> input_dims = 2*(scale+1) = 8
HALF_PC_SIZE = 4       # args.half_pc_size -> 4x4 = 16 place cells
HD_SIZE = 12           # args.hd_size
HIDDEN_DIMS = 32       # args.hidden_dims
THRESHOLD = 0.2        # args.threshold
KAPPA_HD = 20.0        # von-Mises concentration for encode_hd
MATCH_DM = 64          # Matching_fb projection width
SIGMA_PC = 2.0 / (6.0 * HALF_PC_SIZE)

INPUT_DIMS = 2 * (SINCOS_SCALE + 1)                 # 8
PC_SIZE = HALF_PC_SIZE * HALF_PC_SIZE               # 16
HEAD_DIMS = HD_SIZE + PC_SIZE                       # 28
FEAT_DIMS = HD_SIZE + PC_SIZE + 2 * HIDDEN_DIMS     # 92  (concat order [hd, pc, hidden])
FEAT_PAD = 128
N_PARTIALS = 14
NCHUNKS = 2                                         # parallel grid axis (v7x megacore)

# packed per-row sequence columns: [pos(2) | dir(1) | velo(8) | velo_rev(8) | tl(2) | thl(1) | pad]
SEQ_COLS = 32
C_POS, C_DIR, C_VEL, C_TL, C_THL = 0, 2, 3, 19, 21
# ground-truth encodings parked in the zero rows/cols of the folded matching matrix
C_GTPC = FEAT_DIMS            # 92:108
C_GTHD = FEAT_DIMS + PC_SIZE  # 108:120

# weight-slab row offsets (matmul operands 8-aligned)
R_CELLS = 0       # (2, 16)  pc cell centers^T
R_HDC = 2         # (1, 12)  hd cell centers
R_BIH = 3         # (1, 64)  [b_f | b_b]
R_BHEAD = 4       # (1, 28)  [b_hd | b_pc]
R_WP0 = 8         # (16, 32) place-enc -> hidden init
R_WH0 = 24        # (12, 32) hd-enc    -> hidden init
R_WIH = 40        # (16, 64) blockdiag(W_ih_f, W_ih_b)
R_WHH = 56        # (64, 64) blockdiag(W_hh_f, W_hh_b)
R_WHEAD = 120     # (64, 28) [W_hd | W_pc]
R_M = 184         # (128,128) Wq @ Wk^T zero-padded
SLAB_ROWS = R_M + FEAT_PAD    # 312


# ------------------------------- priors --------------------------------------
def pc_piror(bounds, half_pc_size):
    lin = jnp.linspace(bounds[0], bounds[1], half_pc_size)
    gx, gy = jnp.meshgrid(lin, lin, indexing="ij")
    cells = jnp.stack([gx.ravel(), gy.ravel()], axis=-1).astype(jnp.float32)
    return cells, cells.shape[0]


def hd_piror(hd_size):
    return jnp.linspace(-math.pi, math.pi, hd_size, endpoint=False).astype(jnp.float32)


# --------------------------- fused Pallas kernel ------------------------------
def _loop_fused_kernel(seq_ref, ls_ref, w_ref, out_ref, h_s, feat_s, fm_s,
                       *, bc, sigma, kappa, th, scale, eps):
    T = SIZE
    H = HIDDEN_DIMS
    rows = bc * T

    # ----- static views into the single packed weight slab -----
    cells_t = w_ref[R_CELLS:R_CELLS + 2, 0:PC_SIZE]            # (2, PC)
    hdc = w_ref[R_HDC:R_HDC + 1, 0:HD_SIZE]                    # (1, HD)
    b_ih = w_ref[R_BIH:R_BIH + 1, 0:2 * H]                     # (1, 2H)
    b_head = w_ref[R_BHEAD:R_BHEAD + 1, 0:HEAD_DIMS]           # (1, HD+PC)
    w_p0 = w_ref[R_WP0:R_WP0 + PC_SIZE, 0:H]                   # (PC, H)
    w_h0 = w_ref[R_WH0:R_WH0 + HD_SIZE, 0:H]                   # (HD, H)
    w_ih = w_ref[R_WIH:R_WIH + 2 * INPUT_DIMS, 0:2 * H]        # (16, 2H)  blockdiag(fwd, bwd)
    w_hh = w_ref[R_WHH:R_WHH + 2 * H, 0:2 * H]                 # (2H, 2H)  blockdiag(fwd, bwd)
    w_head = w_ref[R_WHEAD:R_WHEAD + 2 * H, 0:HEAD_DIMS]       # (2H, HD+PC)
    m_pad = w_ref[R_M:R_M + FEAT_PAD, :]                       # (128, 128)

    def softmax_rows(z):
        z = z - jnp.max(z, axis=-1, keepdims=True)
        e = jnp.exp(z)
        return e * pl.reciprocal(jnp.sum(e, axis=-1, keepdims=True), approx=True)

    def enc_pc(p):                                   # (n, 2) -> (n, PC)
        p2 = jnp.sum(p * p, axis=1, keepdims=True)
        c2 = jnp.sum(cells_t * cells_t, axis=0, keepdims=True)
        cross = jnp.dot(p, cells_t, preferred_element_type=jnp.float32)
        return softmax_rows(-(p2 + c2 - 2.0 * cross) / (2.0 * sigma * sigma))

    def enc_hd(d):                                   # (n, 1) -> (n, HD)
        return softmax_rows(kappa * jnp.cos(d - hdc))

    seq = seq_ref[...]                               # (rows, 32), time-major rows (t*bc + b)

    # ----- boundary-row hidden init (fwd from t=0, bwd from t=T-1), fused over fwd/bwd -----
    bnd = jnp.concatenate([seq[0:bc, :], seq[(T - 1) * bc:T * bc, :]], axis=0)   # (2bc, 32)
    pe = enc_pc(bnd[:, C_POS:C_POS + 2])
    he = enc_hd(bnd[:, C_DIR:C_DIR + 1])
    h0 = jnp.tanh(jnp.dot(pe, w_p0, preferred_element_type=jnp.float32)
                  + jnp.dot(he, w_h0, preferred_element_type=jnp.float32))      # (2bc, H)
    h = jnp.concatenate([h0[0:bc, :], h0[bc:2 * bc, :]], axis=-1)               # (bc, 2H)

    # ----- hoisted input projections: [velo | time-reversed velo] @ blockdiag(Wf, Wb) -----
    velo_cat = seq[:, C_VEL:C_VEL + 2 * INPUT_DIMS]                             # (rows, 16)
    x = jnp.dot(velo_cat, w_ih, preferred_element_type=jnp.float32) + b_ih      # (rows, 2H)

    # ----- fused fwd/bwd recurrence: one (bc,2H)x(2H,2H) matmul + tanh per step -----
    # TODO(synk): could hold w_hh in MXU staging regs (pltpu.matmul_push_rhs) across steps.
    for t in range(T):
        h = jnp.tanh(x[t * bc:(t + 1) * bc, :]
                     + jnp.dot(h, w_hh, preferred_element_type=jnp.float32))
        h_s[t * bc:(t + 1) * bc, 0:H] = h[:, 0:H]                    # fwd state -> real time t
        h_s[(T - 1 - t) * bc:(T - t) * bc, H:2 * H] = h[:, H:2 * H]  # bwd state -> real time T-1-t

    hidden = h_s[...]                                                # (rows, 2H), forward-time order

    # ----- softmax heads: one fused matmul, then column-sliced softmaxes -----
    logits = jnp.dot(hidden, w_head, preferred_element_type=jnp.float32) + b_head   # (rows, 28)
    hd_pred = softmax_rows(logits[:, 0:HD_SIZE])
    pc_pred = softmax_rows(logits[:, HD_SIZE:HEAD_DIMS])

    # ----- 128-lane feature slab written in place (no lane concats) -----
    gt_pc = enc_pc(seq[:, C_TL:C_TL + 2])
    gt_hd = enc_hd(seq[:, C_THL:C_THL + 1])
    feat_s[:, 0:HD_SIZE] = hd_pred
    feat_s[:, HD_SIZE:HD_SIZE + PC_SIZE] = pc_pred
    feat_s[:, HD_SIZE + PC_SIZE:FEAT_DIMS] = hidden
    feat_s[:, C_GTPC:C_GTPC + PC_SIZE] = gt_pc       # parked in m_pad's zero rows/cols
    feat_s[:, C_GTHD:C_GTHD + HD_SIZE] = gt_hd
    feat_s[:, C_GTHD + HD_SIZE:FEAT_PAD] = jnp.zeros(
        (rows, FEAT_PAD - C_GTHD - HD_SIZE), jnp.float32)
    feat = feat_s[...]

    # ----- matching with folded Wq@Wk^T: one exact 128-wide MXU matmul -----
    fm = jnp.dot(feat, m_pad, preferred_element_type=jnp.float32)    # (rows, 128), lanes>=92 are 0
    if bc > 1:
        fm_s[...] = fm

    # ----- per-batch score + loss partial sums (pooled over batch in XLA) -----
    def ce_parts(p, lbl):
        p = jnp.clip(p, eps, 1.0 - eps)
        pos = (lbl > th).astype(jnp.float32)
        neg = 1.0 - pos
        return [jnp.sum(-jnp.log(p) * lbl * pos, keepdims=True),
                jnp.sum(pos, keepdims=True),
                jnp.sum(-jnp.log(1.0 - p) * neg, keepdims=True),
                jnp.sum(neg, keepdims=True)]

    for b in range(bc):
        if bc == 1:
            fb, fmb = feat, fm
        else:
            fb = feat_s[pl.ds(b, T, bc), :]          # batch b's rows (time-major, stride bc)
            fmb = fm_s[pl.ds(b, T, bc), :]
        s = lax.dot_general(fmb, fb, (((1,), (1,)), ((), ())),
                            preferred_element_type=jnp.float32) * scale
        score = jax.nn.sigmoid(s)                    # (T, T)
        y = ls_ref[b]                                # (T, T)

        parts = []
        parts += ce_parts(score, y)                                         # full matrix
        parts += ce_parts(jnp.max(score, axis=0, keepdims=True),
                          jnp.max(y, axis=0, keepdims=True))                # torch .max(1)
        parts += ce_parts(jnp.max(score, axis=1, keepdims=True),
                          jnp.max(y, axis=1, keepdims=True))                # torch .max(2)
        parts.append(jnp.sum(-jnp.log(jnp.clip(fb[:, HD_SIZE:HEAD_DIMS], eps, 1.0 - eps))
                             * fb[:, C_GTPC:C_GTPC + PC_SIZE], keepdims=True))   # NLL pc
        parts.append(jnp.sum(-jnp.log(jnp.clip(fb[:, 0:HD_SIZE], eps, 1.0 - eps))
                             * fb[:, C_GTHD:C_GTHD + HD_SIZE], keepdims=True))   # NLL hd

        for i, v in enumerate(parts):
            out_ref[b:b + 1, i:i + 1] = v            # 14 static-lane-offset scalar stores


def loop_fused(weight_slab, position, direction, velo_input, tl, theta_l, ls):
    """One pallas_call over grid=(NCHUNKS,); returns (B, 14) per-batch partial sums."""
    B, T, _ = position.shape
    assert T == SIZE
    b_pad = max(NCHUNKS, ((B + NCHUNKS - 1) // NCHUNKS) * NCHUNKS)
    bc = b_pad // NCHUNKS
    rows = bc * T

    velo_rev = velo_input[:, ::-1, :]                 # backward recurrence reads reversed time
    seq = jnp.concatenate([position, direction, velo_input, velo_rev, tl, theta_l], axis=-1)
    seq = jnp.pad(seq, ((0, b_pad - B), (0, 0), (0, SEQ_COLS - seq.shape[-1])))
    # (b_pad, T, C) -> per-chunk time-major rows: (chunk, t, b_in_chunk, C) -> 2D
    seq = (seq.reshape(NCHUNKS, bc, T, SEQ_COLS)
              .transpose(0, 2, 1, 3)
              .reshape(NCHUNKS * rows, SEQ_COLS))
    ls_p = jnp.pad(ls, ((0, b_pad - B), (0, 0), (0, 0)))

    kern = functools.partial(_loop_fused_kernel, bc=bc, sigma=SIGMA_PC, kappa=KAPPA_HD,
                             th=THRESHOLD, scale=1.0 / math.sqrt(MATCH_DM), eps=1e-6)

    out = pl.pallas_call(
        kern,
        out_shape=jax.ShapeDtypeStruct((NCHUNKS, bc, 128), jnp.float32),
        grid=(NCHUNKS,),
        in_specs=[
            pl.BlockSpec((rows, SEQ_COLS), lambda c: (c, 0)),        # packed sequences
            pl.BlockSpec((bc, SIZE, SIZE), lambda c: (c, 0, 0)),     # loop-score labels
            pl.BlockSpec((SLAB_ROWS, 128), lambda c: (0, 0)),        # packed weight slab
        ],
        out_specs=pl.BlockSpec((None, bc, 128), lambda c: (c, 0, 0)),
        scratch_shapes=[pltpu.VMEM((rows, 2 * HIDDEN_DIMS), jnp.float32),  # hidden states
                        pltpu.VMEM((rows, FEAT_PAD), jnp.float32),         # 128-lane feat slab
                        pltpu.VMEM((rows, FEAT_PAD), jnp.float32)],        # fm (used when bc > 1)
        compiler_params=pltpu.CompilerParams(dimension_semantics=("parallel",)),
    )(seq, ls_p, weight_slab)
    return out.reshape(b_pad, 128)[:B, :N_PARTIALS]


# ------------------------------ glue (JAX) ------------------------------------
def interp1d(x, size):
    # linear resample along the time axis (align_corners=True semantics)
    B, T, C = x.shape
    pos = jnp.linspace(0.0, T - 1.0, size)
    i0 = jnp.floor(pos).astype(jnp.int32)
    i1 = jnp.minimum(i0 + 1, T - 1)
    w = (pos - i0.astype(jnp.float32))[None, :, None]
    return x[:, i0] * (1.0 - w) + x[:, i1] * w


def interp2d(x, size):
    y = interp1d(x, size)
    y = interp1d(jnp.transpose(y, (0, 2, 1)), size)
    return jnp.transpose(y, (0, 2, 1))


def traj2velo(traj):
    # noise_model == 'None'; zero velocity prepended so T stays == size
    velo = jnp.concatenate([jnp.zeros_like(traj[:, :1]), traj[:, 1:] - traj[:, :-1]], axis=1)
    direction = jnp.arctan2(velo[..., 1:2], velo[..., 0:1])
    direction = direction.at[:, 0].set(direction[:, 1])   # first step carries step-1 heading
    return velo, traj, direction


def velo2input(velo, sincos_scale):
    # multi-scale sin/cos encoding of the heading -> 2*(scale+1) input dims
    theta = jnp.arctan2(velo[..., 1:2], velo[..., 0:1])
    scales = (2.0 ** jnp.arange(sincos_scale + 1, dtype=jnp.float32))[None, None, :]
    ang = theta * scales
    return jnp.concatenate([jnp.sin(ang), jnp.cos(ang)], axis=-1)


def pack_weights(params):
    """Pack priors + all (derived) weights into one (SLAB_ROWS, 128) f32 slab.
    For training this would be rebuilt per step (a handful of cheap XLA ops)."""
    H = HIDDEN_DIMS
    slab = jnp.zeros((SLAB_ROWS, 128), jnp.float32)

    def put(s, r, c, a):
        a = jnp.asarray(a, jnp.float32)
        return s.at[r:r + a.shape[0], c:c + a.shape[1]].set(a)

    slab = put(slab, R_CELLS, 0, params["pc_cells"].T)                                   # (2, PC)
    slab = put(slab, R_HDC, 0, params["hd_cells"])                                       # (1, HD)
    slab = put(slab, R_BIH, 0, jnp.concatenate([params["b_f"], params["b_b"]], -1))      # (1, 2H)
    slab = put(slab, R_BHEAD, 0, jnp.concatenate([params["b_hd"], params["b_pc"]], -1))  # (1, 28)
    slab = put(slab, R_WP0, 0, params["W_p0"])
    slab = put(slab, R_WH0, 0, params["W_h0"])
    wih = jnp.zeros((2 * INPUT_DIMS, 2 * H), jnp.float32)
    wih = wih.at[:INPUT_DIMS, :H].set(params["W_ih_f"]).at[INPUT_DIMS:, H:].set(params["W_ih_b"])
    slab = put(slab, R_WIH, 0, wih)
    whh = jnp.zeros((2 * H, 2 * H), jnp.float32)
    whh = whh.at[:H, :H].set(params["W_hh_f"]).at[H:, H:].set(params["W_hh_b"])
    slab = put(slab, R_WHH, 0, whh)
    slab = put(slab, R_WHEAD, 0, jnp.concatenate([params["W_hd"], params["W_pc"]], -1))  # (2H, 28)
    m = jnp.dot(params["W_q"], params["W_k"].T)                                          # (92, 92)
    slab = put(slab, R_M, 0, m)                                                          # zero-padded
    return slab


def init_params(key):
    cells, _ = pc_piror([-1.0, 1.0], HALF_PC_SIZE)
    hd_cells = hd_piror(HD_SIZE)
    ks = jax.random.split(key, 10)
    w = lambda k, s: (0.1 * jax.random.normal(k, s)).astype(jnp.float32)
    H = HIDDEN_DIMS
    p = {
        "pc_cells": cells,
        "hd_cells": hd_cells.reshape(1, HD_SIZE),
        "W_p0": w(ks[0], (PC_SIZE, H)),
        "W_h0": w(ks[1], (HD_SIZE, H)),
        "W_ih_f": w(ks[2], (INPUT_DIMS, H)),
        "W_hh_f": w(ks[3], (H, H)),
        "b_f": jnp.zeros((1, H), jnp.float32),
        "W_ih_b": w(ks[4], (INPUT_DIMS, H)),
        "W_hh_b": w(ks[5], (H, H)),
        "b_b": jnp.zeros((1, H), jnp.float32),
        "W_pc": w(ks[6], (2 * H, PC_SIZE)),
        "b_pc": jnp.zeros((1, PC_SIZE), jnp.float32),
        "W_hd": w(ks[7], (2 * H, HD_SIZE)),
        "b_hd": jnp.zeros((1, HD_SIZE), jnp.float32),
        "W_q": w(ks[8], (FEAT_DIMS, MATCH_DM)),
        "W_k": w(ks[9], (FEAT_DIMS, MATCH_DM)),
    }
    p["slab"] = pack_weights(p)
    return p


def loop_module_forward(params, trajectory_input, trajectory_label, loop_label, loop_score):
    ti = interp1d(trajectory_input, SIZE)
    tl = interp1d(trajectory_label, SIZE)
    _ll = interp1d(loop_label[..., None], SIZE)       # kept for parity; unused in 'cell' loss path
    ls = interp2d(loop_score, SIZE)

    velo, position, direction = traj2velo(ti)
    velo_input = velo2input(velo, SINCOS_SCALE)
    theta_l = jnp.arctan2(tl[:, :, 1], tl[:, :, 0])[..., None]

    B, T, _ = position.shape
    # One fused kernel -> per-batch partial sums; pool over the batch then combine.
    p = jnp.sum(loop_fused(params["slab"], position, direction, velo_input, tl, theta_l, ls),
                axis=0)

    def ce(i):
        # guard only trips on degenerate (empty-mask) labels; sums are 0 there.
        return (p[i] / jnp.maximum(p[i + 1], 1.0)
                + p[i + 2] / jnp.maximum(p[i + 3], 1.0))

    score_loss = ce(0) + ce(4) + ce(8)                # full + row-max + col-max CE
    pc_loss = p[12] / (B * T)
    hd_loss = p[13] / (B * T)
    total_loss = score_loss + pc_loss + hd_loss
    losses = {"L_pc": pc_loss, "L_hd": hd_loss, "L_score": score_loss}
    return total_loss, losses


if __name__ == "__main__":
    key = jax.random.PRNGKey(0)
    k_ti, k_tl, k_ll, k_ls, k_p = jax.random.split(key, 5)
    B, T_IN = 2, 12

    trajectory_input = jnp.clip(
        jnp.cumsum(jax.random.uniform(k_ti, (B, T_IN, 2), minval=-0.15, maxval=0.15), axis=1),
        -1.0, 1.0)
    trajectory_label = jnp.clip(
        jnp.cumsum(jax.random.uniform(k_tl, (B, T_IN, 2), minval=-0.15, maxval=0.15), axis=1),
        -1.0, 1.0)
    loop_label = (jax.random.uniform(k_ll, (B, T_IN)) > 0.5).astype(jnp.float32)
    # block-structured loop-score GT so both positive and negative masks are non-empty
    base = 0.3 + 0.7 * jax.random.uniform(k_ls, (B, T_IN, T_IN))
    keep = (jnp.arange(T_IN) < T_IN // 2).astype(jnp.float32)
    loop_score = base * keep[None, :, None] * keep[None, None, :]

    params = init_params(k_p)

    fwd = jax.jit(loop_module_forward)
    total_loss, losses = fwd(params, trajectory_input, trajectory_label, loop_label, loop_score)
    jax.block_until_ready(total_loss)
    print("KERNEL_OK")
</pallas_src>

<mosaic_0001>
module attributes {stable_mosaic.version = 11 : i64} {
  func.func @_loop_fused_kernel(%arg0: i32, %arg1: memref<16x32xf32, #tpu.memory_space<vmem>>, %arg2: memref<1x16x16xf32, #tpu.memory_space<vmem>>, %arg3: memref<312x128xf32, #tpu.memory_space<vmem>>, %arg4: memref<1x1x128xf32, #tpu.memory_space<vmem>>, %arg5: memref<16x64xf32, #tpu.memory_space<vmem>>, %arg6: memref<16x128xf32, #tpu.memory_space<vmem>>, %arg7: memref<16x128xf32, #tpu.memory_space<vmem>>) attributes {dimension_semantics = [#tpu.dimension_semantics<parallel>], iteration_bounds = array<i64: 2>, scalar_prefetch = 0 : i64, scratch_operands = 3 : i64, tpu.core_type = #tpu.core_type<tc>, window_params = [{transform_indices = @transform_0, window_bounds = array<i64: 16, 32>}, {transform_indices = @transform_1, window_bounds = array<i64: 1, 16, 16>}, {pipeline_mode = #tpu.pipeline_mode<synchronous>, transform_indices = @transform_2, window_bounds = array<i64: 312, 128>}, {transform_indices = @transform_3, window_bounds = array<i64: 1, 1, 128>}]} {
    %c0 = arith.constant 0 : index
    %c0_0 = arith.constant 0 : index
    %0 = vector.load %arg3[%c0, %c0_0] : memref<312x128xf32, #tpu.memory_space<vmem>>, vector<2x16xf32>
    %c2 = arith.constant 2 : index
    %c0_1 = arith.constant 0 : index
    %1 = vector.load %arg3[%c2, %c0_1] : memref<312x128xf32, #tpu.memory_space<vmem>>, vector<1x12xf32>
    %c3 = arith.constant 3 : index
    %c0_2 = arith.constant 0 : index
    %2 = vector.load %arg3[%c3, %c0_2] : memref<312x128xf32, #tpu.memory_space<vmem>>, vector<1x64xf32>
    %c4 = arith.constant 4 : index
    %c0_3 = arith.constant 0 : index
    %3 = vector.load %arg3[%c4, %c0_3] : memref<312x128xf32, #tpu.memory_space<vmem>>, vector<1x28xf32>
    %c8 = arith.constant 8 : index
    %c0_4 = arith.constant 0 : index
    %4 = vector.load %arg3[%c8, %c0_4] : memref<312x128xf32, #tpu.memory_space<vmem>>, vector<16x32xf32>
    %c24 = arith.constant 24 : index
    %c0_5 = arith.constant 0 : index
    %5 = vector.load %arg3[%c24, %c0_5] : memref<312x128xf32, #tpu.memory_space<vmem>>, vector<12x32xf32>
    %c40 = arith.constant 40 : index
    %c0_6 = arith.constant 0 : index
    %6 = vector.load %arg3[%c40, %c0_6] : memref<312x128xf32, #tpu.memory_space<vmem>>, vector<16x64xf32>
    %c56 = arith.constant 56 : index
    %c0_7 = arith.constant 0 : index
    %7 = vector.load %arg3[%c56, %c0_7] : memref<312x128xf32, #tpu.memory_space<vmem>>, vector<64x64xf32>
    %c120 = arith.constant 120 : index
    %c0_8 = arith.constant 0 : index
    %8 = vector.load %arg3[%c120, %c0_8] : memref<312x128xf32, #tpu.memory_space<vmem>>, vector<64x28xf32>
    %c184 = arith.constant 184 : index
    %c0_9 = arith.constant 0 : index
    %9 = vector.load %arg3[%c184, %c0_9] : memref<312x128xf32, #tpu.memory_space<vmem>>, vector<128x128xf32>
    %c0_10 = arith.constant 0 : index
    %c0_11 = arith.constant 0 : index
    %10 = vector.load %arg1[%c0_10, %c0_11] : memref<16x32xf32, #tpu.memory_space<vmem>>, vector<16x32xf32>
    %11 = vector.extract_strided_slice %10 {offsets = [0, 0], sizes = [1, 32], strides = [1, 1]} : vector<16x32xf32> to vector<1x32xf32>
    %12 = vector.extract_strided_slice %10 {offsets = [15, 0], sizes = [1, 32], strides = [1, 1]} : vector<16x32xf32> to vector<1x32xf32>
    %13 = tpu.concatenate %11, %12 in 0 : vector<1x32xf32>, vector<1x32xf32> -> vector<2x32xf32>
    %14 = vector.extract_strided_slice %13 {offsets = [0, 0], sizes = [2, 2], strides = [1, 1]} : vector<2x32xf32> to vector<2x2xf32>
    %15 = arith.mulf %14, %14 : vector<2x2xf32>
    %cst = arith.constant dense<0.000000e+00> : vector<2xf32>
    %16 = vector.multi_reduction <add>, %15, %cst [1] : vector<2x2xf32> to vector<2xf32>
    %17 = vector.shape_cast %16 : vector<2xf32> to vector<2x1xf32>
    %18 = arith.mulf %0, %0 : vector<2x16xf32>
    %cst_12 = arith.constant dense<0.000000e+00> : vector<16xf32>
    %19 = vector.multi_reduction <add>, %18, %cst_12 [0] : vector<2x16xf32> to vector<16xf32>
    %20 = vector.shape_cast %19 : vector<16xf32> to vector<1x16xf32>
    %cst_13 = arith.constant dense<0.000000e+00> : vector<2x16xf32>
    %21 = tpu.matmul %14, %0, %cst_13 {dimension_numbers = #tpu.dot_dimension_numbers<[1], [0], [0], [1], [0, 0, 1, 1], [], []>} : vector<2x2xf32>, vector<2x16xf32>, vector<2x16xf32> -> vector<2x16xf32>
    %22 = vector.broadcast %17 : vector<2x1xf32> to vector<2x16xf32>
    %23 = vector.broadcast %20 : vector<1x16xf32> to vector<2x16xf32>
    %24 = arith.addf %22, %23 : vector<2x16xf32>
    %cst_14 = arith.constant 2.000000e+00 : f32
    %25 = vector.broadcast %cst_14 : f32 to vector<2x16xf32>
    %26 = arith.mulf %25, %21 : vector<2x16xf32>
    %27 = arith.subf %24, %26 : vector<2x16xf32>
    %cst_15 = arith.constant 0.000000e+00 : f32
    %28 = vector.broadcast %cst_15 : f32 to vector<2x16xf32>
    %29 = arith.subf %28, %27 : vector<2x16xf32>
    %cst_16 = arith.constant 0.013888889 : f32
    %30 = vector.broadcast %cst_16 : f32 to vector<2x16xf32>
    %31 = arith.divf %29, %30 : vector<2x16xf32>
    %cst_17 = arith.constant dense<0xFF800000> : vector<2xf32>
    %32 = vector.multi_reduction <maximumf>, %31, %cst_17 [1] : vector<2x16xf32> to vector<2xf32>
    %33 = vector.shape_cast %32 : vector<2xf32> to vector<2x1xf32>
    %34 = vector.broadcast %33 : vector<2x1xf32> to vector<2x16xf32>
    %35 = arith.subf %31, %34 : vector<2x16xf32>
    %36 = math.exp %35 : vector<2x16xf32>
    %cst_18 = arith.constant dense<0.000000e+00> : vector<2xf32>
    %37 = vector.multi_reduction <add>, %36, %cst_18 [1] : vector<2x16xf32> to vector<2xf32>
    %38 = vector.shape_cast %37 : vector<2xf32> to vector<2x1xf32>
    %39 = tpu.reciprocal %38 {approx = true} : vector<2x1xf32> -> vector<2x1xf32>
    %40 = vector.broadcast %39 : vector<2x1xf32> to vector<2x16xf32>
    %41 = arith.mulf %36, %40 : vector<2x16xf32>
    %42 = vector.extract_strided_slice %13 {offsets = [0, 2], sizes = [2, 1], strides = [1, 1]} : vector<2x32xf32> to vector<2x1xf32>
    %43 = vector.broadcast %42 : vector<2x1xf32> to vector<2x12xf32>
    %44 = vector.broadcast %1 : vector<1x12xf32> to vector<2x12xf32>
    %45 = arith.subf %43, %44 : vector<2x12xf32>
    %46 = math.cos %45 : vector<2x12xf32>
    %cst_19 = arith.constant 2.000000e+01 : f32
    %47 = vector.broadcast %cst_19 : f32 to vector<2x12xf32>
    %48 = arith.mulf %47, %46 : vector<2x12xf32>
    %cst_20 = arith.constant dense<0xFF800000> : vector<2xf32>
    %49 = vector.multi_reduction <maximumf>, %48, %cst_20 [1] : vector<2x12xf32> to vector<2xf32>
    %50 = vector.shape_cast %49 : vector<2xf32> to vector<2x1xf32>
    %51 = vector.broadcast %50 : vector<2x1xf32> to vector<2x12xf32>
    %52 = arith.subf %48, %51 : vector<2x12xf32>
    %53 = math.exp %52 : vector<2x12xf32>
    %cst_21 = arith.constant dense<0.000000e+00> : vector<2xf32>
    %54 = vector.multi_reduction <add>, %53, %cst_21 [1] : vector<2x12xf32> to vector<2xf32>
    %55 = vector.shape_cast %54 : vector<2xf32> to vector<2x1xf32>
    %56 = tpu.reciprocal %55 {approx = true} : vector<2x1xf32> -> vector<2x1xf32>
    %57 = vector.broadcast %56 : vector<2x1xf32> to vector<2x12xf32>
    %58 = arith.mulf %53, %57 : vector<2x12xf32>
    %cst_22 = arith.constant dense<0.000000e+00> : vector<2x32xf32>
    %59 = tpu.matmul %41, %4, %cst_22 {dimension_numbers = #tpu.dot_dimension_numbers<[1], [0], [0], [1], [0, 0, 1, 1], [], []>} : vector<2x16xf32>, vector<16x32xf32>, vector<2x32xf32> -> vector<2x32xf32>
    %cst_23 = arith.constant dense<0.000000e+00> : vector<2x32xf32>
    %60 = tpu.matmul %58, %5, %cst_23 {dimension_numbers = #tpu.dot_dimension_numbers<[1], [0], [0], [1], [0, 0, 1, 1], [], []>} : vector<2x12xf32>, vector<12x32xf32>, vector<2x32xf32> -> vector<2x32xf32>
    %61 = arith.addf %59, %60 : vector<2x32xf32>
    %62 = math.tanh %61 : vector<2x32xf32>
    %63 = vector.extract_strided_slice %62 {offsets = [0, 0], sizes = [1, 32], strides = [1, 1]} : vector<2x32xf32> to vector<1x32xf32>
    %64 = vector.extract_strided_slice %62 {offsets = [1, 0], sizes = [1, 32], strides = [1, 1]} : vector<2x32xf32> to vector<1x32xf32>
    %65 = tpu.concatenate %63, %64 in 1 : vector<1x32xf32>, vector<1x32xf32> -> vector<1x64xf32>
    %66 = vector.extract_strided_slice %10 {offsets = [0, 3], sizes = [16, 16], strides = [1, 1]} : vector<16x32xf32> to vector<16x16xf32>
    %cst_24 = arith.constant dense<0.000000e+00> : vector<16x64xf32>
    %67 = tpu.matmul %66, %6, %cst_24 {dimension_numbers = #tpu.dot_dimension_numbers<[1], [0], [0], [1], [0, 0, 1, 1], [], []>} : vector<16x16xf32>, vector<16x64xf32>, vector<16x64xf32> -> vector<16x64xf32>
    %68 = vector.broadcast %2 : vector<1x64xf32> to vector<16x64xf32>
    %69 = arith.addf %67, %68 : vector<16x64xf32>
    %70 = vector.extract_strided_slice %69 {offsets = [0, 0], sizes = [1, 64], strides = [1, 1]} : vector<16x64xf32> to vector<1x64xf32>
    %cst_25 = arith.constant dense<0.000000e+00> : vector<1x64xf32>
    %71 = tpu.matmul %65, %7, %cst_25 {dimension_numbers = #tpu.dot_dimension_numbers<[1], [0], [0], [1], [0, 0, 1, 1], [], []>} : vector<1x64xf32>, vector<64x64xf32>, vector<1x64xf32> -> vector<1x64xf32>
    %72 = arith.addf %70, %71 : vector<1x64xf32>
    %73 = math.tanh %72 : vector<1x64xf32>
    %74 = vector.extract_strided_slice %73 {offsets = [0, 0], sizes = [1, 32], strides = [1, 1]} : vector<1x64xf32> to vector<1x32xf32>
    %c0_26 = arith.constant 0 : index
    %c0_27 = arith.constant 0 : index
    %75 = vector.load %arg5[%c0_26, %c0_27] : memref<16x64xf32, #tpu.memory_space<vmem>>, vector<1x32xf32>
    tpu.vector_store %arg5[%c0_26, %c0_27], %74 {strides = array<i32>} : memref<16x64xf32, #tpu.memory_space<vmem>>, vector<1x32xf32>,
    %76 = vector.extract_strided_slice %73 {offsets = [0, 32], sizes = [1, 32], strides = [1, 1]} : vector<1x64xf32> to vector<1x32xf32>
    %c15 = arith.constant 15 : index
    %c32 = arith.constant 32 : index
    %77 = vector.load %arg5[%c15, %c32] : memref<16x64xf32, #tpu.memory_space<vmem>>, vector<1x32xf32>
    tpu.vector_store %arg5[%c15, %c32], %76 {strides = array<i32>} : memref<16x64xf32, #tpu.memory_space<vmem>>, vector<1x32xf32>,
    %78 = vector.extract_strided_slice %69 {offsets = [1, 0], sizes = [1, 64], strides = [1, 1]} : vector<16x64xf32> to vector<1x64xf32>
    %cst_28 = arith.constant dense<0.000000e+00> : vector<1x64xf32>
    %79 = tpu.matmul %73, %7, %cst_28 {dimension_numbers = #tpu.dot_dimension_numbers<[1], [0], [0], [1], [0, 0, 1, 1], [], []>} : vector<1x64xf32>, vector<64x64xf32>, vector<1x64xf32> -> vector<1x64xf32>
    %80 = arith.addf %78, %79 : vector<1x64xf32>
    %81 = math.tanh %80 : vector<1x64xf32>
    %82 = vector.extract_strided_slice %81 {offsets = [0, 0], sizes = [1, 32], strides = [1, 1]} : vector<1x64xf32> to vector<1x32xf32>
    %c1 = arith.constant 1 : index
    %c0_29 = arith.constant 0 : index
    %83 = vector.load %arg5[%c1, %c0_29] : memref<16x64xf32, #tpu.memory_space<vmem>>, vector<1x32xf32>
    tpu.vector_store %arg5[%c1, %c0_29], %82 {strides = array<i32>} : memref<16x64xf32, #tpu.memory_space<vmem>>, vector<1x32xf32>,
    %84 = vector.extract_strided_slice %81 {offsets = [0, 32], sizes = [1, 32], strides = [1, 1]} : vector<1x64xf32> to vector<1x32xf32>
    %c14 = arith.constant 14 : index
    %c32_30 = arith.constant 32 : index
    %85 = vector.load %arg5[%c14, %c32_30] : memref<16x64xf32, #tpu.memory_space<vmem>>, vector<1x32xf32>
    tpu.vector_store %arg5[%c14, %c32_30], %84 {strides = array<i32>} : memref<16x64xf32, #tpu.memory_space<vmem>>, vector<1x32xf32>,
    %86 = vector.extract_strided_slice %69 {offsets = [2, 0], sizes = [1, 64], strides = [1, 1]} : vector<16x64xf32> to vector<1x64xf32>
    %cst_31 = arith.constant dense<0.000000e+00> : vector<1x64xf32>
    %87 = tpu.matmul %81, %7, %cst_31 {dimension_numbers = #tpu.dot_dimension_numbers<[1], [0], [0], [1], [0, 0, 1, 1], [], []>} : vector<1x64xf32>, vector<64x64xf32>, vector<1x64xf32> -> vector<1x64xf32>
    %88 = arith.addf %86, %87 : vector<1x64xf32>
    %89 = math.tanh %88 : vector<1x64xf32>
    %90 = vector.extract_strided_slice %89 {offsets = [0, 0], sizes = [1, 32], strides = [1, 1]} : vector<1x64xf32> to vector<1x32xf32>
    %c2_32 = arith.constant 2 : index
    %c0_33 = arith.constant 0 : index
    %91 = vector.load %arg5[%c2_32, %c0_33] : memref<16x64xf32, #tpu.memory_space<vmem>>, vector<1x32xf32>
    tpu.vector_store %arg5[%c2_32, %c0_33], %90 {strides = array<i32>} : memref<16x64xf32, #tpu.memory_space<vmem>>, vector<1x32xf32>,
    %92 = vector.extract_strided_slice %89 {offsets = [0, 32], sizes = [1, 32], strides = [1, 1]} : vector<1x64xf32> to vector<1x32xf32>
    %c13 = arith.constant 13 : index
    %c32_34 = arith.constant 32 : index
    %93 = vector.load %arg5[%c13, %c32_34] : memref<16x64xf32, #tpu.memory_space<vmem>>, vector<1x32xf32>
    tpu.vector_store %arg5[%c13, %c32_34], %92 {strides = array<i32>} : memref<16x64xf32, #tpu.memory_space<vmem>>, vector<1x32xf32>,
    %94 = vector.extract_strided_slice %69 {offsets = [3, 0], sizes = [1, 64], strides = [1, 1]} : vector<16x64xf32> to vector<1x64xf32>
    %cst_35 = arith.constant dense<0.000000e+00> : vector<1x64xf32>
    %95 = tpu.matmul %89, %7, %cst_35 {dimension_numbers = #tpu.dot_dimension_numbers<[1], [0], [0], [1], [0, 0, 1, 1], [], []>} : vector<1x64xf32>, vector<64x64xf32>, vector<1x64xf32> -> vector<1x64xf32>
    %96 = arith.addf %94, %95 : vector<1x64xf32>
    %97 = math.tanh %96 : vector<1x64xf32>
    %98 = vector.extract_strided_slice %97 {offsets = [0, 0], sizes = [1, 32], strides = [1, 1]} : vector<1x64xf32> to vector<1x32xf32>
    %c3_36 = arith.constant 3 : index
    %c0_37 = arith.constant 0 : index
    %99 = vector.load %arg5[%c3_36, %c0_37] : memref<16x64xf32, #tpu.memory_space<vmem>>, vector<1x32xf32>
    tpu.vector_store %arg5[%c3_36, %c0_37], %98 {strides = array<i32>} : memref<16x64xf32, #tpu.memory_space<vmem>>, vector<1x32xf32>,
    %100 = vector.extract_strided_slice %97 {offsets = [0, 32], sizes = [1, 32], strides = [1, 1]} : vector<1x64xf32> to vector<1x32xf32>
    %c12 = arith.constant 12 : index
    %c32_38 = arith.constant 32 : index
    %101 = vector.load %arg5[%c12, %c32_38] : memref<16x64xf32, #tpu.memory_space<vmem>>, vector<1x32xf32>
    tpu.vector_store %arg5[%c12, %c32_38], %100 {strides = array<i32>} : memref<16x64xf32, #tpu.memory_space<vmem>>, vector<1x32xf32>,
    %102 = vector.extract_strided_slice %69 {offsets = [4, 0], sizes = [1, 64], strides = [1, 1]} : vector<16x64xf32> to vector<1x64xf32>
    %cst_39 = arith.constant dense<0.000000e+00> : vector<1x64xf32>
    %103 = tpu.matmul %97, %7, %cst_39 {dimension_numbers = #tpu.dot_dimension_numbers<[1], [0], [0], [1], [0, 0, 1, 1], [], []>} : vector<1x64xf32>, vector<64x64xf32>, vector<1x64xf32> -> vector<1x64xf32>
    %104 = arith.addf %102, %103 : vector<1x64xf32>
    %105 = math.tanh %104 : vector<1x64xf32>
    %106 = vector.extract_strided_slice %105 {offsets = [0, 0], sizes = [1, 32], strides = [1, 1]} : vector<1x64xf32> to vector<1x32xf32>
    %c4_40 = arith.constant 4 : index
    %c0_41 = arith.constant 0 : index
    %107 = vector.load %arg5[%c4_40, %c0_41] : memref<16x64xf32, #tpu.memory_space<vmem>>, vector<1x32xf32>
    tpu.vector_store %arg5[%c4_40, %c0_41], %106 {strides = array<i32>} : memref<16x64xf32, #tpu.memory_space<vmem>>, vector<1x32xf32>,
    %108 = vector.extract_strided_slice %105 {offsets = [0, 32], sizes = [1, 32], strides = [1, 1]} : vector<1x64xf32> to vector<1x32xf32>
    %c11 = arith.constant 11 : index
    %c32_42 = arith.constant 32 : index
    %109 = vector.load %arg5[%c11, %c32_42] : memref<16x64xf32, #tpu.memory_space<vmem>>, vector<1x32xf32>
    tpu.vector_store %arg5[%c11, %c32_42], %108 {strides = array<i32>} : memref<16x64xf32, #tpu.memory_space<vmem>>, vector<1x32xf32>,
    %110 = vector.extract_strided_slice %69 {offsets = [5, 0], sizes = [1, 64], strides = [1, 1]} : vector<16x64xf32> to vector<1x64xf32>
    %cst_43 = arith.constant dense<0.000000e+00> : vector<1x64xf32>
    %111 = tpu.matmul %105, %7, %cst_43 {dimension_numbers = #tpu.dot_dimension_numbers<[1], [0], [0], [1], [0, 0, 1, 1], [], []>} : vector<1x64xf32>, vector<64x64xf32>, vector<1x64xf32> -> vector<1x64xf32>
    %112 = arith.addf %110, %111 : vector<1x64xf32>
    %113 = math.tanh %112 : vector<1x64xf32>
    %114 = vector.extract_strided_slice %113 {offsets = [0, 0], sizes = [1, 32], strides = [1, 1]} : vector<1x64xf32> to vector<1x32xf32>
    %c5 = arith.constant 5 : index
    %c0_44 = arith.constant 0 : index
    %115 = vector.load %arg5[%c5, %c0_44] : memref<16x64xf32, #tpu.memory_space<vmem>>, vector<1x32xf32>
    tpu.vector_store %arg5[%c5, %c0_44], %114 {strides = array<i32>} : memref<16x64xf32, #tpu.memory_space<vmem>>, vector<1x32xf32>,
    %116 = vector.extract_strided_slice %113 {offsets = [0, 32], sizes = [1, 32], strides = [1, 1]} : vector<1x64xf32> to vector<1x32xf32>
    %c10 = arith.constant 10 : index
    %c32_45 = arith.constant 32 : index
    %117 = vector.load %arg5[%c10, %c32_45] : memref<16x64xf32, #tpu.memory_space<vmem>>, vector<1x32xf32>
    tpu.vector_store %arg5[%c10, %c32_45], %116 {strides = array<i32>} : memref<16x64xf32, #tpu.memory_space<vmem>>, vector<1x32xf32>,
    %118 = vector.extract_strided_slice %69 {offsets = [6, 0], sizes = [1, 64], strides = [1, 1]} : vector<16x64xf32> to vector<1x64xf32>
    %cst_46 = arith.constant dense<0.000000e+00> : vector<1x64xf32>
    %119 = tpu.matmul %113, %7, %cst_46 {dimension_numbers = #tpu.dot_dimension_numbers<[1], [0], [0], [1], [0, 0, 1, 1], [], []>} : vector<1x64xf32>, vector<64x64xf32>, vector<1x64xf32> -> vector<1x64xf32>
    %120 = arith.addf %118, %119 : vector<1x64xf32>
    %121 = math.tanh %120 : vector<1x64xf32>
    %122 = vector.extract_strided_slice %121 {offsets = [0, 0], sizes = [1, 32], strides = [1, 1]} : vector<1x64xf32> to vector<1x32xf32>
    %c6 = arith.constant 6 : index
    %c0_47 = arith.constant 0 : index
    %123 = vector.load %arg5[%c6, %c0_47] : memref<16x64xf32, #tpu.memory_space<vmem>>, vector<1x32xf32>
    tpu.vector_store %arg5[%c6, %c0_47], %122 {strides = array<i32>} : memref<16x64xf32, #tpu.memory_space<vmem>>, vector<1x32xf32>,
    %124 = vector.extract_strided_slice %121 {offsets = [0, 32], sizes = [1, 32], strides = [1, 1]} : vector<1x64xf32> to vector<1x32xf32>
    %c9 = arith.constant 9 : index
    %c32_48 = arith.constant 32 : index
    %125 = vector.load %arg5[%c9, %c32_48] : memref<16x64xf32, #tpu.memory_space<vmem>>, vector<1x32xf32>
    tpu.vector_store %arg5[%c9, %c32_48], %124 {strides = array<i32>} : memref<16x64xf32, #tpu.memory_space<vmem>>, vector<1x32xf32>,
    %126 = vector.extract_strided_slice %69 {offsets = [7, 0], sizes = [1, 64], strides = [1, 1]} : vector<16x64xf32> to vector<1x64xf32>
    %cst_49 = arith.constant dense<0.000000e+00> : vector<1x64xf32>
    %127 = tpu.matmul %121, %7, %cst_49 {dimension_numbers = #tpu.dot_dimension_numbers<[1], [0], [0], [1], [0, 0, 1, 1], [], []>} : vector<1x64xf32>, vector<64x64xf32>, vector<1x64xf32> -> vector<1x64xf32>
    %128 = arith.addf %126, %127 : vector<1x64xf32>
    %129 = math.tanh %128 : vector<1x64xf32>
    %130 = vector.extract_strided_slice %129 {offsets = [0, 0], sizes = [1, 32], strides = [1, 1]} : vector<1x64xf32> to vector<1x32xf32>
    %c7 = arith.constant 7 : index
    %c0_50 = arith.constant 0 : index
    %131 = vector.load %arg5[%c7, %c0_50] : memref<16x64xf32, #tpu.memory_space<vmem>>, vector<1x32xf32>
    tpu.vector_store %arg5[%c7, %c0_50], %130 {strides = array<i32>} : memref<16x64xf32, #tpu.memory_space<vmem>>, vector<1x32xf32>,
    %132 = vector.extract_strided_slice %129 {offsets = [0, 32], sizes = [1, 32], strides = [1, 1]} : vector<1x64xf32> to vector<1x32xf32>
    %c8_51 = arith.constant 8 : index
    %c32_52 = arith.constant 32 : index
    %133 = vector.load %arg5[%c8_51, %c32_52] : memref<16x64xf32, #tpu.memory_space<vmem>>, vector<1x32xf32>
    tpu.vector_store %arg5[%c8_51, %c32_52], %132 {strides = array<i32>} : memref<16x64xf32, #tpu.memory_space<vmem>>, vector<1x32xf32>,
    %134 = vector.extract_strided_slice %69 {offsets = [8, 0], sizes = [1, 64], strides = [1, 1]} : vector<16x64xf32> to vector<1x64xf32>
    %cst_53 = arith.constant dense<0.000000e+00> : vector<1x64xf32>
    %135 = tpu.matmul %129, %7, %cst_53 {dimension_numbers = #tpu.dot_dimension_numbers<[1], [0], [0], [1], [0, 0, 1, 1], [], []>} : vector<1x64xf32>, vector<64x64xf32>, vector<1x64xf32> -> vector<1x64xf32>
    %136 = arith.addf %134, %135 : vector<1x64xf32>
    %137 = math.tanh %136 : vector<1x64xf32>
    %138 = vector.extract_strided_slice %137 {offsets = [0, 0], sizes = [1, 32], strides = [1, 1]} : vector<1x64xf32> to vector<1x32xf32>
    %c8_54 = arith.constant 8 : index
    %c0_55 = arith.constant 0 : index
    %139 = vector.load %arg5[%c8_54, %c0_55] : memref<16x64xf32, #tpu.memory_space<vmem>>, vector<1x32xf32>
    tpu.vector_store %arg5[%c8_54, %c0_55], %138 {strides = array<i32>} : memref<16x64xf32, #tpu.memory_space<vmem>>, vector<1x32xf32>,
    %140 = vector.extract_strided_slice %137 {offsets = [0, 32], sizes = [1, 32], strides = [1, 1]} : vector<1x64xf32> to vector<1x32xf32>
    %c7_56 = arith.constant 7 : index
    %c32_57 = arith.constant 32 : index
    %141 = vector.load %arg5[%c7_56, %c32_57] : memref<16x64xf32, #tpu.memory_space<vmem>>, vector<1x32xf32>
    tpu.vector_store %arg5[%c7_56, %c32_57], %140 {strides = array<i32>} : memref<16x64xf32, #tpu.memory_space<vmem>>, vector<1x32xf32>,
    %142 = vector.extract_strided_slice %69 {offsets = [9, 0], sizes = [1, 64], strides = [1, 1]} : vector<16x64xf32> to vector<1x64xf32>
    %cst_58 = arith.constant dense<0.000000e+00> : vector<1x64xf32>
    %143 = tpu.matmul %137, %7, %cst_58 {dimension_numbers = #tpu.dot_dimension_numbers<[1], [0], [0], [1], [0, 0, 1, 1], [], []>} : vector<1x64xf32>, vector<64x64xf32>, vector<1x64xf32> -> vector<1x64xf32>
    %144 = arith.addf %142, %143 : vector<1x64xf32>
    %145 = math.tanh %144 : vector<1x64xf32>
    %146 = vector.extract_strided_slice %145 {offsets = [0, 0], sizes = [1, 32], strides = [1, 1]} : vector<1x64xf32> to vector<1x32xf32>
    %c9_59 = arith.constant 9 : index
    %c0_60 = arith.constant 0 : index
    %147 = vector.load %arg5[%c9_59, %c0_60] : memref<16x64xf32, #tpu.memory_space<vmem>>, vector<1x32xf32>
    tpu.vector_store %arg5[%c9_59, %c0_60], %146 {strides = array<i32>} : memref<16x64xf32, #tpu.memory_space<vmem>>, vector<1x32xf32>,
    %148 = vector.extract_strided_slice %145 {offsets = [0, 32], sizes = [1, 32], strides = [1, 1]} : vector<1x64xf32> to vector<1x32xf32>
    %c6_61 = arith.constant 6 : index
    %c32_62 = arith.constant 32 : index
    %149 = vector.load %arg5[%c6_61, %c32_62] : memref<16x64xf32, #tpu.memory_space<vmem>>, vector<1x32xf32>
    tpu.vector_store %arg5[%c6_61, %c32_62], %148 {strides = array<i32>} : memref<16x64xf32, #tpu.memory_space<vmem>>, vector<1x32xf32>,
    %150 = vector.extract_strided_slice %69 {offsets = [10, 0], sizes = [1, 64], strides = [1, 1]} : vector<16x64xf32> to vector<1x64xf32>
    %cst_63 = arith.constant dense<0.000000e+00> : vector<1x64xf32>
    %151 = tpu.matmul %145, %7, %cst_63 {dimension_numbers = #tpu.dot_dimension_numbers<[1], [0], [0], [1], [0, 0, 1, 1], [], []>} : vector<1x64xf32>, vector<64x64xf32>, vector<1x64xf32> -> vector<1x64xf32>
    %152 = arith.addf %150, %151 : vector<1x64xf32>
    %153 = math.tanh %152 : vector<1x64xf32>
    %154 = vector.extract_strided_slice %153 {offsets = [0, 0], sizes = [1, 32], strides = [1, 1]} : vector<1x64xf32> to vector<1x32xf32>
    %c10_64 = arith.constant 10 : index
    %c0_65 = arith.constant 0 : index
    %155 = vector.load %arg5[%c10_64, %c0_65] : memref<16x64xf32, #tpu.memory_space<vmem>>, vector<1x32xf32>
    tpu.vector_store %arg5[%c10_64, %c0_65], %154 {strides = array<i32>} : memref<16x64xf32, #tpu.memory_space<vmem>>, vector<1x32xf32>,
    %156 = vector.extract_strided_slice %153 {offsets = [0, 32], sizes = [1, 32], strides = [1, 1]} : vector<1x64xf32> to vector<1x32xf32>
    %c5_66 = arith.constant 5 : index
    %c32_67 = arith.constant 32 : index
    %157 = vector.load %arg5[%c5_66, %c32_67] : memref<16x64xf32, #tpu.memory_space<vmem>>, vector<1x32xf32>
    tpu.vector_store %arg5[%c5_66, %c32_67], %156 {strides = array<i32>} : memref<16x64xf32, #tpu.memory_space<vmem>>, vector<1x32xf32>,
    %158 = vector.extract_strided_slice %69 {offsets = [11, 0], sizes = [1, 64], strides = [1, 1]} : vector<16x64xf32> to vector<1x64xf32>
    %cst_68 = arith.constant dense<0.000000e+00> : vector<1x64xf32>
    %159 = tpu.matmul %153, %7, %cst_68 {dimension_numbers = #tpu.dot_dimension_numbers<[1], [0], [0], [1], [0, 0, 1, 1], [], []>} : vector<1x64xf32>, vector<64x64xf32>, vector<1x64xf32> -> vector<1x64xf32>
    %160 = arith.addf %158, %159 : vector<1x64xf32>
    %161 = math.tanh %160 : vector<1x64xf32>
    %162 = vector.extract_strided_slice %161 {offsets = [0, 0], sizes = [1, 32], strides = [1, 1]} : vector<1x64xf32> to vector<1x32xf32>
    %c11_69 = arith.constant 11 : index
    %c0_70 = arith.constant 0 : index
    %163 = vector.load %arg5[%c11_69, %c0_70] : memref<16x64xf32, #tpu.memory_space<vmem>>, vector<1x32xf32>
    tpu.vector_store %arg5[%c11_69, %c0_70], %162 {strides = array<i32>} : memref<16x64xf32, #tpu.memory_space<vmem>>, vector<1x32xf32>,
    %164 = vector.extract_strided_slice %161 {offsets = [0, 32], sizes = [1, 32], strides = [1, 1]} : vector<1x64xf32> to vector<1x32xf32>
    %c4_71 = arith.constant 4 : index
    %c32_72 = arith.constant 32 : index
    %165 = vector.load %arg5[%c4_71, %c32_72] : memref<16x64xf32, #tpu.memory_space<vmem>>, vector<1x32xf32>
    tpu.vector_store %arg5[%c4_71, %c32_72], %164 {strides = array<i32>} : memref<16x64xf32, #tpu.memory_space<vmem>>, vector<1x32xf32>,
    %166 = vector.extract_strided_slice %69 {offsets = [12, 0], sizes = [1, 64], strides = [1, 1]} : vector<16x64xf32> to vector<1x64xf32>
    %cst_73 = arith.constant dense<0.000000e+00> : vector<1x64xf32>
    %167 = tpu.matmul %161, %7, %cst_73 {dimension_numbers = #tpu.dot_dimension_numbers<[1], [0], [0], [1], [0, 0, 1, 1], [], []>} : vector<1x64xf32>, vector<64x64xf32>, vector<1x64xf32> -> vector<1x64xf32>
    %168 = arith.addf %166, %167 : vector<1x64xf32>
    %169 = math.tanh %168 : vector<1x64xf32>
    %170 = vector.extract_strided_slice %169 {offsets = [0, 0], sizes = [1, 32], strides = [1, 1]} : vector<1x64xf32> to vector<1x32xf32>
    %c12_74 = arith.constant 12 : index
    %c0_75 = arith.constant 0 : index
    %171 = vector.load %arg5[%c12_74, %c0_75] : memref<16x64xf32, #tpu.memory_space<vmem>>, vector<1x32xf32>
    tpu.vector_store %arg5[%c12_74, %c0_75], %170 {strides = array<i32>} : memref<16x64xf32, #tpu.memory_space<vmem>>, vector<1x32xf32>,
    %172 = vector.extract_strided_slice %169 {offsets = [0, 32], sizes = [1, 32], strides = [1, 1]} : vector<1x64xf32> to vector<1x32xf32>
    %c3_76 = arith.constant 3 : index
    %c32_77 = arith.constant 32 : index
    %173 = vector.load %arg5[%c3_76, %c32_77] : memref<16x64xf32, #tpu.memory_space<vmem>>, vector<1x32xf32>
    tpu.vector_store %arg5[%c3_76, %c32_77], %172 {strides = array<i32>} : memref<16x64xf32, #tpu.memory_space<vmem>>, vector<1x32xf32>,
    %174 = vector.extract_strided_slice %69 {offsets = [13, 0], sizes = [1, 64], strides = [1, 1]} : vector<16x64xf32> to vector<1x64xf32>
    %cst_78 = arith.constant dense<0.000000e+00> : vector<1x64xf32>
    %175 = tpu.matmul %169, %7, %cst_78 {dimension_numbers = #tpu.dot_dimension_numbers<[1], [0], [0], [1], [0, 0, 1, 1], [], []>} : vector<1x64xf32>, vector<64x64xf32>, vector<1x64xf32> -> vector<1x64xf32>
    %176 = arith.addf %174, %175 : vector<1x64xf32>
    %177 = math.tanh %176 : vector<1x64xf32>
    %178 = vector.extract_strided_slice %177 {offsets = [0, 0], sizes = [1, 32], strides = [1, 1]} : vector<1x64xf32> to vector<1x32xf32>
    %c13_79 = arith.constant 13 : index
    %c0_80 = arith.constant 0 : index
    %179 = vector.load %arg5[%c13_79, %c0_80] : memref<16x64xf32, #tpu.memory_space<vmem>>, vector<1x32xf32>
    tpu.vector_store %arg5[%c13_79, %c0_80], %178 {strides = array<i32>} : memref<16x64xf32, #tpu.memory_space<vmem>>, vector<1x32xf32>,
    %180 = vector.extract_strided_slice %177 {offsets = [0, 32], sizes = [1, 32], strides = [1, 1]} : vector<1x64xf32> to vector<1x32xf32>
    %c2_81 = arith.constant 2 : index
    %c32_82 = arith.constant 32 : index
    %181 = vector.load %arg5[%c2_81, %c32_82] : memref<16x64xf32, #tpu.memory_space<vmem>>, vector<1x32xf32>
    tpu.vector_store %arg5[%c2_81, %c32_82], %180 {strides = array<i32>} : memref<16x64xf32, #tpu.memory_space<vmem>>, vector<1x32xf32>,
    %182 = vector.extract_strided_slice %69 {offsets = [14, 0], sizes = [1, 64], strides = [1, 1]} : vector<16x64xf32> to vector<1x64xf32>
    %cst_83 = arith.constant dense<0.000000e+00> : vector<1x64xf32>
    %183 = tpu.matmul %177, %7, %cst_83 {dimension_numbers = #tpu.dot_dimension_numbers<[1], [0], [0], [1], [0, 0, 1, 1], [], []>} : vector<1x64xf32>, vector<64x64xf32>, vector<1x64xf32> -> vector<1x64xf32>
    %184 = arith.addf %182, %183 : vector<1x64xf32>
    %185 = math.tanh %184 : vector<1x64xf32>
    %186 = vector.extract_strided_slice %185 {offsets = [0, 0], sizes = [1, 32], strides = [1, 1]} : vector<1x64xf32> to vector<1x32xf32>
    %c14_84 = arith.constant 14 : index
    %c0_85 = arith.constant 0 : index
    %187 = vector.load %arg5[%c14_84, %c0_85] : memref<16x64xf32, #tpu.memory_space<vmem>>, vector<1x32xf32>
    tpu.vector_store %arg5[%c14_84, %c0_85], %186 {strides = array<i32>} : memref<16x64xf32, #tpu.memory_space<vmem>>, vector<1x32xf32>,
    %188 = vector.extract_strided_slice %185 {offsets = [0, 32], sizes = [1, 32], strides = [1, 1]} : vector<1x64xf32> to vector<1x32xf32>
    %c1_86 = arith.constant 1 : index
    %c32_87 = arith.constant 32 : index
    %189 = vector.load %arg5[%c1_86, %c32_87] : memref<16x64xf32, #tpu.memory_space<vmem>>, vector<1x32xf32>
    tpu.vector_store %arg5[%c1_86, %c32_87], %188 {strides = array<i32>} : memref<16x64xf32, #tpu.memory_space<vmem>>, vector<1x32xf32>,
    %190 = vector.extract_strided_slice %69 {offsets = [15, 0], sizes = [1, 64], strides = [1, 1]} : vector<16x64xf32> to vector<1x64xf32>
    %cst_88 = arith.constant dense<0.000000e+00> : vector<1x64xf32>
    %191 = tpu.matmul %185, %7, %cst_88 {dimension_numbers = #tpu.dot_dimension_numbers<[1], [0], [0], [1], [0, 0, 1, 1], [], []>} : vector<1x64xf32>, vector<64x64xf32>, vector<1x64xf32> -> vector<1x64xf32>
    %192 = arith.addf %190, %191 : vector<1x64xf32>
    %193 = math.tanh %192 : vector<1x64xf32>
    %194 = vector.extract_strided_slice %193 {offsets = [0, 0], sizes = [1, 32], strides = [1, 1]} : vector<1x64xf32> to vector<1x32xf32>
    %c15_89 = arith.constant 15 : index
    %c0_90 = arith.constant 0 : index
    %195 = vector.load %arg5[%c15_89, %c0_90] : memref<16x64xf32, #tpu.memory_space<vmem>>, vector<1x32xf32>
    tpu.vector_store %arg5[%c15_89, %c0_90], %194 {strides = array<i32>} : memref<16x64xf32, #tpu.memory_space<vmem>>, vector<1x32xf32>,
    %196 = vector.extract_strided_slice %193 {offsets = [0, 32], sizes = [1, 32], strides = [1, 1]} : vector<1x64xf32> to vector<1x32xf32>
    %c0_91 = arith.constant 0 : index
    %c32_92 = arith.constant 32 : index
    %197 = vector.load %arg5[%c0_91, %c32_92] : memref<16x64xf32, #tpu.memory_space<vmem>>, vector<1x32xf32>
    tpu.vector_store %arg5[%c0_91, %c32_92], %196 {strides = array<i32>} : memref<16x64xf32, #tpu.memory_space<vmem>>, vector<1x32xf32>,
    %c0_93 = arith.constant 0 : index
    %c0_94 = arith.constant 0 : index
    %198 = vector.load %arg5[%c0_93, %c0_94] : memref<16x64xf32, #tpu.memory_space<vmem>>, vector<16x64xf32>
    %cst_95 = arith.constant dense<0.000000e+00> : vector<16x28xf32>
    %199 = tpu.matmul %198, %8, %cst_95 {dimension_numbers = #tpu.dot_dimension_numbers<[1], [0], [0], [1], [0, 0, 1, 1], [], []>} : vector<16x64xf32>, vector<64x28xf32>, vector<16x28xf32> -> vector<16x28xf32>
    %200 = vector.broadcast %3 : vector<1x28xf32> to vector<16x28xf32>
    %201 = arith.addf %199, %200 : vector<16x28xf32>
    %202 = vector.extract_strided_slice %201 {offsets = [0, 0], sizes = [16, 12], strides = [1, 1]} : vector<16x28xf32> to vector<16x12xf32>
    %cst_96 = arith.constant dense<0xFF800000> : vector<16xf32>
    %203 = vector.multi_reduction <maximumf>, %202, %cst_96 [1] : vector<16x12xf32> to vector<16xf32>
    %204 = vector.shape_cast %203 : vector<16xf32> to vector<16x1xf32>
    %205 = vector.broadcast %204 : vector<16x1xf32> to vector<16x12xf32>
    %206 = arith.subf %202, %205 : vector<16x12xf32>
    %207 = math.exp %206 : vector<16x12xf32>
    %cst_97 = arith.constant dense<0.000000e+00> : vector<16xf32>
    %208 = vector.multi_reduction <add>, %207, %cst_97 [1] : vector<16x12xf32> to vector<16xf32>
    %209 = vector.shape_cast %208 : vector<16xf32> to vector<16x1xf32>
    %210 = tpu.reciprocal %209 {approx = true} : vector<16x1xf32> -> vector<16x1xf32>
    %211 = vector.broadcast %210 : vector<16x1xf32> to vector<16x12xf32>
    %212 = arith.mulf %207, %211 : vector<16x12xf32>
    %213 = vector.extract_strided_slice %201 {offsets = [0, 12], sizes = [16, 16], strides = [1, 1]} : vector<16x28xf32> to vector<16x16xf32>
    %cst_98 = arith.constant dense<0xFF800000> : vector<16xf32>
    %214 = vector.multi_reduction <maximumf>, %213, %cst_98 [1] : vector<16x16xf32> to vector<16xf32>
    %215 = vector.shape_cast %214 : vector<16xf32> to vector<16x1xf32>
    %216 = vector.broadcast %215 : vector<16x1xf32> to vector<16x16xf32>
    %217 = arith.subf %213, %216 : vector<16x16xf32>
    %218 = math.exp %217 : vector<16x16xf32>
    %cst_99 = arith.constant dense<0.000000e+00> : vector<16xf32>
    %219 = vector.multi_reduction <add>, %218, %cst_99 [1] : vector<16x16xf32> to vector<16xf32>
    %220 = vector.shape_cast %219 : vector<16xf32> to vector<16x1xf32>
    %221 = tpu.reciprocal %220 {approx = true} : vector<16x1xf32> -> vector<16x1xf32>
    %222 = vector.broadcast %221 : vector<16x1xf32> to vector<16x16xf32>
    %223 = arith.mulf %218, %222 : vector<16x16xf32>
    %224 = vector.extract_strided_slice %10 {offsets = [0, 19], sizes = [16, 2], strides = [1, 1]} : vector<16x32xf32> to vector<16x2xf32>
    %225 = arith.mulf %224, %224 : vector<16x2xf32>
    %cst_100 = arith.constant dense<0.000000e+00> : vector<16xf32>
    %226 = vector.multi_reduction <add>, %225, %cst_100 [1] : vector<16x2xf32> to vector<16xf32>
    %227 = vector.shape_cast %226 : vector<16xf32> to vector<16x1xf32>
    %228 = arith.mulf %0, %0 : vector<2x16xf32>
    %cst_101 = arith.constant dense<0.000000e+00> : vector<16xf32>
    %229 = vector.multi_reduction <add>, %228, %cst_101 [0] : vector<2x16xf32> to vector<16xf32>
    %230 = vector.shape_cast %229 : vector<16xf32> to vector<1x16xf32>
    %cst_102 = arith.constant dense<0.000000e+00> : vector<16x16xf32>
    %231 = tpu.matmul %224, %0, %cst_102 {dimension_numbers = #tpu.dot_dimension_numbers<[1], [0], [0], [1], [0, 0, 1, 1], [], []>} : vector<16x2xf32>, vector<2x16xf32>, vector<16x16xf32> -> vector<16x16xf32>
    %232 = vector.broadcast %227 : vector<16x1xf32> to vector<16x16xf32>
    %233 = vector.broadcast %230 : vector<1x16xf32> to vector<16x16xf32>
    %234 = arith.addf %232, %233 : vector<16x16xf32>
    %cst_103 = arith.constant 2.000000e+00 : f32
    %235 = vector.broadcast %cst_103 : f32 to vector<16x16xf32>
    %236 = arith.mulf %235, %231 : vector<16x16xf32>
    %237 = arith.subf %234, %236 : vector<16x16xf32>
    %cst_104 = arith.constant 0.000000e+00 : f32
    %238 = vector.broadcast %cst_104 : f32 to vector<16x16xf32>
    %239 = arith.subf %238, %237 : vector<16x16xf32>
    %cst_105 = arith.constant 0.013888889 : f32
    %240 = vector.broadcast %cst_105 : f32 to vector<16x16xf32>
    %241 = arith.divf %239, %240 : vector<16x16xf32>
    %cst_106 = arith.constant dense<0xFF800000> : vector<16xf32>
    %242 = vector.multi_reduction <maximumf>, %241, %cst_106 [1] : vector<16x16xf32> to vector<16xf32>
    %243 = vector.shape_cast %242 : vector<16xf32> to vector<16x1xf32>
    %244 = vector.broadcast %243 : vector<16x1xf32> to vector<16x16xf32>
    %245 = arith.subf %241, %244 : vector<16x16xf32>
    %246 = math.exp %245 : vector<16x16xf32>
    %cst_107 = arith.constant dense<0.000000e+00> : vector<16xf32>
    %247 = vector.multi_reduction <add>, %246, %cst_107 [1] : vector<16x16xf32> to vector<16xf32>
    %248 = vector.shape_cast %247 : vector<16xf32> to vector<16x1xf32>
    %249 = tpu.reciprocal %248 {approx = true} : vector<16x1xf32> -> vector<16x1xf32>
    %250 = vector.broadcast %249 : vector<16x1xf32> to vector<16x16xf32>
    %251 = arith.mulf %246, %250 : vector<16x16xf32>
    %252 = vector.extract_strided_slice %10 {offsets = [0, 21], sizes = [16, 1], strides = [1, 1]} : vector<16x32xf32> to vector<16x1xf32>
    %253 = vector.broadcast %252 : vector<16x1xf32> to vector<16x12xf32>
    %254 = vector.broadcast %1 : vector<1x12xf32> to vector<16x12xf32>
    %255 = arith.subf %253, %254 : vector<16x12xf32>
    %256 = math.cos %255 : vector<16x12xf32>
    %cst_108 = arith.constant 2.000000e+01 : f32
    %257 = vector.broadcast %cst_108 : f32 to vector<16x12xf32>
    %258 = arith.mulf %257, %256 : vector<16x12xf32>
    %cst_109 = arith.constant dense<0xFF800000> : vector<16xf32>
    %259 = vector.multi_reduction <maximumf>, %258, %cst_109 [1] : vector<16x12xf32> to vector<16xf32>
    %260 = vector.shape_cast %259 : vector<16xf32> to vector<16x1xf32>
    %261 = vector.broadcast %260 : vector<16x1xf32> to vector<16x12xf32>
    %262 = arith.subf %258, %261 : vector<16x12xf32>
    %263 = math.exp %262 : vector<16x12xf32>
    %cst_110 = arith.constant dense<0.000000e+00> : vector<16xf32>
    %264 = vector.multi_reduction <add>, %263, %cst_110 [1] : vector<16x12xf32> to vector<16xf32>
    %265 = vector.shape_cast %264 : vector<16xf32> to vector<16x1xf32>
    %266 = tpu.reciprocal %265 {approx = true} : vector<16x1xf32> -> vector<16x1xf32>
    %267 = vector.broadcast %266 : vector<16x1xf32> to vector<16x12xf32>
    %268 = arith.mulf %263, %267 : vector<16x12xf32>
    %c0_111 = arith.constant 0 : index
    %c0_112 = arith.constant 0 : index
    %269 = vector.load %arg6[%c0_111, %c0_112] : memref<16x128xf32, #tpu.memory_space<vmem>>, vector<16x12xf32>
    tpu.vector_store %arg6[%c0_111, %c0_112], %212 {strides = array<i32>} : memref<16x128xf32, #tpu.memory_space<vmem>>, vector<16x12xf32>,
    %c0_113 = arith.constant 0 : index
    %c12_114 = arith.constant 12 : index
    %270 = vector.load %arg6[%c0_113, %c12_114] : memref<16x128xf32, #tpu.memory_space<vmem>>, vector<16x16xf32>
    tpu.vector_store %arg6[%c0_113, %c12_114], %223 {strides = array<i32>} : memref<16x128xf32, #tpu.memory_space<vmem>>, vector<16x16xf32>,
    %c0_115 = arith.constant 0 : index
    %c28 = arith.constant 28 : index
    %271 = vector.load %arg6[%c0_115, %c28] : memref<16x128xf32, #tpu.memory_space<vmem>>, vector<16x64xf32>
    tpu.vector_store %arg6[%c0_115, %c28], %198 {strides = array<i32>} : memref<16x128xf32, #tpu.memory_space<vmem>>, vector<16x64xf32>,
    %c0_116 = arith.constant 0 : index
    %c92 = arith.constant 92 : index
    %272 = vector.load %arg6[%c0_116, %c92] : memref<16x128xf32, #tpu.memory_space<vmem>>, vector<16x16xf32>
    tpu.vector_store %arg6[%c0_116, %c92], %251 {strides = array<i32>} : memref<16x128xf32, #tpu.memory_space<vmem>>, vector<16x16xf32>,
    %c0_117 = arith.constant 0 : index
    %c108 = arith.constant 108 : index
    %273 = vector.load %arg6[%c0_117, %c108] : memref<16x128xf32, #tpu.memory_space<vmem>>, vector<16x12xf32>
    tpu.vector_store %arg6[%c0_117, %c108], %268 {strides = array<i32>} : memref<16x128xf32, #tpu.memory_space<vmem>>, vector<16x12xf32>,
    %cst_118 = arith.constant 0.000000e+00 : f32
    %274 = vector.broadcast %cst_118 : f32 to vector<16x8xf32>
    %c0_119 = arith.constant 0 : index
    %c120_120 = arith.constant 120 : index
    %275 = vector.load %arg6[%c0_119, %c120_120] : memref<16x128xf32, #tpu.memory_space<vmem>>, vector<16x8xf32>
    tpu.vector_store %arg6[%c0_119, %c120_120], %274 {strides = array<i32>} : memref<16x128xf32, #tpu.memory_space<vmem>>, vector<16x8xf32>,
    %c0_121 = arith.constant 0 : index
    %c0_122 = arith.constant 0 : index
    %276 = vector.load %arg6[%c0_121, %c0_122] : memref<16x128xf32, #tpu.memory_space<vmem>>, vector<16x128xf32>
    %cst_123 = arith.constant dense<0.000000e+00> : vector<16x128xf32>
    %277 = tpu.matmul %276, %9, %cst_123 {dimension_numbers = #tpu.dot_dimension_numbers<[1], [0], [0], [1], [0, 0, 1, 1], [], []>} : vector<16x128xf32>, vector<128x128xf32>, vector<16x128xf32> -> vector<16x128xf32>
    %cst_124 = arith.constant dense<0.000000e+00> : vector<16x16xf32>
    %278 = tpu.matmul %277, %276, %cst_124 {dimension_numbers = #tpu.dot_dimension_numbers<[1], [1], [0], [0], [0, 0, 1, 0], [], []>} : vector<16x128xf32>, vector<16x128xf32>, vector<16x16xf32> -> vector<16x16xf32>
    %cst_125 = arith.constant 1.250000e-01 : f32
    %279 = vector.broadcast %cst_125 : f32 to vector<16x16xf32>
    %280 = arith.mulf %278, %279 : vector<16x16xf32>
    %281 = arith.negf %280 : vector<16x16xf32>
    %282 = math.exp %281 : vector<16x16xf32>
    %cst_126 = arith.constant 1.000000e+00 : f32
    %283 = vector.broadcast %cst_126 : f32 to vector<16x16xf32>
    %284 = arith.addf %283, %282 : vector<16x16xf32>
    %285 = arith.divf %283, %284 : vector<16x16xf32>
    %c0_127 = arith.constant 0 : index
    %c0_128 = arith.constant 0 : index
    %c0_129 = arith.constant 0 : index
    %286 = vector.load %arg2[%c0_127, %c0_128, %c0_129] : memref<1x16x16xf32, #tpu.memory_space<vmem>>, vector<1x16x16xf32>
    %287 = vector.shape_cast %286 : vector<1x16x16xf32> to vector<16x16xf32>
    %cst_130 = arith.constant 9.99999997E-7 : f32
    %cst_131 = arith.constant 0.999998986 : f32
    %288 = vector.broadcast %cst_130 : f32 to vector<16x16xf32>
    %289 = arith.maximumf %288, %285 : vector<16x16xf32>
    %290 = vector.broadcast %cst_131 : f32 to vector<16x16xf32>
    %291 = arith.minimumf %290, %289 : vector<16x16xf32>
    %cst_132 = arith.constant 2.000000e-01 : f32
    %292 = vector.broadcast %cst_132 : f32 to vector<16x16xf32>
    %293 = arith.cmpf ogt, %287, %292 : vector<16x16xf32>
    %294 = arith.extui %293 : vector<16x16xi1> to vector<16x16xi32>
    %295 = arith.sitofp %294 : vector<16x16xi32> to vector<16x16xf32>
    %cst_133 = arith.constant 1.000000e+00 : f32
    %296 = vector.broadcast %cst_133 : f32 to vector<16x16xf32>
    %297 = arith.subf %296, %295 : vector<16x16xf32>
    %298 = math.log %291 : vector<16x16xf32>
    %cst_134 = arith.constant 0.000000e+00 : f32
    %299 = vector.broadcast %cst_134 : f32 to vector<16x16xf32>
    %300 = arith.subf %299, %298 : vector<16x16xf32>
    %301 = arith.mulf %300, %287 : vector<16x16xf32>
    %302 = arith.mulf %301, %295 : vector<16x16xf32>
    %303 = vector.shape_cast %302 : vector<16x16xf32> to vector<1x16x16xf32>
    %cst_135 = arith.constant dense<0.000000e+00> : vector<1xf32>
    %304 = vector.multi_reduction <add>, %303, %cst_135 [1, 2] : vector<1x16x16xf32> to vector<1xf32>
    %305 = vector.shape_cast %304 : vector<1xf32> to vector<1x1x1xf32>
    %306 = vector.extract %305[0, 0, 0] : f32 from vector<1x1x1xf32>
    %307 = vector.broadcast %306 : f32 to vector<1x1xf32>
    %308 = vector.shape_cast %295 : vector<16x16xf32> to vector<1x16x16xf32>
    %cst_136 = arith.constant dense<0.000000e+00> : vector<1xf32>
    %309 = vector.multi_reduction <add>, %308, %cst_136 [1, 2] : vector<1x16x16xf32> to vector<1xf32>
    %310 = vector.shape_cast %309 : vector<1xf32> to vector<1x1x1xf32>
    %311 = vector.extract %310[0, 0, 0] : f32 from vector<1x1x1xf32>
    %312 = vector.broadcast %311 : f32 to vector<1x1xf32>
    %cst_137 = arith.constant 1.000000e+00 : f32
    %313 = vector.broadcast %cst_137 : f32 to vector<16x16xf32>
    %314 = arith.subf %313, %291 : vector<16x16xf32>
    %315 = math.log %314 : vector<16x16xf32>
    %cst_138 = arith.constant 0.000000e+00 : f32
    %316 = vector.broadcast %cst_138 : f32 to vector<16x16xf32>
    %317 = arith.subf %316, %315 : vector<16x16xf32>
    %318 = arith.mulf %317, %297 : vector<16x16xf32>
    %319 = vector.shape_cast %318 : vector<16x16xf32> to vector<1x16x16xf32>
    %cst_139 = arith.constant dense<0.000000e+00> : vector<1xf32>
    %320 = vector.multi_reduction <add>, %319, %cst_139 [1, 2] : vector<1x16x16xf32> to vector<1xf32>
    %321 = vector.shape_cast %320 : vector<1xf32> to vector<1x1x1xf32>
    %322 = vector.extract %321[0, 0, 0] : f32 from vector<1x1x1xf32>
    %323 = vector.broadcast %322 : f32 to vector<1x1xf32>
    %324 = vector.shape_cast %297 : vector<16x16xf32> to vector<1x16x16xf32>
    %cst_140 = arith.constant dense<0.000000e+00> : vector<1xf32>
    %325 = vector.multi_reduction <add>, %324, %cst_140 [1, 2] : vector<1x16x16xf32> to vector<1xf32>
    %326 = vector.shape_cast %325 : vector<1xf32> to vector<1x1x1xf32>
    %327 = vector.extract %326[0, 0, 0] : f32 from vector<1x1x1xf32>
    %328 = vector.broadcast %327 : f32 to vector<1x1xf32>
    %cst_141 = arith.constant dense<0xFF800000> : vector<16xf32>
    %329 = vector.multi_reduction <maximumf>, %285, %cst_141 [0] : vector<16x16xf32> to vector<16xf32>
    %330 = vector.shape_cast %329 : vector<16xf32> to vector<1x16xf32>
    %cst_142 = arith.constant dense<0xFF800000> : vector<16xf32>
    %331 = vector.multi_reduction <maximumf>, %287, %cst_142 [0] : vector<16x16xf32> to vector<16xf32>
    %332 = vector.shape_cast %331 : vector<16xf32> to vector<1x16xf32>
    %cst_143 = arith.constant 9.99999997E-7 : f32
    %cst_144 = arith.constant 0.999998986 : f32
    %333 = vector.broadcast %cst_143 : f32 to vector<1x16xf32>
    %334 = arith.maximumf %333, %330 : vector<1x16xf32>
    %335 = vector.broadcast %cst_144 : f32 to vector<1x16xf32>
    %336 = arith.minimumf %335, %334 : vector<1x16xf32>
    %cst_145 = arith.constant 2.000000e-01 : f32
    %337 = vector.broadcast %cst_145 : f32 to vector<1x16xf32>
    %338 = arith.cmpf ogt, %332, %337 : vector<1x16xf32>
    %339 = arith.extui %338 : vector<1x16xi1> to vector<1x16xi32>
    %340 = arith.sitofp %339 : vector<1x16xi32> to vector<1x16xf32>
    %cst_146 = arith.constant 1.000000e+00 : f32
    %341 = vector.broadcast %cst_146 : f32 to vector<1x16xf32>
    %342 = arith.subf %341, %340 : vector<1x16xf32>
    %343 = math.log %336 : vector<1x16xf32>
    %cst_147 = arith.constant 0.000000e+00 : f32
    %344 = vector.broadcast %cst_147 : f32 to vector<1x16xf32>
    %345 = arith.subf %344, %343 : vector<1x16xf32>
    %346 = arith.mulf %345, %332 : vector<1x16xf32>
    %347 = arith.mulf %346, %340 : vector<1x16xf32>
    %348 = vector.shape_cast %347 : vector<1x16xf32> to vector<1x1x16xf32>
    %cst_148 = arith.constant dense<0.000000e+00> : vector<1xf32>
    %349 = vector.multi_reduction <add>, %348, %cst_148 [1, 2] : vector<1x1x16xf32> to vector<1xf32>
    %350 = vector.shape_cast %349 : vector<1xf32> to vector<1x1x1xf32>
    %351 = vector.extract %350[0, 0, 0] : f32 from vector<1x1x1xf32>
    %352 = vector.broadcast %351 : f32 to vector<1x1xf32>
    %353 = vector.shape_cast %340 : vector<1x16xf32> to vector<1x1x16xf32>
    %cst_149 = arith.constant dense<0.000000e+00> : vector<1xf32>
    %354 = vector.multi_reduction <add>, %353, %cst_149 [1, 2] : vector<1x1x16xf32> to vector<1xf32>
    %355 = vector.shape_cast %354 : vector<1xf32> to vector<1x1x1xf32>
    %356 = vector.extract %355[0, 0, 0] : f32 from vector<1x1x1xf32>
    %357 = vector.broadcast %356 : f32 to vector<1x1xf32>
    %cst_150 = arith.constant 1.000000e+00 : f32
    %358 = vector.broadcast %cst_150 : f32 to vector<1x16xf32>
    %359 = arith.subf %358, %336 : vector<1x16xf32>
    %360 = math.log %359 : vector<1x16xf32>
    %cst_151 = arith.constant 0.000000e+00 : f32
    %361 = vector.broadcast %cst_151 : f32 to vector<1x16xf32>
    %362 = arith.subf %361, %360 : vector<1x16xf32>
    %363 = arith.mulf %362, %342 : vector<1x16xf32>
    %364 = vector.shape_cast %363 : vector<1x16xf32> to vector<1x1x16xf32>
    %cst_152 = arith.constant dense<0.000000e+00> : vector<1xf32>
    %365 = vector.multi_reduction <add>, %364, %cst_152 [1, 2] : vector<1x1x16xf32> to vector<1xf32>
    %366 = vector.shape_cast %365 : vector<1xf32> to vector<1x1x1xf32>
    %367 = vector.extract %366[0, 0, 0] : f32 from vector<1x1x1xf32>
    %368 = vector.broadcast %367 : f32 to vector<1x1xf32>
    %369 = vector.shape_cast %342 : vector<1x16xf32> to vector<1x1x16xf32>
    %cst_153 = arith.constant dense<0.000000e+00> : vector<1xf32>
    %370 = vector.multi_reduction <add>, %369, %cst_153 [1, 2] : vector<1x1x16xf32> to vector<1xf32>
    %371 = vector.shape_cast %370 : vector<1xf32> to vector<1x1x1xf32>
    %372 = vector.extract %371[0, 0, 0] : f32 from vector<1x1x1xf32>
    %373 = vector.broadcast %372 : f32 to vector<1x1xf32>
    %cst_154 = arith.constant dense<0xFF800000> : vector<16xf32>
    %374 = vector.multi_reduction <maximumf>, %285, %cst_154 [1] : vector<16x16xf32> to vector<16xf32>
    %375 = vector.shape_cast %374 : vector<16xf32> to vector<16x1xf32>
    %cst_155 = arith.constant dense<0xFF800000> : vector<16xf32>
    %376 = vector.multi_reduction <maximumf>, %287, %cst_155 [1] : vector<16x16xf32> to vector<16xf32>
    %377 = vector.shape_cast %376 : vector<16xf32> to vector<16x1xf32>
    %cst_156 = arith.constant 9.99999997E-7 : f32
    %cst_157 = arith.constant 0.999998986 : f32
    %378 = vector.broadcast %cst_156 : f32 to vector<16x1xf32>
    %379 = arith.maximumf %378, %375 : vector<16x1xf32>
    %380 = vector.broadcast %cst_157 : f32 to vector<16x1xf32>
    %381 = arith.minimumf %380, %379 : vector<16x1xf32>
    %cst_158 = arith.constant 2.000000e-01 : f32
    %382 = vector.broadcast %cst_158 : f32 to vector<16x1xf32>
    %383 = arith.cmpf ogt, %377, %382 : vector<16x1xf32>
    %384 = arith.extui %383 : vector<16x1xi1> to vector<16x1xi32>
    %385 = arith.sitofp %384 : vector<16x1xi32> to vector<16x1xf32>
    %cst_159 = arith.constant 1.000000e+00 : f32
    %386 = vector.broadcast %cst_159 : f32 to vector<16x1xf32>
    %387 = arith.subf %386, %385 : vector<16x1xf32>
    %388 = math.log %381 : vector<16x1xf32>
    %cst_160 = arith.constant 0.000000e+00 : f32
    %389 = vector.broadcast %cst_160 : f32 to vector<16x1xf32>
    %390 = arith.subf %389, %388 : vector<16x1xf32>
    %391 = arith.mulf %390, %377 : vector<16x1xf32>
    %392 = arith.mulf %391, %385 : vector<16x1xf32>
    %393 = vector.shape_cast %392 : vector<16x1xf32> to vector<1x16x1xf32>
    %cst_161 = arith.constant dense<0.000000e+00> : vector<1xf32>
    %394 = vector.multi_reduction <add>, %393, %cst_161 [1, 2] : vector<1x16x1xf32> to vector<1xf32>
    %395 = vector.shape_cast %394 : vector<1xf32> to vector<1x1x1xf32>
    %396 = vector.extract %395[0, 0, 0] : f32 from vector<1x1x1xf32>
    %397 = vector.broadcast %396 : f32 to vector<1x1xf32>
    %398 = vector.shape_cast %385 : vector<16x1xf32> to vector<1x16x1xf32>
    %cst_162 = arith.constant dense<0.000000e+00> : vector<1xf32>
    %399 = vector.multi_reduction <add>, %398, %cst_162 [1, 2] : vector<1x16x1xf32> to vector<1xf32>
    %400 = vector.shape_cast %399 : vector<1xf32> to vector<1x1x1xf32>
    %401 = vector.extract %400[0, 0, 0] : f32 from vector<1x1x1xf32>
    %402 = vector.broadcast %401 : f32 to vector<1x1xf32>
    %cst_163 = arith.constant 1.000000e+00 : f32
    %403 = vector.broadcast %cst_163 : f32 to vector<16x1xf32>
    %404 = arith.subf %403, %381 : vector<16x1xf32>
    %405 = math.log %404 : vector<16x1xf32>
    %cst_164 = arith.constant 0.000000e+00 : f32
    %406 = vector.broadcast %cst_164 : f32 to vector<16x1xf32>
    %407 = arith.subf %406, %405 : vector<16x1xf32>
    %408 = arith.mulf %407, %387 : vector<16x1xf32>
    %409 = vector.shape_cast %408 : vector<16x1xf32> to vector<1x16x1xf32>
    %cst_165 = arith.constant dense<0.000000e+00> : vector<1xf32>
    %410 = vector.multi_reduction <add>, %409, %cst_165 [1, 2] : vector<1x16x1xf32> to vector<1xf32>
    %411 = vector.shape_cast %410 : vector<1xf32> to vector<1x1x1xf32>
    %412 = vector.extract %411[0, 0, 0] : f32 from vector<1x1x1xf32>
    %413 = vector.broadcast %412 : f32 to vector<1x1xf32>
    %414 = vector.shape_cast %387 : vector<16x1xf32> to vector<1x16x1xf32>
    %cst_166 = arith.constant dense<0.000000e+00> : vector<1xf32>
    %415 = vector.multi_reduction <add>, %414, %cst_166 [1, 2] : vector<1x16x1xf32> to vector<1xf32>
    %416 = vector.shape_cast %415 : vector<1xf32> to vector<1x1x1xf32>
    %417 = vector.extract %416[0, 0, 0] : f32 from vector<1x1x1xf32>
    %418 = vector.broadcast %417 : f32 to vector<1x1xf32>
    %419 = vector.extract_strided_slice %276 {offsets = [0, 12], sizes = [16, 16], strides = [1, 1]} : vector<16x128xf32> to vector<16x16xf32>
    %cst_167 = arith.constant 9.99999997E-7 : f32
    %cst_168 = arith.constant 0.999998986 : f32
    %420 = vector.broadcast %cst_167 : f32 to vector<16x16xf32>
    %421 = arith.maximumf %420, %419 : vector<16x16xf32>
    %422 = vector.broadcast %cst_168 : f32 to vector<16x16xf32>
    %423 = arith.minimumf %422, %421 : vector<16x16xf32>
    %424 = math.log %423 : vector<16x16xf32>
    %cst_169 = arith.constant 0.000000e+00 : f32
    %425 = vector.broadcast %cst_169 : f32 to vector<16x16xf32>
    %426 = arith.subf %425, %424 : vector<16x16xf32>
    %427 = vector.extract_strided_slice %276 {offsets = [0, 92], sizes = [16, 16], strides = [1, 1]} : vector<16x128xf32> to vector<16x16xf32>
    %428 = arith.mulf %426, %427 : vector<16x16xf32>
    %429 = vector.shape_cast %428 : vector<16x16xf32> to vector<1x16x16xf32>
    %cst_170 = arith.constant dense<0.000000e+00> : vector<1xf32>
    %430 = vector.multi_reduction <add>, %429, %cst_170 [1, 2] : vector<1x16x16xf32> to vector<1xf32>
    %431 = vector.shape_cast %430 : vector<1xf32> to vector<1x1x1xf32>
    %432 = vector.extract %431[0, 0, 0] : f32 from vector<1x1x1xf32>
    %433 = vector.broadcast %432 : f32 to vector<1x1xf32>
    %434 = vector.extract_strided_slice %276 {offsets = [0, 0], sizes = [16, 12], strides = [1, 1]} : vector<16x128xf32> to vector<16x12xf32>
    %cst_171 = arith.constant 9.99999997E-7 : f32
    %cst_172 = arith.constant 0.999998986 : f32
    %435 = vector.broadcast %cst_171 : f32 to vector<16x12xf32>
    %436 = arith.maximumf %435, %434 : vector<16x12xf32>
    %437 = vector.broadcast %cst_172 : f32 to vector<16x12xf32>
    %438 = arith.minimumf %437, %436 : vector<16x12xf32>
    %439 = math.log %438 : vector<16x12xf32>
    %cst_173 = arith.constant 0.000000e+00 : f32
    %440 = vector.broadcast %cst_173 : f32 to vector<16x12xf32>
    %441 = arith.subf %440, %439 : vector<16x12xf32>
    %442 = vector.extract_strided_slice %276 {offsets = [0, 108], sizes = [16, 12], strides = [1, 1]} : vector<16x128xf32> to vector<16x12xf32>
    %443 = arith.mulf %441, %442 : vector<16x12xf32>
    %444 = vector.shape_cast %443 : vector<16x12xf32> to vector<1x16x12xf32>
    %cst_174 = arith.constant dense<0.000000e+00> : vector<1xf32>
    %445 = vector.multi_reduction <add>, %444, %cst_174 [1, 2] : vector<1x16x12xf32> to vector<1xf32>
    %446 = vector.shape_cast %445 : vector<1xf32> to vector<1x1x1xf32>
    %447 = vector.extract %446[0, 0, 0] : f32 from vector<1x1x1xf32>
    %448 = vector.broadcast %447 : f32 to vector<1x1xf32>
    %c0_175 = arith.constant 0 : index
    %c0_176 = arith.constant 0 : index
    %c0_177 = arith.constant 0 : index
    %449 = vector.load %arg4[%c0_175, %c0_176, %c0_177] : memref<1x1x128xf32, #tpu.memory_space<vmem>>, vector<1x1x1xf32>
    %450 = vector.shape_cast %449 : vector<1x1x1xf32> to vector<1x1xf32>
    %451 = vector.shape_cast %307 : vector<1x1xf32> to vector<1x1x1xf32>
    tpu.vector_store %arg4[%c0_175, %c0_176, %c0_177], %451 {strides = array<i32>} : memref<1x1x128xf32, #tpu.memory_space<vmem>>, vector<1x1x1xf32>,
    %c0_178 = arith.constant 0 : index
    %c0_179 = arith.constant 0 : index
    %c1_180 = arith.constant 1 : index
    %452 = vector.load %arg4[%c0_178, %c0_179, %c1_180] : memref<1x1x128xf32, #tpu.memory_space<vmem>>, vector<1x1x1xf32>
    %453 = vector.shape_cast %452 : vector<1x1x1xf32> to vector<1x1xf32>
    %454 = vector.shape_cast %312 : vector<1x1xf32> to vector<1x1x1xf32>
    tpu.vector_store %arg4[%c0_178, %c0_179, %c1_180], %454 {strides = array<i32>} : memref<1x1x128xf32, #tpu.memory_space<vmem>>, vector<1x1x1xf32>,
    %c0_181 = arith.constant 0 : index
    %c0_182 = arith.constant 0 : index
    %c2_183 = arith.constant 2 : index
    %455 = vector.load %arg4[%c0_181, %c0_182, %c2_183] : memref<1x1x128xf32, #tpu.memory_space<vmem>>, vector<1x1x1xf32>
    %456 = vector.shape_cast %455 : vector<1x1x1xf32> to vector<1x1xf32>
    %457 = vector.shape_cast %323 : vector<1x1xf32> to vector<1x1x1xf32>
    tpu.vector_store %arg4[%c0_181, %c0_182, %c2_183], %457 {strides = array<i32>} : memref<1x1x128xf32, #tpu.memory_space<vmem>>, vector<1x1x1xf32>,
    %c0_184 = arith.constant 0 : index
    %c0_185 = arith.constant 0 : index
    %c3_186 = arith.constant 3 : index
    %458 = vector.load %arg4[%c0_184, %c0_185, %c3_186] : memref<1x1x128xf32, #tpu.memory_space<vmem>>, vector<1x1x1xf32>
    %459 = vector.shape_cast %458 : vector<1x1x1xf32> to vector<1x1xf32>
    %460 = vector.shape_cast %328 : vector<1x1xf32> to vector<1x1x1xf32>
    tpu.vector_store %arg4[%c0_184, %c0_185, %c3_186], %460 {strides = array<i32>} : memref<1x1x128xf32, #tpu.memory_space<vmem>>, vector<1x1x1xf32>,
    %c0_187 = arith.constant 0 : index
    %c0_188 = arith.constant 0 : index
    %c4_189 = arith.constant 4 : index
    %461 = vector.load %arg4[%c0_187, %c0_188, %c4_189] : memref<1x1x128xf32, #tpu.memory_space<vmem>>, vector<1x1x1xf32>
    %462 = vector.shape_cast %461 : vector<1x1x1xf32> to vector<1x1xf32>
    %463 = vector.shape_cast %352 : vector<1x1xf32> to vector<1x1x1xf32>
    tpu.vector_store %arg4[%c0_187, %c0_188, %c4_189], %463 {strides = array<i32>} : memref<1x1x128xf32, #tpu.memory_space<vmem>>, vector<1x1x1xf32>,
    %c0_190 = arith.constant 0 : index
    %c0_191 = arith.constant 0 : index
    %c5_192 = arith.constant 5 : index
    %464 = vector.load %arg4[%c0_190, %c0_191, %c5_192] : memref<1x1x128xf32, #tpu.memory_space<vmem>>, vector<1x1x1xf32>
    %465 = vector.shape_cast %464 : vector<1x1x1xf32> to vector<1x1xf32>
    %466 = vector.shape_cast %357 : vector<1x1xf32> to vector<1x1x1xf32>
    tpu.vector_store %arg4[%c0_190, %c0_191, %c5_192], %466 {strides = array<i32>} : memref<1x1x128xf32, #tpu.memory_space<vmem>>, vector<1x1x1xf32>,
    %c0_193 = arith.constant 0 : index
    %c0_194 = arith.constant 0 : index
    %c6_195 = arith.constant 6 : index
    %467 = vector.load %arg4[%c0_193, %c0_194, %c6_195] : memref<1x1x128xf32, #tpu.memory_space<vmem>>, vector<1x1x1xf32>
    %468 = vector.shape_cast %467 : vector<1x1x1xf32> to vector<1x1xf32>
    %469 = vector.shape_cast %368 : vector<1x1xf32> to vector<1x1x1xf32>
    tpu.vector_store %arg4[%c0_193, %c0_194, %c6_195], %469 {strides = array<i32>} : memref<1x1x128xf32, #tpu.memory_space<vmem>>, vector<1x1x1xf32>,
    %c0_196 = arith.constant 0 : index
    %c0_197 = arith.constant 0 : index
    %c7_198 = arith.constant 7 : index
    %470 = vector.load %arg4[%c0_196, %c0_197, %c7_198] : memref<1x1x128xf32, #tpu.memory_space<vmem>>, vector<1x1x1xf32>
    %471 = vector.shape_cast %470 : vector<1x1x1xf32> to vector<1x1xf32>
    %472 = vector.shape_cast %373 : vector<1x1xf32> to vector<1x1x1xf32>
    tpu.vector_store %arg4[%c0_196, %c0_197, %c7_198], %472 {strides = array<i32>} : memref<1x1x128xf32, #tpu.memory_space<vmem>>, vector<1x1x1xf32>,
    %c0_199 = arith.constant 0 : index
    %c0_200 = arith.constant 0 : index
    %c8_201 = arith.constant 8 : index
    %473 = vector.load %arg4[%c0_199, %c0_200, %c8_201] : memref<1x1x128xf32, #tpu.memory_space<vmem>>, vector<1x1x1xf32>
    %474 = vector.shape_cast %473 : vector<1x1x1xf32> to vector<1x1xf32>
    %475 = vector.shape_cast %397 : vector<1x1xf32> to vector<1x1x1xf32>
    tpu.vector_store %arg4[%c0_199, %c0_200, %c8_201], %475 {strides = array<i32>} : memref<1x1x128xf32, #tpu.memory_space<vmem>>, vector<1x1x1xf32>,
    %c0_202 = arith.constant 0 : index
    %c0_203 = arith.constant 0 : index
    %c9_204 = arith.constant 9 : index
    %476 = vector.load %arg4[%c0_202, %c0_203, %c9_204] : memref<1x1x128xf32, #tpu.memory_space<vmem>>, vector<1x1x1xf32>
    %477 = vector.shape_cast %476 : vector<1x1x1xf32> to vector<1x1xf32>
    %478 = vector.shape_cast %402 : vector<1x1xf32> to vector<1x1x1xf32>
    tpu.vector_store %arg4[%c0_202, %c0_203, %c9_204], %478 {strides = array<i32>} : memref<1x1x128xf32, #tpu.memory_space<vmem>>, vector<1x1x1xf32>,
    %c0_205 = arith.constant 0 : index
    %c0_206 = arith.constant 0 : index
    %c10_207 = arith.constant 10 : index
    %479 = vector.load %arg4[%c0_205, %c0_206, %c10_207] : memref<1x1x128xf32, #tpu.memory_space<vmem>>, vector<1x1x1xf32>
    %480 = vector.shape_cast %479 : vector<1x1x1xf32> to vector<1x1xf32>
    %481 = vector.shape_cast %413 : vector<1x1xf32> to vector<1x1x1xf32>
    tpu.vector_store %arg4[%c0_205, %c0_206, %c10_207], %481 {strides = array<i32>} : memref<1x1x128xf32, #tpu.memory_space<vmem>>, vector<1x1x1xf32>,
    %c0_208 = arith.constant 0 : index
    %c0_209 = arith.constant 0 : index
    %c11_210 = arith.constant 11 : index
    %482 = vector.load %arg4[%c0_208, %c0_209, %c11_210] : memref<1x1x128xf32, #tpu.memory_space<vmem>>, vector<1x1x1xf32>
    %483 = vector.shape_cast %482 : vector<1x1x1xf32> to vector<1x1xf32>
    %484 = vector.shape_cast %418 : vector<1x1xf32> to vector<1x1x1xf32>
    tpu.vector_store %arg4[%c0_208, %c0_209, %c11_210], %484 {strides = array<i32>} : memref<1x1x128xf32, #tpu.memory_space<vmem>>, vector<1x1x1xf32>,
    %c0_211 = arith.constant 0 : index
    %c0_212 = arith.constant 0 : index
    %c12_213 = arith.constant 12 : index
    %485 = vector.load %arg4[%c0_211, %c0_212, %c12_213] : memref<1x1x128xf32, #tpu.memory_space<vmem>>, vector<1x1x1xf32>
    %486 = vector.shape_cast %485 : vector<1x1x1xf32> to vector<1x1xf32>
    %487 = vector.shape_cast %433 : vector<1x1xf32> to vector<1x1x1xf32>
    tpu.vector_store %arg4[%c0_211, %c0_212, %c12_213], %487 {strides = array<i32>} : memref<1x1x128xf32, #tpu.memory_space<vmem>>, vector<1x1x1xf32>,
    %c0_214 = arith.constant 0 : index
    %c0_215 = arith.constant 0 : index
    %c13_216 = arith.constant 13 : index
    %488 = vector.load %arg4[%c0_214, %c0_215, %c13_216] : memref<1x1x128xf32, #tpu.memory_space<vmem>>, vector<1x1x1xf32>
    %489 = vector.shape_cast %488 : vector<1x1x1xf32> to vector<1x1xf32>
    %490 = vector.shape_cast %448 : vector<1x1xf32> to vector<1x1x1xf32>
    tpu.vector_store %arg4[%c0_214, %c0_215, %c13_216], %490 {strides = array<i32>} : memref<1x1x128xf32, #tpu.memory_space<vmem>>, vector<1x1x1xf32>,
    return
  }
  func.func @transform_0(%arg0: i32) -> (i32, i32) {
    %c0_i32 = arith.constant 0 : i32
    %c0_i32_0 = arith.constant 0 : i32
    return %arg0, %c0_i32 : i32, i32
  }
  func.func @transform_1(%arg0: i32) -> (i32, i32, i32) {
    %c0_i32 = arith.constant 0 : i32
    %c0_i32_0 = arith.constant 0 : i32
    %c0_i32_1 = arith.constant 0 : i32
    return %arg0, %c0_i32, %c0_i32_0 : i32, i32, i32
  }
  func.func @transform_2(%arg0: i32) -> (i32, i32) {
    %c0_i32 = arith.constant 0 : i32
    %c0_i32_0 = arith.constant 0 : i32
    %c0_i32_1 = arith.constant 0 : i32
    return %c0_i32, %c0_i32_0 : i32, i32
  }
  func.func @transform_3(%arg0: i32) -> (i32, i32, i32) {
    %c0_i32 = arith.constant 0 : i32
    %c0_i32_0 = arith.constant 0 : i32
    %c0_i32_1 = arith.constant 0 : i32
    return %arg0, %c0_i32, %c0_i32_0 : i32, i32, i32
  }
}

</mosaic_0001>

<llo_original>
// kernel: loop_module_forward.1
$region0: #{loop_module_forward.1}
  #allocation0 [shape = 'u32[]', space=smem, size = 0x4, offset = 0x4, fixed_abs, tag = 'smem constant byte address 0x4 - core index']
  #allocation1 [shape = 'u32[144,128]{1,0:T(1,128)}', space=vmem, size = 0x12000, scoped, tag = 'internal scratch']
  #allocation2 [shape = 'f32[16,64]{1,0:T(8,128)}', space=vmem, size = 0x2000, scoped, tag = 'scratch operand']
  #allocation3 [shape = 'f32[16,128]{1,0:T(8,128)}', space=vmem, size = 0x2000, scoped, tag = 'scratch operand']
  #allocation4 [shape = 'f32[16,128]{1,0:T(8,128)}', space=vmem, size = 0x2000, scoped, tag = 'scratch operand']
  %s0 = inlined_call_operand.vmem [shape: f32[32,32], index: 0, kind: input, shape index: {}]
  %s1 = inlined_call_operand.vmem [shape: f32[2,16,16], index: 1, kind: input, shape index: {}]
  %s2 = inlined_call_operand.vmem [shape: f32[312,128], index: 2, kind: input, shape index: {}]
  %s3 = inlined_call_operand.vmem [shape: f32[2,1,128], index: 3, kind: output, shape index: {}]
  %s4 = sld [smem:[#allocation0]]
  $region45: #{loop_module_forward.1} parent=0
    _
  %s6 = ssub.s32 1, %s4
  %s7 = scalar_select 0, %s6, %s4
  loop: start=0, step=1, limit=4
  $region2: #{loop_module_forward.1} parent=0 // loop_pre_header
    _
  $region3: #{loop_module_forward.1} parent=0 // loop_header
    %s9 = sphi 0, %s13
    %p10 = scmp.ge.s32.totalorder %s9, 4
    %s19 = sphi 0, %s21
    %s22 = sphi 0, %s19
    %s23 = sphi 0, %s22
    %s39 = sphi 0, %s23
    %s45 = sphi 0, %s47
    %s48 = sphi 0, %s45
    %s49 = sphi 0, %s48
    %s65 = sphi 0, %s49
    %s69 = sphi 0, %s69
    %s71 = sphi 0, %s69
    %s72 = sphi 0, %s71
    %s86 = sphi 0, %s72
    %s92 = sphi 0, %s94
    %s95 = sphi 0, %s92
    %s96 = sphi 0, %s95
    %s112 = sphi 0, %s96
  $region4: #{loop_module_forward.1} parent=0 // loop_header_branch
    %12 = sbr.rel (%p10) target = $region8
  $region5: #{loop_module_forward.1} parent=0 // loop_body
    %s14 = ssub.s32 %s9, 1
    %s15 = ssub.s32 %s9, 2
    %s16 = sadd.s32 %s9, 1
    %s17 = ssub.s32 %s9, %s16
    %p18 = scmp.eq.s32.totalorder %s17, 0
    %s20 = sadd.s32 %s19, 1
    %s21 = scalar_select %p18, %s19, %s20
    %p24 = pneg %p18
    %p25 = scmp.eq.s32.totalorder %s9, 1
    %p26 = por %p24, %p25
    %p27 = scmp.ne.s32.totalorder %s19, %s22
    %p28 = scmp.eq.s32.totalorder %s9, 0
    %p29 = por %p27, %p28
    %p30 = scmp.ne.s32.totalorder %s19, %s22
    %p31 = scmp.eq.s32.totalorder %s14, 1
    %p32 = por %p30, %p31
    %p33 = scmp.ne.s32.totalorder %s22, %s23
    %p34 = scmp.eq.s32.totalorder %s14, 0
    %p35 = por %p33, %p34
    %p36 = scmp.ne.s32.totalorder %s22, %s23
    %p37 = scmp.eq.s32.totalorder %s15, 1
    %p38 = por %p36, %p37
    %p40 = scmp.ne.s32.totalorder %s23, %s39
    %p41 = scmp.eq.s32.totalorder %s15, 0
    %p42 = por %p40, %p41
    %s43 = ssub.s32 %s9, %s16
    %p44 = scmp.eq.s32.totalorder %s43, 0
    %s46 = sadd.s32 %s45, 1
    %s47 = scalar_select %p44, %s45, %s46
    %p50 = pneg %p44
    %p51 = scmp.eq.s32.totalorder %s9, 1
    %p52 = por %p50, %p51
    %p53 = scmp.ne.s32.totalorder %s45, %s48
    %p54 = scmp.eq.s32.totalorder %s9, 0
    %p55 = por %p53, %p54
    %p56 = scmp.ne.s32.totalorder %s45, %s48
    %p57 = scmp.eq.s32.totalorder %s14, 1
    %p58 = por %p56, %p57
    %p59 = scmp.ne.s32.totalorder %s48, %s49
    %p60 = scmp.eq.s32.totalorder %s14, 0
    %p61 = por %p59, %p60
    %p62 = scmp.ne.s32.totalorder %s48, %s49
    %p63 = scmp.eq.s32.totalorder %s15, 1
    %p64 = por %p62, %p63
    %p66 = scmp.ne.s32.totalorder %s49, %s65
    %p67 = scmp.eq.s32.totalorder %s15, 0
    %p68 = por %p66, %p67
    %s70 = sadd.s32 %s69, 1
    %p73 = scmp.eq.s32.totalorder %s9, 1
    %p74 = scmp.ne.s32.totalorder %s69, %s71
    %p75 = scmp.eq.s32.totalorder %s9, 0
    %p76 = por %p74, %p75
    %p77 = scmp.ne.s32.totalorder %s69, %s71
    %p78 = scmp.eq.s32.totalorder %s14, 1
    %p79 = por %p77, %p78
    %p80 = scmp.ne.s32.totalorder %s71, %s72
    %p81 = scmp.eq.s32.totalorder %s14, 0
    %p82 = por %p80, %p81
    %p83 = scmp.ne.s32.totalorder %s71, %s72
    %p84 = scmp.eq.s32.totalorder %s15, 1
    %p85 = por %p83, %p84
    %p87 = scmp.ne.s32.totalorder %s72, %s86
    %p88 = scmp.eq.s32.totalorder %s15, 0
    %p89 = por %p87, %p88
    %s90 = ssub.s32 %s9, %s16
    %p91 = scmp.eq.s32.totalorder %s90, 0
    %s93 = sadd.s32 %s92, 1
    %s94 = scalar_select %p91, %s92, %s93
    %p97 = pneg %p91
    %p98 = scmp.eq.s32.totalorder %s9, 1
    %p99 = por %p97, %p98
    %p100 = scmp.ne.s32.totalorder %s92, %s95
    %p101 = scmp.eq.s32.totalorder %s9, 0
    %p102 = por %p100, %p101
    %p103 = scmp.ne.s32.totalorder %s92, %s95
    %p104 = scmp.eq.s32.totalorder %s14, 1
    %p105 = por %p103, %p104
    %p106 = scmp.ne.s32.totalorder %s95, %s96
    %p107 = scmp.eq.s32.totalorder %s14, 0
    %p108 = por %p106, %p107
    %p109 = scmp.ne.s32.totalorder %s95, %s96
    %p110 = scmp.eq.s32.totalorder %s15, 1
    %p111 = por %p109, %p110
    %p113 = scmp.ne.s32.totalorder %s96, %s112
    %p114 = scmp.eq.s32.totalorder %s15, 0
    %p115 = por %p113, %p114
    %p116 = scmp.le.s32.totalorder 1, %s9
    %p117 = scmp.lt.s32.totalorder %s9, 3
    %p118 = pnand %p116, %p117
    %p119 = pneg %p118
    // Predicated region
    $region9: #{loop_module_forward.1} parent=5 // pred_check
      _
    $region10: #{loop_module_forward.1} parent=5 // pred_check_branch
      %121 = sbr.rel (%p118) target = $region12
    $region11: #{loop_module_forward.1} parent=5 // pred_region
      %s122 = ssub.s32 %s9, 1
      // Predicated region
      $region13: #{loop_module_forward.1} parent=11 // pred_check
        %p123 = pneg %p82
      $region14: #{loop_module_forward.1} parent=11 // pred_check_branch
        %125 = sbr.rel (%p123) target = $region16
      $region15: #{loop_module_forward.1} parent=11 // pred_region
        _
      $region16: #{loop_module_forward.1} parent=11 // pred_fallthru
        _
    $region12: #{loop_module_forward.1} parent=5 // pred_fallthru
      _
    %p126 = scmp.lt.s32.totalorder %s9, 2
    // Predicated region
    $region17: #{loop_module_forward.1} parent=5 // pred_check
      %p127 = pneg %p126
    $region18: #{loop_module_forward.1} parent=5 // pred_check_branch
      %129 = sbr.rel (%p127) target = $region20
    $region19: #{loop_module_forward.1} parent=5 // pred_region
      // Predicated region
      $region21: #{loop_module_forward.1} parent=19 // pred_check
        %p130 = pneg %p29
      $region22: #{loop_module_forward.1} parent=19 // pred_check_branch
        %132 = sbr.rel (%p130) target = $region24
      $region23: #{loop_module_forward.1} parent=19 // pred_region
        %s133 = smul.u32 2, %s9
        %p134 = scmp.lt.s32.totalorder %s133, 3
        %s135 = scalar_select %p134, %s133, 3
        %s136 = smul.addr %s135, 8
        %s137 = scalar_lea.vmem %s0, %s136
        %s138 = smul.u32 2, %s9
      $region24: #{loop_module_forward.1} parent=19 // pred_fallthru
        _
      // Predicated region
      $region25: #{loop_module_forward.1} parent=19 // pred_check
        %p139 = pneg %p55
      $region26: #{loop_module_forward.1} parent=19 // pred_check_branch
        %141 = sbr.rel (%p139) target = $region28
      $region27: #{loop_module_forward.1} parent=19 // pred_region
        %p142 = scmp.lt.s32.totalorder %s9, 1
        %s143 = scalar_select %p142, %s9, 1
        %s144 = smul.addr %s143, 2
        %s145 = smul.addr %s144, 8
        %s146 = scalar_lea.vmem %s1, %s145
      $region28: #{loop_module_forward.1} parent=19 // pred_fallthru
        _
    $region20: #{loop_module_forward.1} parent=5 // pred_fallthru
      _
    %p147 = scmp.le.s32.totalorder 1, %s9
    %p148 = scmp.lt.s32.totalorder %s9, 3
    %p149 = pnand %p147, %p148
    %p150 = pneg %p149
    // Predicated region
    $region29: #{loop_module_forward.1} parent=5 // pred_check
      _
    $region30: #{loop_module_forward.1} parent=5 // pred_check_branch
      %152 = sbr.rel (%p149) target = $region32
    $region31: #{loop_module_forward.1} parent=5 // pred_region
      %s153 = ssub.s32 %s9, 1
      %s154 = smul.u32 2, %s14
      %p155 = scmp.lt.s32.totalorder %s154, 3
      %s156 = scalar_select %p155, %s154, 3
      %s157 = smul.addr %s156, 8
      %s158 = scalar_lea.vmem %s0, %s157
      %p159 = pneg %p35
      %p160 = pneg %p32
      %p161 = scmp.lt.s32.totalorder %s14, 1
      %s162 = scalar_select %p161, %s14, 1
      %s163 = smul.addr %s162, 2
      %s164 = smul.addr %s163, 8
      %s165 = scalar_lea.vmem %s1, %s164
      %p166 = pneg %p61
      %p167 = pneg %p58
      %p168 = pneg %p82
      %p169 = pneg %p79
      %p170 = pneg %p108
      %p171 = pneg %p105
      %p172 = scmp.lt.s32.totalorder %s14, 1
      %s173 = scalar_select %p172, %s14, 1
      %s174 = scalar_lea.vmem %s3, %s173
      %s175 = smul.u32 2, %s14
      %p176 = scmp.lt.s32.totalorder %s175, 3
      %s177 = scalar_select %p176, %s175, 3
      %s178 = smul.addr %s177, 8
      %s179 = scalar_lea.vmem %s0, %s178
      %s180 = smul.u32 2, %s14
      %p181 = scmp.lt.s32.totalorder %s14, 1
      %s182 = scalar_select %p181, %s14, 1
      %s183 = smul.addr %s182, 2
      %s184 = smul.addr %s183, 8
      %s185 = scalar_lea.vmem %s1, %s184
      %p186 = scmp.lt.s32.totalorder %s14, 1
      %s187 = scalar_select %p186, %s14, 1
      %s188 = scalar_lea.vmem %s3, %s187
      %v189 = vld [vmem:[%s2] sm:$0x3]
      %v190 = vld [vmem:[%s2 + $0x2] sm:$0x1]
      %v191 = vld [vmem:[%s2 + $0x3] sm:$0x1]
      %v192 = vld [vmem:[%s2 + $0x4] sm:$0x1]
      %v193 = vld [vmem:[%s2 + $0x8] sm:$0xff]
      %v194 = vld [vmem:[%s2 + $0x10] sm:$0xff]
      %v195 = vld [vmem:[%s2 + $0x18] sm:$0xff]
      %v196 = vld [vmem:[%s2 + $0x20] sm:$0xf]
      %v197 = vld [vmem:[%s2 + $0x28] sm:$0xff]
      %v198 = vld [vmem:[%s2 + $0x30] sm:$0xff]
      %v199 = vld [vmem:[%s2 + $0x38] sm:$0xff]
      %v200 = vld [vmem:[%s2 + $0x40] sm:$0xff]
      %v201 = vld [vmem:[%s2 + $0x48] sm:$0xff]
      %v202 = vld [vmem:[%s2 + $0x50] sm:$0xff]
      %v203 = vld [vmem:[%s2 + $0x58] sm:$0xff]
      %v204 = vld [vmem:[%s2 + $0x60] sm:$0xff]
      %v205 = vld [vmem:[%s2 + $0x68] sm:$0xff]
      %v206 = vld [vmem:[%s2 + $0x70] sm:$0xff]
      %v207 = vld [vmem:[%s2 + $0x78] sm:$0xff]
      %v208 = vld [vmem:[%s2 + $0x80] sm:$0xff]
      %v209 = vld [vmem:[%s2 + $0x88] sm:$0xff]
      %v210 = vld [vmem:[%s2 + $0x90] sm:$0xff]
      %v211 = vld [vmem:[%s2 + $0x98] sm:$0xff]
      %v212 = vld [vmem:[%s2 + $0xa0] sm:$0xff]
      %v213 = vld [vmem:[%s2 + $0xa8] sm:$0xff]
      %v214 = vld [vmem:[%s2 + $0xb0] sm:$0xff]
      %v215 = vld [vmem:[%s2 + $0xb8] sm:$0xff]
      %v216 = vld [vmem:[%s2 + $0xc0] sm:$0xff]
      %v217 = vld [vmem:[%s2 + $0xc8] sm:$0xff]
      %v218 = vld [vmem:[%s2 + $0xd0] sm:$0xff]
      %v219 = vld [vmem:[%s2 + $0xd8] sm:$0xff]
      %v220 = vld [vmem:[%s2 + $0xe0] sm:$0xff]
      %v221 = vld [vmem:[%s2 + $0xe8] sm:$0xff]
      %v222 = vld [vmem:[%s2 + $0xf0] sm:$0xff]
      %v223 = vld [vmem:[%s2 + $0xf8] sm:$0xff]
      %v224 = vld [vmem:[%s2 + $0x100] sm:$0xff]
      %v225 = vld [vmem:[%s2 + $0x108] sm:$0xff]
      %v226 = vld [vmem:[%s2 + $0x110] sm:$0xff]
      %v227 = vld [vmem:[%s2 + $0x118] sm:$0xff]
      %v228 = vld [vmem:[%s2 + $0x120] sm:$0xff]
      %v229 = vld [vmem:[%s2 + $0x128] sm:$0xff]
      %v230 = vld [vmem:[%s2 + $0x130] sm:$0xff]
      %v231 = vld [vmem:[%s179] sm:$0xff]
      %v232 = vld [vmem:[%s179 + $0x8] sm:$0xff]
      %v234 = vrot.slane %v232, 6
      %vm236 = vcmask 1040384
      %v237 = vsel %vm236, %v231, %v234
      %v238 = vmul.f32 %v237, %v237
      %vm239 = vcmask 9216
      %v240 = vsel %vm239, %v238, 0.0
      %241 = vadd.xlane.f32.xlu0 %v240
      %v242 = vpop.xlane.xlu0 %241
      %v243 = vmul.f32 %v189, %v189
      %vm244 = vcmask 123904
      %v245 = vsel %vm244, %v243, 0.0
      %v246 = vrot.slane %v245, 4
      %v247 = vadd.f32 %v245, %v246
      %v248 = vrot.slane %v247, 2
      %v249 = vadd.f32 %v247, %v248
      %v250 = vrot.slane %v249, 1
      %v251 = vadd.f32 %v249, %v250
      %vm252 = vcmask 15360
      %v254 = vsel %vm252, %v237, 0
      %vm256 = vcmask 1041408
      %v258 = vsel %vm256, %v189, 0
      %260 = vmatprep.subr.mxu0 0.0
      %261 = vmatpush1.msra.mxu0 0.0
      %262 = vmatprep.subr.mxu0 0.0
      %263 = vmatpush1.msra.mxu0 0.0
      %264 = vmatprep.subr.mxu0 0.0
      %265 = vmatpush1.msra.mxu0 0.0
      %266 = vmatprep.subr.mxu0 0.0
      %267 = vmatpush1.msra.mxu0 0.0
      %268 = vmatprep.subr.mxu0 0.0
      %269 = vmatpush1.msra.mxu0 0.0
      %270 = vmatprep.subr.mxu0 0.0
      %271 = vmatpush1.msra.mxu0 0.0
      %272 = vmatprep.subr.mxu0 0.0
      %273 = vmatpush1.msra.mxu0 0.0
      %274 = vmatprep.subr.mxu0 0.0
      %275 = vmatpush1.msra.mxu0 0.0
      %276 = vmatprep.subr.mxu0 0.0
      %277 = vmatpush1.msra.mxu0 0.0
      %278 = vmatprep.subr.mxu0 0.0
      %279 = vmatpush1.msra.mxu0 0.0
      %280 = vmatprep.subr.mxu0 0.0
      %281 = vmatpush1.msra.mxu0 0.0
      %282 = vmatprep.subr.mxu0 0.0
      %283 = vmatpush1.msra.mxu0 0.0
      %284 = vmatprep.subr.mxu0 0.0
      %285 = vmatpush1.msra.mxu0 0.0
      %286 = vmatprep.subr.mxu0 0.0
      %287 = vmatpush1.msra.mxu0 0.0
      %288 = vmatprep.subr.mxu0 0.0
      %289 = vmatpush1.msra.mxu0 0.0
      %290 = vmatprep.subr.mxu0 0.0
      %291 = vmatpush1.msra.mxu0 %v258
      %292 = vmatprep.subr.mxu0 0.0
      %293 = vmatpush2.msra.mxu0 0.0
      %294 = vmatprep.subr.mxu0 0.0
      %295 = vmatpush2.msra.mxu0 0.0
      %296 = vmatprep.subr.mxu0 0.0
      %297 = vmatpush2.msra.mxu0 0.0
      %298 = vmatprep.subr.mxu0 0.0
      %299 = vmatpush2.msra.mxu0 0.0
      %300 = vmatprep.subr.mxu0 0.0
      %301 = vmatpush2.msra.mxu0 0.0
      %302 = vmatprep.subr.mxu0 0.0
      %303 = vmatpush2.msra.mxu0 0.0
      %304 = vmatprep.subr.mxu0 0.0
      %305 = vmatpush2.msra.mxu0 0.0
      %306 = vmatprep.subr.mxu0 0.0
      %307 = vmatpush2.msra.mxu0 0.0
      %308 = vmatprep.subr.mxu0 0.0
      %309 = vmatpush2.msra.mxu0 0.0
      %310 = vmatprep.subr.mxu0 0.0
      %311 = vmatpush2.msra.mxu0 0.0
      %312 = vmatprep.subr.mxu0 0.0
      %313 = vmatpush2.msra.mxu0 0.0
      %314 = vmatprep.subr.mxu0 0.0
      %315 = vmatpush2.msra.mxu0 0.0
      %316 = vmatprep.subr.mxu0 0.0
      %317 = vmatpush2.msra.mxu0 0.0
      %318 = vmatprep.subr.mxu0 0.0
      %319 = vmatpush2.msra.mxu0 0.0
      %320 = vmatprep.subr.mxu0 0.0
      %321 = vmatpush2.msra.mxu0 0.0
      %322 = vmatprep.subr.mxu0 0.0
      %323 = vmatpush2.msra.mxu0 0.0
      %324 = vmatprep.mubr.f32.mxu0 0.0
      %325 = vmatmul.mubr.f32.gmra.mxu0 %v254
      %v326 = vpop.f32.mrf.mxu0
      %v327 = vadd.f32 0.0, %v326
      %v328 = vpop.f32.mrf.mxu0
      %329 = vdwg.mxu0
      %v330 = vadd.f32 %v242, %v251
      %v331 = vmul.f32 %v327, 2.0
      %v332 = vsub.f32 %v330, %v331
      %v333 = vsub.f32 0.0, %v332
      %v334 = vrcp.pop 0.013888889
      %v335 = vmul.f32 %v333, %v334
      %v336 = vsel %vm244, %v335, -inf
      %337 = vmax.xlane.f32.xlu0 %v336
      %v338 = vpop.xlane.xlu0 %337
      %v339 = vsub.f32 %v335, %v338
      %v340 = vmul.f32 %v339, 1.442695
      %v341 = vpow.pop %v340
      %v342 = vsel %vm244, %v341, 0.0
      %343 = vadd.xlane.f32.xlu0 %v342
      %v344 = vpop.xlane.xlu0 %343
      %v345 = vrcp.pop %v344
      %v346 = vmul.f32 %v341, %v345
      %347 = vset.pattern.permute.xlu0 2
      %348 = vperm.xlu0 %347, %v237
      %v349 = vpop.permute.xlu0 %348
      %v351 = vlaneseq
      %v352 = vshrl.u32 %v351, 7
      %v353 = vsub.s32 0, %v352
      %v354 = vrot.slane %v190, %v353
      %v355 = vsub.f32 %v349, %v354
      %v356 = vand.u32 2147483647, %v355
      %vm357 = vcmp.le.f32.partialorder %v356, 0.7853982
      %vm358 = vcmp.lt.s32.totalorder %v355, 0
      %v359 = vand.u32 %v355, 2139095040
      %v360 = vshrl.u32 %v359, 23
      %v361 = vsub.s32 %v360, 127
      %v362 = vand.u32 2147483647, %v355
      %v363 = vand.u32 %v362, 8388607
      %v364 = vor.u32 %v363, 8388608
      %v365 = vsub.s32 0, %v364
      %v366 = vadd.s32 %v361, 1
      %vm367 = vcmp.gt.s32.totalorder %v366, 0
      %v368 = vsel %vm367, %v366, 0
      %v369 = vshrl.u32 %v368, 5
      %v370 = vand.u32 %v368, 31
      %v371 = vsub.s32 32, %v370
      %v372 = vshrl.u32 683565275, %v371
      %v373 = vshll.u32 683565275, %v370
      %v374 = vshrl.u32 2475754826, %v371
      %v375 = vor.u32 %v373, %v374
      %v376 = vshll.u32 2475754826, %v370
      %v377 = vshrl.u32 2131351028, %v371
      %v378 = vor.u32 %v376, %v377
      %v379 = vshll.u32 2131351028, %v370
      %v380 = vshrl.u32 2102212464, %v371
      %v381 = vor.u32 %v379, %v380
      %v382 = vshll.u32 2102212464, %v370
      %v383 = vshrl.u32 920167782, %v371
      %v384 = vor.u32 %v382, %v383
      %v385 = vshll.u32 920167782, %v370
      %v386 = vshrl.u32 1326507024, %v371
      %v387 = vor.u32 %v385, %v386
      %vm388 = vcmp.lt.s32.totalorder %v369, 1
      %vm389 = vcmp.lt.s32.totalorder %v369, 2
      %vm390 = vcmp.lt.s32.totalorder %v369, 3
      %vm391 = vcmp.lt.s32.totalorder %v369, 4
      %v392 = vsel %vm388, %v372, %v375
      %v393 = vsel %vm391, %v381, 2102212464
      %v394 = vsel %vm390, %v378, %v393
      %v395 = vsel %vm389, %v392, %v394
      %v396 = vsel %vm388, %v375, %v378
      %v397 = vsel %vm391, %v384, 920167782
      %v398 = vsel %vm390, %v381, %v397
      %v399 = vsel %vm389, %v396, %v398
      %v400 = vsel %vm388, %v378, %v381
      %v401 = vsel %vm391, %v387, 1326507024
      %v402 = vsel %vm390, %v384, %v401
      %v403 = vsel %vm389, %v400, %v402
      %v404 = vshll.u32 %v364, 8
      %v405 = vmul.u32.u64.compose %v404, %v403
      %v406 = vextract.low.u32 %v405
      %v407 = vextract.high.u32 %v405
      %v408 = vmul.u32.u64.compose %v404, %v399
      %v409 = vextract.low.u32 %v408
      %v410 = vextract.high.u32 %v408
      %v411 = vmul.u32 %v404, %v395
      %v412 = vadd.s32 %v407, %v409
      %vm413 = vc.u32 %v407, %v409
      %v414 = vadd.s32 %v410, 1
      %v415 = vsel %vm413, %v414, %v410
      %v416 = vadd.s32 %v411, %v415
      %v417 = vadd.s32 %v416, 536870912
      %v418 = vshrl.u32 %v417, 30
      %v419 = vshll.u32 %v418, 30
      %v420 = vsub.s32 %v416, %v419
      %vm421 = vcmp.lt.s32.totalorder %v420, 0
      %v422 = vsub.s32 0, %v420
      %v423 = vsel %vm421, %v422, %v420
      %v424 = vclz %v423
      %v425 = vsub.s32 %v424, 2
      %vm426 = vcmp.gt.s32.totalorder 0, %v425
      %v427 = vsel %vm426, 0, %v425
      %v428 = vsub.s32 32, %v427
      %v429 = vshll.u32 %v420, %v427
      %v430 = vshrl.u32 %v412, %v428
      %v431 = vor.u32 %v429, %v430
      %v432 = vsub.s32 4294967266, %v427
      %v433 = vadd.s32 %v432, 127
      %v434 = vshll.u32 %v433, 23
      %v435 = vor.u32 4788187, %v434
      %v436 = vand.u32 2147483647, %v435
      %v438 = vcvt.s32.f32 %v431
      %v439 = vmul.f32 %v438, %v436
      %v440 = vxor.u32 %v439, 2147483648
      %v441 = vsel %vm358, %v440, %v439
      %v442 = vsub.s32 4, %v418
      %v443 = vsel %vm358, %v442, %v418
      %v444 = vsel %vm357, %v355, %v441
      %v445 = vsel %vm357, 0, %v443
      %v446 = vcosq.f32.pop %v444
      %v447 = vsinq.f32.pop %v444
      %vm448 = vweird.f32 %v355
      %v449 = vand.u32 %v445, 3
      %vm450 = vcmp.lt.s32.totalorder %v449, 2
      %vm451 = vcmp.eq.s32.totalorder %v449, 0
      %v452 = vxor.u32 %v447, 2147483648
      %v453 = vsel %vm451, %v446, %v452
      %vm454 = vcmp.eq.s32.totalorder %v449, 2
      %v455 = vxor.u32 %v446, 2147483648
      %v456 = vsel %vm454, %v455, %v447
      %v457 = vsel %vm450, %v453, %v456
      %v458 = vsel %vm448, nan, %v457
      %v459 = vmul.f32 %v458, 20.0
      %vm460 = vcmask 91136
      %v461 = vsel %vm460, %v459, -inf
      %462 = vmax.xlane.f32.xlu0 %v461
      %v463 = vpop.xlane.xlu0 %462
      %v464 = vsub.f32 %v459, %v463
      %v465 = vmul.f32 %v464, 1.442695
      %v466 = vpow.pop %v465
      %v467 = vsel %vm460, %v466, 0.0
      %468 = vadd.xlane.f32.xlu0 %v467
      %v469 = vpop.xlane.xlu0 %468
      %v470 = vrcp.pop %v469
      %v471 = vmul.f32 %v466, %v470
      %vm472 = vcmask 97280
      %v474 = vsel %vm472, %v471, 0
      %vm476 = vcmask 1043456
      %v478 = vsel %vm476, %v196, 0
      %480 = vmatprep.subr.mxu0 0.0
      %481 = vmatpush1.msra.mxu0 0.0
      %482 = vmatprep.subr.mxu0 0.0
      %483 = vmatpush1.msra.mxu0 0.0
      %484 = vmatprep.subr.mxu0 0.0
      %485 = vmatpush1.msra.mxu0 0.0
      %486 = vmatprep.subr.mxu0 0.0
      %487 = vmatpush1.msra.mxu0 0.0
      %488 = vmatprep.subr.mxu0 0.0
      %489 = vmatpush1.msra.mxu0 0.0
      %490 = vmatprep.subr.mxu0 0.0
      %491 = vmatpush1.msra.mxu0 0.0
      %492 = vmatprep.subr.mxu0 0.0
      %493 = vmatpush1.msra.mxu0 0.0
      %494 = vmatprep.subr.mxu0 0.0
      %495 = vmatpush1.msra.mxu0 0.0
      %496 = vmatprep.subr.mxu0 0.0
      %497 = vmatpush1.msra.mxu0 0.0
      %498 = vmatprep.subr.mxu0 0.0
      %499 = vmatpush1.msra.mxu0 0.0
      %500 = vmatprep.subr.mxu0 0.0
      %501 = vmatpush1.msra.mxu0 0.0
      %502 = vmatprep.subr.mxu0 0.0
      %503 = vmatpush1.msra.mxu0 0.0
      %504 = vmatprep.subr.mxu0 0.0
      %505 = vmatpush1.msra.mxu0 0.0
      %506 = vmatprep.subr.mxu0 0.0
      %507 = vmatpush1.msra.mxu0 0.0
      %508 = vmatprep.subr.mxu0 0.0
      %509 = vmatpush1.msra.mxu0 %v478
      %510 = vmatprep.subr.mxu0 0.0
      %511 = vmatpush1.msra.mxu0 %v195
      %512 = vmatprep.subr.mxu0 0.0
      %513 = vmatpush2.msra.mxu0 0.0
      %514 = vmatprep.subr.mxu0 0.0
      %515 = vmatpush2.msra.mxu0 0.0
      %516 = vmatprep.subr.mxu0 0.0
      %517 = vmatpush2.msra.mxu0 0.0
      %518 = vmatprep.subr.mxu0 0.0
      %519 = vmatpush2.msra.mxu0 0.0
      %520 = vmatprep.subr.mxu0 0.0
      %521 = vmatpush2.msra.mxu0 0.0
      %522 = vmatprep.subr.mxu0 0.0
      %523 = vmatpush2.msra.mxu0 0.0
      %524 = vmatprep.subr.mxu0 0.0
      %525 = vmatpush2.msra.mxu0 0.0
      %526 = vmatprep.subr.mxu0 0.0
      %527 = vmatpush2.msra.mxu0 0.0
      %528 = vmatprep.subr.mxu0 0.0
      %529 = vmatpush2.msra.mxu0 0.0
      %530 = vmatprep.subr.mxu0 0.0
      %531 = vmatpush2.msra.mxu0 0.0
      %532 = vmatprep.subr.mxu0 0.0
      %533 = vmatpush2.msra.mxu0 0.0
      %534 = vmatprep.subr.mxu0 0.0
      %535 = vmatpush2.msra.mxu0 0.0
      %536 = vmatprep.subr.mxu0 0.0
      %537 = vmatpush2.msra.mxu0 0.0
      %538 = vmatprep.subr.mxu0 0.0
      %539 = vmatpush2.msra.mxu0 0.0
      %540 = vmatprep.subr.mxu0 0.0
      %541 = vmatpush2.msra.mxu0 0.0
      %542 = vmatprep.subr.mxu0 0.0
      %543 = vmatpush2.msra.mxu0 0.0
      %544 = vmatprep.mubr.f32.mxu0 0.0
      %545 = vmatmul.mubr.f32.gmra.mxu0 %v474
      %v546 = vpop.f32.mrf.mxu0
      %v547 = vadd.f32 0.0, %v546
      %v548 = vpop.f32.mrf.mxu0
      %549 = vdwg.mxu0
      %vm550 = vcmask 130048
      %v552 = vsel %vm550, %v346, 0
      %554 = vmatprep.subr.mxu0 0.0
      %555 = vmatpush1.msra.mxu0 0.0
      %556 = vmatprep.subr.mxu0 0.0
      %557 = vmatpush1.msra.mxu0 0.0
      %558 = vmatprep.subr.mxu0 0.0
      %559 = vmatpush1.msra.mxu0 0.0
      %560 = vmatprep.subr.mxu0 0.0
      %561 = vmatpush1.msra.mxu0 0.0
      %562 = vmatprep.subr.mxu0 0.0
      %563 = vmatpush1.msra.mxu0 0.0
      %564 = vmatprep.subr.mxu0 0.0
      %565 = vmatpush1.msra.mxu0 0.0
      %566 = vmatprep.subr.mxu0 0.0
      %567 = vmatpush1.msra.mxu0 0.0
      %568 = vmatprep.subr.mxu0 0.0
      %569 = vmatpush1.msra.mxu0 0.0
      %570 = vmatprep.subr.mxu0 0.0
      %571 = vmatpush1.msra.mxu0 0.0
      %572 = vmatprep.subr.mxu0 0.0
      %573 = vmatpush1.msra.mxu0 0.0
      %574 = vmatprep.subr.mxu0 0.0
      %575 = vmatpush1.msra.mxu0 0.0
      %576 = vmatprep.subr.mxu0 0.0
      %577 = vmatpush1.msra.mxu0 0.0
      %578 = vmatprep.subr.mxu0 0.0
      %579 = vmatpush1.msra.mxu0 0.0
      %580 = vmatprep.subr.mxu0 0.0
      %581 = vmatpush1.msra.mxu0 0.0
      %582 = vmatprep.subr.mxu0 0.0
      %583 = vmatpush1.msra.mxu0 %v194
      %584 = vmatprep.subr.mxu0 0.0
      %585 = vmatpush1.msra.mxu0 %v193
      %586 = vmatprep.subr.mxu0 0.0
      %587 = vmatpush2.msra.mxu0 0.0
      %588 = vmatprep.subr.mxu0 0.0
      %589 = vmatpush2.msra.mxu0 0.0
      %590 = vmatprep.subr.mxu0 0.0
      %591 = vmatpush2.msra.mxu0 0.0
      %592 = vmatprep.subr.mxu0 0.0
      %593 = vmatpush2.msra.mxu0 0.0
      %594 = vmatprep.subr.mxu0 0.0
      %595 = vmatpush2.msra.mxu0 0.0
      %596 = vmatprep.subr.mxu0 0.0
      %597 = vmatpush2.msra.mxu0 0.0
      %598 = vmatprep.subr.mxu0 0.0
      %599 = vmatpush2.msra.mxu0 0.0
      %600 = vmatprep.subr.mxu0 0.0
      %601 = vmatpush2.msra.mxu0 0.0
      %602 = vmatprep.subr.mxu0 0.0
      %603 = vmatpush2.msra.mxu0 0.0
      %604 = vmatprep.subr.mxu0 0.0
      %605 = vmatpush2.msra.mxu0 0.0
      %606 = vmatprep.subr.mxu0 0.0
      %607 = vmatpush2.msra.mxu0 0.0
      %608 = vmatprep.subr.mxu0 0.0
      %609 = vmatpush2.msra.mxu0 0.0
      %610 = vmatprep.subr.mxu0 0.0
      %611 = vmatpush2.msra.mxu0 0.0
      %612 = vmatprep.subr.mxu0 0.0
      %613 = vmatpush2.msra.mxu0 0.0
      %614 = vmatprep.subr.mxu0 0.0
      %615 = vmatpush2.msra.mxu0 0.0
      %616 = vmatprep.subr.mxu0 0.0
      %617 = vmatpush2.msra.mxu0 0.0
      %618 = vmatprep.mubr.f32.mxu0 0.0
      %619 = vmatmul.mubr.f32.gmra.mxu0 %v552
      %v620 = vpop.f32.mrf.mxu0
      %v621 = vadd.f32 %v547, %v620
      %v622 = vpop.f32.mrf.mxu0
      %623 = vdwg.mxu0
      %v624 = vtanh.pop %v621
      %v626 = vrot.slane %v624, 1
      %627 = vrot.lane.b32.xlu0 %v626, 32
      %v628 = vpop.permute.xlu0 %627
      %vm630 = vcmask 261120
      %v631 = vsel %vm630, %v624, %v628
      %v632 = vlaneseq
      %v633 = vshrl.u32 %v632, 7
      %v634 = vsub.s32 0, %v633
      %v635 = vrot.slane %v191, %v634
      %637 = vrot.lane.b32.xlu0 %v231, 125
      %v638 = vpop.permute.xlu0 %637
      %639 = vrot.lane.b32.xlu0 %v232, 125
      %v640 = vpop.permute.xlu0 %639
      %v641 = vsel %vm550, %v638, 0
      %v643 = vsel %vm550, %v640, 0
      %645 = vmatprep.subr.mxu0 0.0
      %646 = vmatpush1.msra.mxu0 0.0
      %647 = vmatprep.subr.mxu0 0.0
      %648 = vmatpush1.msra.mxu0 0.0
      %649 = vmatprep.subr.mxu0 0.0
      %650 = vmatpush1.msra.mxu0 0.0
      %651 = vmatprep.subr.mxu0 0.0
      %652 = vmatpush1.msra.mxu0 0.0
      %653 = vmatprep.subr.mxu0 0.0
      %654 = vmatpush1.msra.mxu0 0.0
      %655 = vmatprep.subr.mxu0 0.0
      %656 = vmatpush1.msra.mxu0 0.0
      %657 = vmatprep.subr.mxu0 0.0
      %658 = vmatpush1.msra.mxu0 0.0
      %659 = vmatprep.subr.mxu0 0.0
      %660 = vmatpush1.msra.mxu0 0.0
      %661 = vmatprep.subr.mxu0 0.0
      %662 = vmatpush1.msra.mxu0 0.0
      %663 = vmatprep.subr.mxu0 0.0
      %664 = vmatpush1.msra.mxu0 0.0
      %665 = vmatprep.subr.mxu0 0.0
      %666 = vmatpush1.msra.mxu0 0.0
      %667 = vmatprep.subr.mxu0 0.0
      %668 = vmatpush1.msra.mxu0 0.0
      %669 = vmatprep.subr.mxu0 0.0
      %670 = vmatpush1.msra.mxu0 0.0
      %671 = vmatprep.subr.mxu0 0.0
      %672 = vmatpush1.msra.mxu0 0.0
      %673 = vmatprep.subr.mxu0 0.0
      %674 = vmatpush1.msra.mxu0 %v198
      %675 = vmatprep.subr.mxu0 0.0
      %676 = vmatpush1.msra.mxu0 %v197
      %677 = vmatprep.subr.mxu0 0.0
      %678 = vmatpush2.msra.mxu0 0.0
      %679 = vmatprep.subr.mxu0 0.0
      %680 = vmatpush2.msra.mxu0 0.0
      %681 = vmatprep.subr.mxu0 0.0
      %682 = vmatpush2.msra.mxu0 0.0
      %683 = vmatprep.subr.mxu0 0.0
      %684 = vmatpush2.msra.mxu0 0.0
      %685 = vmatprep.subr.mxu0 0.0
      %686 = vmatpush2.msra.mxu0 0.0
      %687 = vmatprep.subr.mxu0 0.0
      %688 = vmatpush2.msra.mxu0 0.0
      %689 = vmatprep.subr.mxu0 0.0
      %690 = vmatpush2.msra.mxu0 0.0
      %691 = vmatprep.subr.mxu0 0.0
      %692 = vmatpush2.msra.mxu0 0.0
      %693 = vmatprep.subr.mxu0 0.0
      %694 = vmatpush2.msra.mxu0 0.0
      %695 = vmatprep.subr.mxu0 0.0
      %696 = vmatpush2.msra.mxu0 0.0
      %697 = vmatprep.subr.mxu0 0.0
      %698 = vmatpush2.msra.mxu0 0.0
      %699 = vmatprep.subr.mxu0 0.0
      %700 = vmatpush2.msra.mxu0 0.0
      %701 = vmatprep.subr.mxu0 0.0
      %702 = vmatpush2.msra.mxu0 0.0
      %703 = vmatprep.subr.mxu0 0.0
      %704 = vmatpush2.msra.mxu0 0.0
      %705 = vmatprep.subr.mxu0 0.0
      %706 = vmatpush2.msra.mxu0 0.0
      %707 = vmatprep.subr.mxu0 0.0
      %708 = vmatpush2.msra.mxu0 0.0
      %709 = vmatprep.mubr.f32.mxu0 0.0
      %710 = vmatmul.mubr.f32.gmra.mxu0 %v641
      %v711 = vpop.f32.mrf.mxu0
      %v712 = vadd.f32 %v635, %v711
      %v713 = vpop.f32.mrf.mxu0
      %714 = vmatprep.mubr.f32.mxu0 0.0
      %715 = vmatmul.mubr.f32.gmra.mxu0 %v643
      %v716 = vpop.f32.mrf.mxu0
      %v717 = vadd.f32 %v635, %v716
      %v718 = vpop.f32.mrf.mxu0
      %719 = vdwg.mxu0
      %vm720 = vcmask 523264
      %v722 = vsel %vm720, %v631, 0
      %724 = vmatprep.subr.mxu0 0.0
      %725 = vmatpush1.msra.mxu0 0.0
      %726 = vmatprep.subr.mxu0 0.0
      %727 = vmatpush1.msra.mxu0 0.0
      %728 = vmatprep.subr.mxu0 0.0
      %729 = vmatpush1.msra.mxu0 0.0
      %730 = vmatprep.subr.mxu0 0.0
      %731 = vmatpush1.msra.mxu0 0.0
      %732 = vmatprep.subr.mxu0 0.0
      %733 = vmatpush1.msra.mxu0 0.0
      %734 = vmatprep.subr.mxu0 0.0
      %735 = vmatpush1.msra.mxu0 0.0
      %736 = vmatprep.subr.mxu0 0.0
      %737 = vmatpush1.msra.mxu0 0.0
      %738 = vmatprep.subr.mxu0 0.0
      %739 = vmatpush1.msra.mxu0 0.0
      %740 = vmatprep.subr.mxu0 0.0
      %741 = vmatpush1.msra.mxu0 %v206
      %742 = vmatprep.subr.mxu0 0.0
      %743 = vmatpush1.msra.mxu0 %v205
      %744 = vmatprep.subr.mxu0 0.0
      %745 = vmatpush1.msra.mxu0 %v204
      %746 = vmatprep.subr.mxu0 0.0
      %747 = vmatpush1.msra.mxu0 %v203
      %748 = vmatprep.subr.mxu0 0.0
      %749 = vmatpush1.msra.mxu0 %v202
      %750 = vmatprep.subr.mxu0 0.0
      %751 = vmatpush1.msra.mxu0 %v201
      %752 = vmatprep.subr.mxu0 0.0
      %753 = vmatpush1.msra.mxu0 %v200
      %754 = vmatprep.subr.mxu0 0.0
      %755 = vmatpush1.msra.mxu0 %v199
      %756 = vmatprep.subr.mxu0 0.0
      %757 = vmatpush2.msra.mxu0 0.0
      %758 = vmatprep.subr.mxu0 0.0
      %759 = vmatpush2.msra.mxu0 0.0
      %760 = vmatprep.subr.mxu0 0.0
      %761 = vmatpush2.msra.mxu0 0.0
      %762 = vmatprep.subr.mxu0 0.0
      %763 = vmatpush2.msra.mxu0 0.0
      %764 = vmatprep.subr.mxu0 0.0
      %765 = vmatpush2.msra.mxu0 0.0
      %766 = vmatprep.subr.mxu0 0.0
      %767 = vmatpush2.msra.mxu0 0.0
      %768 = vmatprep.subr.mxu0 0.0
      %769 = vmatpush2.msra.mxu0 0.0
      %770 = vmatprep.subr.mxu0 0.0
      %771 = vmatpush2.msra.mxu0 0.0
      %772 = vmatprep.subr.mxu0 0.0
      %773 = vmatpush2.msra.mxu0 0.0
      %774 = vmatprep.subr.mxu0 0.0
      %775 = vmatpush2.msra.mxu0 0.0
      %776 = vmatprep.subr.mxu0 0.0
      %777 = vmatpush2.msra.mxu0 0.0
      %778 = vmatprep.subr.mxu0 0.0
      %779 = vmatpush2.msra.mxu0 0.0
      %780 = vmatprep.subr.mxu0 0.0
      %781 = vmatpush2.msra.mxu0 0.0
      %782 = vmatprep.subr.mxu0 0.0
      %783 = vmatpush2.msra.mxu0 0.0
      %784 = vmatprep.subr.mxu0 0.0
      %785 = vmatpush2.msra.mxu0 0.0
      %786 = vmatprep.subr.mxu0 0.0
      %787 = vmatpush2.msra.mxu0 0.0
      %788 = vmatprep.mubr.f32.mxu0 0.0
      %789 = vmatmul.mubr.f32.gmra.mxu0 %v722
      %v790 = vpop.f32.mrf.mxu0
      %v791 = vadd.f32 0.0, %v790
      %v792 = vpop.f32.mrf.mxu0
      %793 = vdwg.mxu0
      %v794 = vadd.f32 %v712, %v791
      %v795 = vtanh.pop %v794
      %vm796 = vcmask 253952
      %797 = vst.msk [vmem:[#allocation2] sm:$0x1] %vm796, %v795
      %vm798 = vcmask 516352
      %799 = vst.msk [vmem:[#allocation2 + $0xf] sm:$0x1] %vm798, %v795
      %v801 = vsel %vm720, %v795, 0
      %803 = vmatprep.subr.mxu0 0.0
      %804 = vmatpush1.msra.mxu0 0.0
      %805 = vmatprep.subr.mxu0 0.0
      %806 = vmatpush1.msra.mxu0 0.0
      %807 = vmatprep.subr.mxu0 0.0
      %808 = vmatpush1.msra.mxu0 0.0
      %809 = vmatprep.subr.mxu0 0.0
      %810 = vmatpush1.msra.mxu0 0.0
      %811 = vmatprep.subr.mxu0 0.0
      %812 = vmatpush1.msra.mxu0 0.0
      %813 = vmatprep.subr.mxu0 0.0
      %814 = vmatpush1.msra.mxu0 0.0
      %815 = vmatprep.subr.mxu0 0.0
      %816 = vmatpush1.msra.mxu0 0.0
      %817 = vmatprep.subr.mxu0 0.0
      %818 = vmatpush1.msra.mxu0 0.0
      %819 = vmatprep.subr.mxu0 0.0
      %820 = vmatpush1.msra.mxu0 %v206
      %821 = vmatprep.subr.mxu0 0.0
      %822 = vmatpush1.msra.mxu0 %v205
      %823 = vmatprep.subr.mxu0 0.0
      %824 = vmatpush1.msra.mxu0 %v204
      %825 = vmatprep.subr.mxu0 0.0
      %826 = vmatpush1.msra.mxu0 %v203
      %827 = vmatprep.subr.mxu0 0.0
      %828 = vmatpush1.msra.mxu0 %v202
      %829 = vmatprep.subr.mxu0 0.0
      %830 = vmatpush1.msra.mxu0 %v201
      %831 = vmatprep.subr.mxu0 0.0
      %832 = vmatpush1.msra.mxu0 %v200
      %833 = vmatprep.subr.mxu0 0.0
      %834 = vmatpush1.msra.mxu0 %v199
      %835 = vmatprep.subr.mxu0 0.0
      %836 = vmatpush2.msra.mxu0 0.0
      %837 = vmatprep.subr.mxu0 0.0
      %838 = vmatpush2.msra.mxu0 0.0
      %839 = vmatprep.subr.mxu0 0.0
      %840 = vmatpush2.msra.mxu0 0.0
      %841 = vmatprep.subr.mxu0 0.0
      %842 = vmatpush2.msra.mxu0 0.0
      %843 = vmatprep.subr.mxu0 0.0
      %844 = vmatpush2.msra.mxu0 0.0
      %845 = vmatprep.subr.mxu0 0.0
      %846 = vmatpush2.msra.mxu0 0.0
      %847 = vmatprep.subr.mxu0 0.0
      %848 = vmatpush2.msra.mxu0 0.0
      %849 = vmatprep.subr.mxu0 0.0
      %850 = vmatpush2.msra.mxu0 0.0
      %851 = vmatprep.subr.mxu0 0.0
      %852 = vmatpush2.msra.mxu0 0.0
      %853 = vmatprep.subr.mxu0 0.0
      %854 = vmatpush2.msra.mxu0 0.0
      %855 = vmatprep.subr.mxu0 0.0
      %856 = vmatpush2.msra.mxu0 0.0
      %857 = vmatprep.subr.mxu0 0.0
      %858 = vmatpush2.msra.mxu0 0.0
      %859 = vmatprep.subr.mxu0 0.0
      %860 = vmatpush2.msra.mxu0 0.0
      %861 = vmatprep.subr.mxu0 0.0
      %862 = vmatpush2.msra.mxu0 0.0
      %863 = vmatprep.subr.mxu0 0.0
      %864 = vmatpush2.msra.mxu0 0.0
      %865 = vmatprep.subr.mxu0 0.0
      %866 = vmatpush2.msra.mxu0 0.0
      %867 = vmatprep.mubr.f32.mxu0 0.0
      %868 = vmatmul.mubr.f32.gmra.mxu0 %v801
      %v869 = vpop.f32.mrf.mxu0
      %v870 = vadd.f32 0.0, %v869
      %v871 = vpop.f32.mrf.mxu0
      %872 = vdwg.mxu0
      %v874 = vrot.slane %v870, 7
      %v876 = vadd.f32 %v712, %v874
      %v877 = vtanh.pop %v876
      %vm878 = vcmask 254977
      %879 = vst.msk [vmem:[#allocation2] sm:$0x2] %vm878, %v877
      %vm880 = vcmask 517377
      %881 = vst.msk [vmem:[#allocation2 + $0xd] sm:$0x2] %vm880, %v877
      %v883 = vrot.slane %v877, 1
      %v884 = vsel %vm720, %v883, 0
      %886 = vmatprep.subr.mxu0 0.0
      %887 = vmatpush1.msra.mxu0 0.0
      %888 = vmatprep.subr.mxu0 0.0
      %889 = vmatpush1.msra.mxu0 0.0
      %890 = vmatprep.subr.mxu0 0.0
      %891 = vmatpush1.msra.mxu0 0.0
      %892 = vmatprep.subr.mxu0 0.0
      %893 = vmatpush1.msra.mxu0 0.0
      %894 = vmatprep.subr.mxu0 0.0
      %895 = vmatpush1.msra.mxu0 0.0
      %896 = vmatprep.subr.mxu0 0.0
      %897 = vmatpush1.msra.mxu0 0.0
      %898 = vmatprep.subr.mxu0 0.0
      %899 = vmatpush1.msra.mxu0 0.0
      %900 = vmatprep.subr.mxu0 0.0
      %901 = vmatpush1.msra.mxu0 0.0
      %902 = vmatprep.subr.mxu0 0.0
      %903 = vmatpush1.msra.mxu0 %v206
      %904 = vmatprep.subr.mxu0 0.0
      %905 = vmatpush1.msra.mxu0 %v205
      %906 = vmatprep.subr.mxu0 0.0
      %907 = vmatpush1.msra.mxu0 %v204
      %908 = vmatprep.subr.mxu0 0.0
      %909 = vmatpush1.msra.mxu0 %v203
      %910 = vmatprep.subr.mxu0 0.0
      %911 = vmatpush1.msra.mxu0 %v202
      %912 = vmatprep.subr.mxu0 0.0
      %913 = vmatpush1.msra.mxu0 %v201
      %914 = vmatprep.subr.mxu0 0.0
      %915 = vmatpush1.msra.mxu0 %v200
      %916 = vmatprep.subr.mxu0 0.0
      %917 = vmatpush1.msra.mxu0 %v199
      %918 = vmatprep.subr.mxu0 0.0
      %919 = vmatpush2.msra.mxu0 0.0
      %920 = vmatprep.subr.mxu0 0.0
      %921 = vmatpush2.msra.mxu0 0.0
      %922 = vmatprep.subr.mxu0 0.0
      %923 = vmatpush2.msra.mxu0 0.0
      %924 = vmatprep.subr.mxu0 0.0
      %925 = vmatpush2.msra.mxu0 0.0
      %926 = vmatprep.subr.mxu0 0.0
      %927 = vmatpush2.msra.mxu0 0.0
      %928 = vmatprep.subr.mxu0 0.0
      %929 = vmatpush2.msra.mxu0 0.0
      %930 = vmatprep.subr.mxu0 0.0
      %931 = vmatpush2.msra.mxu0 0.0
      %932 = vmatprep.subr.mxu0 0.0
      %933 = vmatpush2.msra.mxu0 0.0
      %934 = vmatprep.subr.mxu0 0.0
      %935 = vmatpush2.msra.mxu0 0.0
      %936 = vmatprep.subr.mxu0 0.0
      %937 = vmatpush2.msra.mxu0 0.0
      %938 = vmatprep.subr.mxu0 0.0
      %939 = vmatpush2.msra.mxu0 0.0
      %940 = vmatprep.subr.mxu0 0.0
      %941 = vmatpush2.msra.mxu0 0.0
      %942 = vmatprep.subr.mxu0 0.0
      %943 = vmatpush2.msra.mxu0 0.0
      %944 = vmatprep.subr.mxu0 0.0
      %945 = vmatpush2.msra.mxu0 0.0
      %946 = vmatprep.subr.mxu0 0.0
      %947 = vmatpush2.msra.mxu0 0.0
      %948 = vmatprep.subr.mxu0 0.0
      %949 = vmatpush2.msra.mxu0 0.0
      %950 = vmatprep.mubr.f32.mxu0 0.0
      %951 = vmatmul.mubr.f32.gmra.mxu0 %v884
      %v952 = vpop.f32.mrf.mxu0
      %v953 = vadd.f32 0.0, %v952
      %v954 = vpop.f32.mrf.mxu0
      %955 = vdwg.mxu0
      %v957 = vrot.slane %v953, 6
      %v959 = vadd.f32 %v712, %v957
      %v960 = vtanh.pop %v959
      %vm961 = vcmask 256002
      %962 = vst.msk [vmem:[#allocation2] sm:$0x4] %vm961, %v960
      %vm963 = vcmask 518402
      %964 = vst.msk [vmem:[#allocation2 + $0xb] sm:$0x4] %vm963, %v960
      %v966 = vrot.slane %v960, 2
      %v967 = vsel %vm720, %v966, 0
      %969 = vmatprep.subr.mxu0 0.0
      %970 = vmatpush1.msra.mxu0 0.0
      %971 = vmatprep.subr.mxu0 0.0
      %972 = vmatpush1.msra.mxu0 0.0
      %973 = vmatprep.subr.mxu0 0.0
      %974 = vmatpush1.msra.mxu0 0.0
      %975 = vmatprep.subr.mxu0 0.0
      %976 = vmatpush1.msra.mxu0 0.0
      %977 = vmatprep.subr.mxu0 0.0
      %978 = vmatpush1.msra.mxu0 0.0
      %979 = vmatprep.subr.mxu0 0.0
      %980 = vmatpush1.msra.mxu0 0.0
      %981 = vmatprep.subr.mxu0 0.0
      %982 = vmatpush1.msra.mxu0 0.0
      %983 = vmatprep.subr.mxu0 0.0
      %984 = vmatpush1.msra.mxu0 0.0
      %985 = vmatprep.subr.mxu0 0.0
      %986 = vmatpush1.msra.mxu0 %v206
      %987 = vmatprep.subr.mxu0 0.0
      %988 = vmatpush1.msra.mxu0 %v205
      %989 = vmatprep.subr.mxu0 0.0
      %990 = vmatpush1.msra.mxu0 %v204
      %991 = vmatprep.subr.mxu0 0.0
      %992 = vmatpush1.msra.mxu0 %v203
      %993 = vmatprep.subr.mxu0 0.0
      %994 = vmatpush1.msra.mxu0 %v202
      %995 = vmatprep.subr.mxu0 0.0
      %996 = vmatpush1.msra.mxu0 %v201
      %997 = vmatprep.subr.mxu0 0.0
      %998 = vmatpush1.msra.mxu0 %v200
      %999 = vmatprep.subr.mxu0 0.0
      %1000 = vmatpush1.msra.mxu0 %v199
      %1001 = vmatprep.subr.mxu0 0.0
      %1002 = vmatpush2.msra.mxu0 0.0
      %1003 = vmatprep.subr.mxu0 0.0
      %1004 = vmatpush2.msra.mxu0 0.0
      %1005 = vmatprep.subr.mxu0 0.0
      %1006 = vmatpush2.msra.mxu0 0.0
      %1007 = vmatprep.subr.mxu0 0.0
      %1008 = vmatpush2.msra.mxu0 0.0
      %1009 = vmatprep.subr.mxu0 0.0
      %1010 = vmatpush2.msra.mxu0 0.0
      %1011 = vmatprep.subr.mxu0 0.0
      %1012 = vmatpush2.msra.mxu0 0.0
      %1013 = vmatprep.subr.mxu0 0.0
      %1014 = vmatpush2.msra.mxu0 0.0
      %1015 = vmatprep.subr.mxu0 0.0
      %1016 = vmatpush2.msra.mxu0 0.0
      %1017 = vmatprep.subr.mxu0 0.0
      %1018 = vmatpush2.msra.mxu0 0.0
      %1019 = vmatprep.subr.mxu0 0.0
      %1020 = vmatpush2.msra.mxu0 0.0
      %1021 = vmatprep.subr.mxu0 0.0
      %1022 = vmatpush2.msra.mxu0 0.0
      %1023 = vmatprep.subr.mxu0 0.0
      %1024 = vmatpush2.msra.mxu0 0.0
      %1025 = vmatprep.subr.mxu0 0.0
      %1026 = vmatpush2.msra.mxu0 0.0
      %1027 = vmatprep.subr.mxu0 0.0
      %1028 = vmatpush2.msra.mxu0 0.0
      %1029 = vmatprep.subr.mxu0 0.0
      %1030 = vmatpush2.msra.mxu0 0.0
      %1031 = vmatprep.subr.mxu0 0.0
      %1032 = vmatpush2.msra.mxu0 0.0
      %1033 = vmatprep.mubr.f32.mxu0 0.0
      %1034 = vmatmul.mubr.f32.gmra.mxu0 %v967
      %v1035 = vpop.f32.mrf.mxu0
      %v1036 = vadd.f32 0.0, %v1035
      %v1037 = vpop.f32.mrf.mxu0
      %1038 = vdwg.mxu0
      %v1040 = vrot.slane %v1036, 5
      %v1042 = vadd.f32 %v712, %v1040
      %v1043 = vtanh.pop %v1042
      %vm1044 = vcmask 257027
      %1045 = vst.msk [vmem:[#allocation2] sm:$0x8] %vm1044, %v1043
      %vm1046 = vcmask 519427
      %1047 = vst.msk [vmem:[#allocation2 + $0x9] sm:$0x8] %vm1046, %v1043
      %v1049 = vrot.slane %v1043, 3
      %v1050 = vsel %vm720, %v1049, 0
      %1052 = vmatprep.subr.mxu0 0.0
      %1053 = vmatpush1.msra.mxu0 0.0
      %1054 = vmatprep.subr.mxu0 0.0
      %1055 = vmatpush1.msra.mxu0 0.0
      %1056 = vmatprep.subr.mxu0 0.0
      %1057 = vmatpush1.msra.mxu0 0.0
      %1058 = vmatprep.subr.mxu0 0.0
      %1059 = vmatpush1.msra.mxu0 0.0
      %1060 = vmatprep.subr.mxu0 0.0
      %1061 = vmatpush1.msra.mxu0 0.0
      %1062 = vmatprep.subr.mxu0 0.0
      %1063 = vmatpush1.msra.mxu0 0.0
      %1064 = vmatprep.subr.mxu0 0.0
      %1065 = vmatpush1.msra.mxu0 0.0
      %1066 = vmatprep.subr.mxu0 0.0
      %1067 = vmatpush1.msra.mxu0 0.0
      %1068 = vmatprep.subr.mxu0 0.0
      %1069 = vmatpush1.msra.mxu0 %v206
      %1070 = vmatprep.subr.mxu0 0.0
      %1071 = vmatpush1.msra.mxu0 %v205
      %1072 = vmatprep.subr.mxu0 0.0
      %1073 = vmatpush1.msra.mxu0 %v204
      %1074 = vmatprep.subr.mxu0 0.0
      %1075 = vmatpush1.msra.mxu0 %v203
      %1076 = vmatprep.subr.mxu0 0.0
      %1077 = vmatpush1.msra.mxu0 %v202
      %1078 = vmatprep.subr.mxu0 0.0
      %1079 = vmatpush1.msra.mxu0 %v201
      %1080 = vmatprep.subr.mxu0 0.0
      %1081 = vmatpush1.msra.mxu0 %v200
      %1082 = vmatprep.subr.mxu0 0.0
      %1083 = vmatpush1.msra.mxu0 %v199
      %1084 = vmatprep.subr.mxu0 0.0
      %1085 = vmatpush2.msra.mxu0 0.0
      %1086 = vmatprep.subr.mxu0 0.0
      %1087 = vmatpush2.msra.mxu0 0.0
      %1088 = vmatprep.subr.mxu0 0.0
      %1089 = vmatpush2.msra.mxu0 0.0
      %1090 = vmatprep.subr.mxu0 0.0
      %1091 = vmatpush2.msra.mxu0 0.0
      %1092 = vmatprep.subr.mxu0 0.0
      %1093 = vmatpush2.msra.mxu0 0.0
      %1094 = vmatprep.subr.mxu0 0.0
      %1095 = vmatpush2.msra.mxu0 0.0
      %1096 = vmatprep.subr.mxu0 0.0
      %1097 = vmatpush2.msra.mxu0 0.0
      %1098 = vmatprep.subr.mxu0 0.0
      %1099 = vmatpush2.msra.mxu0 0.0
      %1100 = vmatprep.subr.mxu0 0.0
      %1101 = vmatpush2.msra.mxu0 0.0
      %1102 = vmatprep.subr.mxu0 0.0
      %1103 = vmatpush2.msra.mxu0 0.0
      %1104 = vmatprep.subr.mxu0 0.0
      %1105 = vmatpush2.msra.mxu0 0.0
      %1106 = vmatprep.subr.mxu0 0.0
      %1107 = vmatpush2.msra.mxu0 0.0
      %1108 = vmatprep.subr.mxu0 0.0
      %1109 = vmatpush2.msra.mxu0 0.0
      %1110 = vmatprep.subr.mxu0 0.0
      %1111 = vmatpush2.msra.mxu0 0.0
      %1112 = vmatprep.subr.mxu0 0.0
      %1113 = vmatpush2.msra.mxu0 0.0
      %1114 = vmatprep.subr.mxu0 0.0
      %1115 = vmatpush2.msra.mxu0 0.0
      %1116 = vmatprep.mubr.f32.mxu0 0.0
      %1117 = vmatmul.mubr.f32.gmra.mxu0 %v1050
      %v1118 = vpop.f32.mrf.mxu0
      %v1119 = vadd.f32 0.0, %v1118
      %v1120 = vpop.f32.mrf.mxu0
      %1121 = vdwg.mxu0
      %v1123 = vrot.slane %v1119, 4
      %v1125 = vadd.f32 %v712, %v1123
      %v1126 = vtanh.pop %v1125
      %vm1127 = vcmask 258052
      %1128 = vst.msk [vmem:[#allocation2] sm:$0x10] %vm1127, %v1126
      %vm1129 = vcmask 520452
      %1130 = vst.msk [vmem:[#allocation2 + $0x7] sm:$0x10] %vm1129, %v1126
      %v1132 = vrot.slane %v1126, 4
      %v1133 = vsel %vm720, %v1132, 0
      %1135 = vmatprep.subr.mxu0 0.0
      %1136 = vmatpush1.msra.mxu0 0.0
      %1137 = vmatprep.subr.mxu0 0.0
      %1138 = vmatpush1.msra.mxu0 0.0
      %1139 = vmatprep.subr.mxu0 0.0
      %1140 = vmatpush1.msra.mxu0 0.0
      %1141 = vmatprep.subr.mxu0 0.0
      %1142 = vmatpush1.msra.mxu0 0.0
      %1143 = vmatprep.subr.mxu0 0.0
      %1144 = vmatpush1.msra.mxu0 0.0
      %1145 = vmatprep.subr.mxu0 0.0
      %1146 = vmatpush1.msra.mxu0 0.0
      %1147 = vmatprep.subr.mxu0 0.0
      %1148 = vmatpush1.msra.mxu0 0.0
      %1149 = vmatprep.subr.mxu0 0.0
      %1150 = vmatpush1.msra.mxu0 0.0
      %1151 = vmatprep.subr.mxu0 0.0
      %1152 = vmatpush1.msra.mxu0 %v206
      %1153 = vmatprep.subr.mxu0 0.0
      %1154 = vmatpush1.msra.mxu0 %v205
      %1155 = vmatprep.subr.mxu0 0.0
      %1156 = vmatpush1.msra.mxu0 %v204
      %1157 = vmatprep.subr.mxu0 0.0
      %1158 = vmatpush1.msra.mxu0 %v203
      %1159 = vmatprep.subr.mxu0 0.0
      %1160 = vmatpush1.msra.mxu0 %v202
      %1161 = vmatprep.subr.mxu0 0.0
      %1162 = vmatpush1.msra.mxu0 %v201
      %1163 = vmatprep.subr.mxu0 0.0
      %1164 = vmatpush1.msra.mxu0 %v200
      %1165 = vmatprep.subr.mxu0 0.0
      %1166 = vmatpush1.msra.mxu0 %v199
      %1167 = vmatprep.subr.mxu0 0.0
      %1168 = vmatpush2.msra.mxu0 0.0
      %1169 = vmatprep.subr.mxu0 0.0
      %1170 = vmatpush2.msra.mxu0 0.0
      %1171 = vmatprep.subr.mxu0 0.0
      %1172 = vmatpush2.msra.mxu0 0.0
      %1173 = vmatprep.subr.mxu0 0.0
      %1174 = vmatpush2.msra.mxu0 0.0
      %1175 = vmatprep.subr.mxu0 0.0
      %1176 = vmatpush2.msra.mxu0 0.0
      %1177 = vmatprep.subr.mxu0 0.0
      %1178 = vmatpush2.msra.mxu0 0.0
      %1179 = vmatprep.subr.mxu0 0.0
      %1180 = vmatpush2.msra.mxu0 0.0
      %1181 = vmatprep.subr.mxu0 0.0
      %1182 = vmatpush2.msra.mxu0 0.0
      %1183 = vmatprep.subr.mxu0 0.0
      %1184 = vmatpush2.msra.mxu0 0.0
      %1185 = vmatprep.subr.mxu0 0.0
      %1186 = vmatpush2.msra.mxu0 0.0
      %1187 = vmatprep.subr.mxu0 0.0
      %1188 = vmatpush2.msra.mxu0 0.0
      %1189 = vmatprep.subr.mxu0 0.0
      %1190 = vmatpush2.msra.mxu0 0.0
      %1191 = vmatprep.subr.mxu0 0.0
      %1192 = vmatpush2.msra.mxu0 0.0
      %1193 = vmatprep.subr.mxu0 0.0
      %1194 = vmatpush2.msra.mxu0 0.0
      %1195 = vmatprep.subr.mxu0 0.0
      %1196 = vmatpush2.msra.mxu0 0.0
      %1197 = vmatprep.subr.mxu0 0.0
      %1198 = vmatpush2.msra.mxu0 0.0
      %1199 = vmatprep.mubr.f32.mxu0 0.0
      %1200 = vmatmul.mubr.f32.gmra.mxu0 %v1133
      %v1201 = vpop.f32.mrf.mxu0
      %v1202 = vadd.f32 0.0, %v1201
      %v1203 = vpop.f32.mrf.mxu0
      %1204 = vdwg.mxu0
      %v1206 = vrot.slane %v1202, 3
      %v1208 = vadd.f32 %v712, %v1206
      %v1209 = vtanh.pop %v1208
      %vm1210 = vcmask 259077
      %1211 = vst.msk [vmem:[#allocation2] sm:$0x20] %vm1210, %v1209
      %vm1212 = vcmask 521477
      %1213 = vst.msk [vmem:[#allocation2 + $0x5] sm:$0x20] %vm1212, %v1209
      %v1215 = vrot.slane %v1209, 5
      %v1216 = vsel %vm720, %v1215, 0
      %1218 = vmatprep.subr.mxu0 0.0
      %1219 = vmatpush1.msra.mxu0 0.0
      %1220 = vmatprep.subr.mxu0 0.0
      %1221 = vmatpush1.msra.mxu0 0.0
      %1222 = vmatprep.subr.mxu0 0.0
      %1223 = vmatpush1.msra.mxu0 0.0
      %1224 = vmatprep.subr.mxu0 0.0
      %1225 = vmatpush1.msra.mxu0 0.0
      %1226 = vmatprep.subr.mxu0 0.0
      %1227 = vmatpush1.msra.mxu0 0.0
      %1228 = vmatprep.subr.mxu0 0.0
      %1229 = vmatpush1.msra.mxu0 0.0
      %1230 = vmatprep.subr.mxu0 0.0
      %1231 = vmatpush1.msra.mxu0 0.0
      %1232 = vmatprep.subr.mxu0 0.0
      %1233 = vmatpush1.msra.mxu0 0.0
      %1234 = vmatprep.subr.mxu0 0.0
      %1235 = vmatpush1.msra.mxu0 %v206
      %1236 = vmatprep.subr.mxu0 0.0
      %1237 = vmatpush1.msra.mxu0 %v205
      %1238 = vmatprep.subr.mxu0 0.0
      %1239 = vmatpush1.msra.mxu0 %v204
      %1240 = vmatprep.subr.mxu0 0.0
      %1241 = vmatpush1.msra.mxu0 %v203
      %1242 = vmatprep.subr.mxu0 0.0
      %1243 = vmatpush1.msra.mxu0 %v202
      %1244 = vmatprep.subr.mxu0 0.0
      %1245 = vmatpush1.msra.mxu0 %v201
      %1246 = vmatprep.subr.mxu0 0.0
      %1247 = vmatpush1.msra.mxu0 %v200
      %1248 = vmatprep.subr.mxu0 0.0
      %1249 = vmatpush1.msra.mxu0 %v199
      %1250 = vmatprep.subr.mxu0 0.0
      %1251 = vmatpush2.msra.mxu0 0.0
      %1252 = vmatprep.subr.mxu0 0.0
      %1253 = vmatpush2.msra.mxu0 0.0
      %1254 = vmatprep.subr.mxu0 0.0
      %1255 = vmatpush2.msra.mxu0 0.0
      %1256 = vmatprep.subr.mxu0 0.0
      %1257 = vmatpush2.msra.mxu0 0.0
      %1258 = vmatprep.subr.mxu0 0.0
      %1259 = vmatpush2.msra.mxu0 0.0
      %1260 = vmatprep.subr.mxu0 0.0
      %1261 = vmatpush2.msra.mxu0 0.0
      %1262 = vmatprep.subr.mxu0 0.0
      %1263 = vmatpush2.msra.mxu0 0.0
      %1264 = vmatprep.subr.mxu0 0.0
      %1265 = vmatpush2.msra.mxu0 0.0
      %1266 = vmatprep.subr.mxu0 0.0
      %1267 = vmatpush2.msra.mxu0 0.0
      %1268 = vmatprep.subr.mxu0 0.0
      %1269 = vmatpush2.msra.mxu0 0.0
      %1270 = vmatprep.subr.mxu0 0.0
      %1271 = vmatpush2.msra.mxu0 0.0
      %1272 = vmatprep.subr.mxu0 0.0
      %1273 = vmatpush2.msra.mxu0 0.0
      %1274 = vmatprep.subr.mxu0 0.0
      %1275 = vmatpush2.msra.mxu0 0.0
      %1276 = vmatprep.subr.mxu0 0.0
      %1277 = vmatpush2.msra.mxu0 0.0
      %1278 = vmatprep.subr.mxu0 0.0
      %1279 = vmatpush2.msra.mxu0 0.0
      %1280 = vmatprep.subr.mxu0 0.0
      %1281 = vmatpush2.msra.mxu0 0.0
      %1282 = vmatprep.mubr.f32.mxu0 0.0
      %1283 = vmatmul.mubr.f32.gmra.mxu0 %v1216
      %v1284 = vpop.f32.mrf.mxu0
      %v1285 = vadd.f32 0.0, %v1284
      %v1286 = vpop.f32.mrf.mxu0
      %1287 = vdwg.mxu0
      %v1289 = vrot.slane %v1285, 2
      %v1291 = vadd.f32 %v712, %v1289
      %v1292 = vtanh.pop %v1291
      %vm1293 = vcmask 260102
      %1294 = vst.msk [vmem:[#allocation2] sm:$0x40] %vm1293, %v1292
      %vm1295 = vcmask 522502
      %1296 = vst.msk [vmem:[#allocation2 + $0x3] sm:$0x40] %vm1295, %v1292
      %v1298 = vrot.slane %v1292, 6
      %v1299 = vsel %vm720, %v1298, 0
      %1301 = vmatprep.subr.mxu0 0.0
      %1302 = vmatpush1.msra.mxu0 0.0
      %1303 = vmatprep.subr.mxu0 0.0
      %1304 = vmatpush1.msra.mxu0 0.0
      %1305 = vmatprep.subr.mxu0 0.0
      %1306 = vmatpush1.msra.mxu0 0.0
      %1307 = vmatprep.subr.mxu0 0.0
      %1308 = vmatpush1.msra.mxu0 0.0
      %1309 = vmatprep.subr.mxu0 0.0
      %1310 = vmatpush1.msra.mxu0 0.0
      %1311 = vmatprep.subr.mxu0 0.0
      %1312 = vmatpush1.msra.mxu0 0.0
      %1313 = vmatprep.subr.mxu0 0.0
      %1314 = vmatpush1.msra.mxu0 0.0
      %1315 = vmatprep.subr.mxu0 0.0
      %1316 = vmatpush1.msra.mxu0 0.0
      %1317 = vmatprep.subr.mxu0 0.0
      %1318 = vmatpush1.msra.mxu0 %v206
      %1319 = vmatprep.subr.mxu0 0.0
      %1320 = vmatpush1.msra.mxu0 %v205
      %1321 = vmatprep.subr.mxu0 0.0
      %1322 = vmatpush1.msra.mxu0 %v204
      %1323 = vmatprep.subr.mxu0 0.0
      %1324 = vmatpush1.msra.mxu0 %v203
      %1325 = vmatprep.subr.mxu0 0.0
      %1326 = vmatpush1.msra.mxu0 %v202
      %1327 = vmatprep.subr.mxu0 0.0
      %1328 = vmatpush1.msra.mxu0 %v201
      %1329 = vmatprep.subr.mxu0 0.0
      %1330 = vmatpush1.msra.mxu0 %v200
      %1331 = vmatprep.subr.mxu0 0.0
      %1332 = vmatpush1.msra.mxu0 %v199
      %1333 = vmatprep.subr.mxu0 0.0
      %1334 = vmatpush2.msra.mxu0 0.0
      %1335 = vmatprep.subr.mxu0 0.0
      %1336 = vmatpush2.msra.mxu0 0.0
      %1337 = vmatprep.subr.mxu0 0.0
      %1338 = vmatpush2.msra.mxu0 0.0
      %1339 = vmatprep.subr.mxu0 0.0
      %1340 = vmatpush2.msra.mxu0 0.0
      %1341 = vmatprep.subr.mxu0 0.0
      %1342 = vmatpush2.msra.mxu0 0.0
      %1343 = vmatprep.subr.mxu0 0.0
      %1344 = vmatpush2.msra.mxu0 0.0
      %1345 = vmatprep.subr.mxu0 0.0
      %1346 = vmatpush2.msra.mxu0 0.0
      %1347 = vmatprep.subr.mxu0 0.0
      %1348 = vmatpush2.msra.mxu0 0.0
      %1349 = vmatprep.subr.mxu0 0.0
      %1350 = vmatpush2.msra.mxu0 0.0
      %1351 = vmatprep.subr.mxu0 0.0
      %1352 = vmatpush2.msra.mxu0 0.0
      %1353 = vmatprep.subr.mxu0 0.0
      %1354 = vmatpush2.msra.mxu0 0.0
      %1355 = vmatprep.subr.mxu0 0.0
      %1356 = vmatpush2.msra.mxu0 0.0
      %1357 = vmatprep.subr.mxu0 0.0
      %1358 = vmatpush2.msra.mxu0 0.0
      %1359 = vmatprep.subr.mxu0 0.0
      %1360 = vmatpush2.msra.mxu0 0.0
      %1361 = vmatprep.subr.mxu0 0.0
      %1362 = vmatpush2.msra.mxu0 0.0
      %1363 = vmatprep.subr.mxu0 0.0
      %1364 = vmatpush2.msra.mxu0 0.0
      %1365 = vmatprep.mubr.f32.mxu0 0.0
      %1366 = vmatmul.mubr.f32.gmra.mxu0 %v1299
      %v1367 = vpop.f32.mrf.mxu0
      %v1368 = vadd.f32 0.0, %v1367
      %v1369 = vpop.f32.mrf.mxu0
      %1370 = vdwg.mxu0
      %v1372 = vrot.slane %v1368, 1
      %v1374 = vadd.f32 %v712, %v1372
      %v1375 = vtanh.pop %v1374
      %vm1376 = vcmask 261127
      %1377 = vst.msk [vmem:[#allocation2] sm:$0x80] %vm1376, %v1375
      %vm1378 = vcmask 523527
      %1379 = vst.msk [vmem:[#allocation2 + $0x1] sm:$0x80] %vm1378, %v1375
      %v1381 = vrot.slane %v1375, 7
      %v1382 = vsel %vm720, %v1381, 0
      %1384 = vmatprep.subr.mxu0 0.0
      %1385 = vmatpush1.msra.mxu0 0.0
      %1386 = vmatprep.subr.mxu0 0.0
      %1387 = vmatpush1.msra.mxu0 0.0
      %1388 = vmatprep.subr.mxu0 0.0
      %1389 = vmatpush1.msra.mxu0 0.0
      %1390 = vmatprep.subr.mxu0 0.0
      %1391 = vmatpush1.msra.mxu0 0.0
      %1392 = vmatprep.subr.mxu0 0.0
      %1393 = vmatpush1.msra.mxu0 0.0
      %1394 = vmatprep.subr.mxu0 0.0
      %1395 = vmatpush1.msra.mxu0 0.0
      %1396 = vmatprep.subr.mxu0 0.0
      %1397 = vmatpush1.msra.mxu0 0.0
      %1398 = vmatprep.subr.mxu0 0.0
      %1399 = vmatpush1.msra.mxu0 0.0
      %1400 = vmatprep.subr.mxu0 0.0
      %1401 = vmatpush1.msra.mxu0 %v206
      %1402 = vmatprep.subr.mxu0 0.0
      %1403 = vmatpush1.msra.mxu0 %v205
      %1404 = vmatprep.subr.mxu0 0.0
      %1405 = vmatpush1.msra.mxu0 %v204
      %1406 = vmatprep.subr.mxu0 0.0
      %1407 = vmatpush1.msra.mxu0 %v203
      %1408 = vmatprep.subr.mxu0 0.0
      %1409 = vmatpush1.msra.mxu0 %v202
      %1410 = vmatprep.subr.mxu0 0.0
      %1411 = vmatpush1.msra.mxu0 %v201
      %1412 = vmatprep.subr.mxu0 0.0
      %1413 = vmatpush1.msra.mxu0 %v200
      %1414 = vmatprep.subr.mxu0 0.0
      %1415 = vmatpush1.msra.mxu0 %v199
      %1416 = vmatprep.subr.mxu0 0.0
      %1417 = vmatpush2.msra.mxu0 0.0
      %1418 = vmatprep.subr.mxu0 0.0
      %1419 = vmatpush2.msra.mxu0 0.0
      %1420 = vmatprep.subr.mxu0 0.0
      %1421 = vmatpush2.msra.mxu0 0.0
      %1422 = vmatprep.subr.mxu0 0.0
      %1423 = vmatpush2.msra.mxu0 0.0
      %1424 = vmatprep.subr.mxu0 0.0
      %1425 = vmatpush2.msra.mxu0 0.0
      %1426 = vmatprep.subr.mxu0 0.0
      %1427 = vmatpush2.msra.mxu0 0.0
      %1428 = vmatprep.subr.mxu0 0.0
      %1429 = vmatpush2.msra.mxu0 0.0
      %1430 = vmatprep.subr.mxu0 0.0
      %1431 = vmatpush2.msra.mxu0 0.0
      %1432 = vmatprep.subr.mxu0 0.0
      %1433 = vmatpush2.msra.mxu0 0.0
      %1434 = vmatprep.subr.mxu0 0.0
      %1435 = vmatpush2.msra.mxu0 0.0
      %1436 = vmatprep.subr.mxu0 0.0
      %1437 = vmatpush2.msra.mxu0 0.0
      %1438 = vmatprep.subr.mxu0 0.0
      %1439 = vmatpush2.msra.mxu0 0.0
      %1440 = vmatprep.subr.mxu0 0.0
      %1441 = vmatpush2.msra.mxu0 0.0
      %1442 = vmatprep.subr.mxu0 0.0
      %1443 = vmatpush2.msra.mxu0 0.0
      %1444 = vmatprep.subr.mxu0 0.0
      %1445 = vmatpush2.msra.mxu0 0.0
      %1446 = vmatprep.subr.mxu0 0.0
      %1447 = vmatpush2.msra.mxu0 0.0
      %1448 = vmatprep.mubr.f32.mxu0 0.0
      %1449 = vmatmul.mubr.f32.gmra.mxu0 %v1382
      %v1450 = vpop.f32.mrf.mxu0
      %v1451 = vadd.f32 0.0, %v1450
      %v1452 = vpop.f32.mrf.mxu0
      %1453 = vdwg.mxu0
      %v1454 = vadd.f32 %v717, %v1451
      %v1455 = vtanh.pop %v1454
      %1456 = vst.msk [vmem:[#allocation2 + $0x8] sm:$0x1] %vm796, %v1455
      %1457 = vst.msk [vmem:[#allocation2 + $0x7] sm:$0x1] %vm798, %v1455
      %v1459 = vsel %vm720, %v1455, 0
      %1461 = vmatprep.subr.mxu0 0.0
      %1462 = vmatpush1.msra.mxu0 0.0
      %1463 = vmatprep.subr.mxu0 0.0
      %1464 = vmatpush1.msra.mxu0 0.0
      %1465 = vmatprep.subr.mxu0 0.0
      %1466 = vmatpush1.msra.mxu0 0.0
      %1467 = vmatprep.subr.mxu0 0.0
      %1468 = vmatpush1.msra.mxu0 0.0
      %1469 = vmatprep.subr.mxu0 0.0
      %1470 = vmatpush1.msra.mxu0 0.0
      %1471 = vmatprep.subr.mxu0 0.0
      %1472 = vmatpush1.msra.mxu0 0.0
      %1473 = vmatprep.subr.mxu0 0.0
      %1474 = vmatpush1.msra.mxu0 0.0
      %1475 = vmatprep.subr.mxu0 0.0
      %1476 = vmatpush1.msra.mxu0 0.0
      %1477 = vmatprep.subr.mxu0 0.0
      %1478 = vmatpush1.msra.mxu0 %v206
      %1479 = vmatprep.subr.mxu0 0.0
      %1480 = vmatpush1.msra.mxu0 %v205
      %1481 = vmatprep.subr.mxu0 0.0
      %1482 = vmatpush1.msra.mxu0 %v204
      %1483 = vmatprep.subr.mxu0 0.0
      %1484 = vmatpush1.msra.mxu0 %v203
      %1485 = vmatprep.subr.mxu0 0.0
      %1486 = vmatpush1.msra.mxu0 %v202
      %1487 = vmatprep.subr.mxu0 0.0
      %1488 = vmatpush1.msra.mxu0 %v201
      %1489 = vmatprep.subr.mxu0 0.0
      %1490 = vmatpush1.msra.mxu0 %v200
      %1491 = vmatprep.subr.mxu0 0.0
      %1492 = vmatpush1.msra.mxu0 %v199
      %1493 = vmatprep.subr.mxu0 0.0
      %1494 = vmatpush2.msra.mxu0 0.0
      %1495 = vmatprep.subr.mxu0 0.0
      %1496 = vmatpush2.msra.mxu0 0.0
      %1497 = vmatprep.subr.mxu0 0.0
      %1498 = vmatpush2.msra.mxu0 0.0
      %1499 = vmatprep.subr.mxu0 0.0
      %1500 = vmatpush2.msra.mxu0 0.0
      %1501 = vmatprep.subr.mxu0 0.0
      %1502 = vmatpush2.msra.mxu0 0.0
      %1503 = vmatprep.subr.mxu0 0.0
      %1504 = vmatpush2.msra.mxu0 0.0
      %1505 = vmatprep.subr.mxu0 0.0
      %1506 = vmatpush2.msra.mxu0 0.0
      %1507 = vmatprep.subr.mxu0 0.0
      %1508 = vmatpush2.msra.mxu0 0.0
      %1509 = vmatprep.subr.mxu0 0.0
      %1510 = vmatpush2.msra.mxu0 0.0
      %1511 = vmatprep.subr.mxu0 0.0
      %1512 = vmatpush2.msra.mxu0 0.0
      %1513 = vmatprep.subr.mxu0 0.0
      %1514 = vmatpush2.msra.mxu0 0.0
      %1515 = vmatprep.subr.mxu0 0.0
      %1516 = vmatpush2.msra.mxu0 0.0
      %1517 = vmatprep.subr.mxu0 0.0
      %1518 = vmatpush2.msra.mxu0 0.0
      %1519 = vmatprep.subr.mxu0 0.0
      %1520 = vmatpush2.msra.mxu0 0.0
      %1521 = vmatprep.subr.mxu0 0.0
      %1522 = vmatpush2.msra.mxu0 0.0
      %1523 = vmatprep.subr.mxu0 0.0
      %1524 = vmatpush2.msra.mxu0 0.0
      %1525 = vmatprep.mubr.f32.mxu0 0.0
      %1526 = vmatmul.mubr.f32.gmra.mxu0 %v1459
      %v1527 = vpop.f32.mrf.mxu0
      %v1528 = vadd.f32 0.0, %v1527
      %v1529 = vpop.f32.mrf.mxu0
      %1530 = vdwg.mxu0
      %v1532 = vrot.slane %v1528, 7
      %v1534 = vadd.f32 %v717, %v1532
      %v1535 = vtanh.pop %v1534
      %1536 = vst.msk [vmem:[#allocation2 + $0x8] sm:$0x2] %vm878, %v1535
      %1537 = vst.msk [vmem:[#allocation2 + $0x5] sm:$0x2] %vm880, %v1535
      %v1539 = vrot.slane %v1535, 1
      %v1540 = vsel %vm720, %v1539, 0
      %1542 = vmatprep.subr.mxu0 0.0
      %1543 = vmatpush1.msra.mxu0 0.0
      %1544 = vmatprep.subr.mxu0 0.0
      %1545 = vmatpush1.msra.mxu0 0.0
      %1546 = vmatprep.subr.mxu0 0.0
      %1547 = vmatpush1.msra.mxu0 0.0
      %1548 = vmatprep.subr.mxu0 0.0
      %1549 = vmatpush1.msra.mxu0 0.0
      %1550 = vmatprep.subr.mxu0 0.0
      %1551 = vmatpush1.msra.mxu0 0.0
      %1552 = vmatprep.subr.mxu0 0.0
      %1553 = vmatpush1.msra.mxu0 0.0
      %1554 = vmatprep.subr.mxu0 0.0
      %1555 = vmatpush1.msra.mxu0 0.0
      %1556 = vmatprep.subr.mxu0 0.0
      %1557 = vmatpush1.msra.mxu0 0.0
      %1558 = vmatprep.subr.mxu0 0.0
      %1559 = vmatpush1.msra.mxu0 %v206
      %1560 = vmatprep.subr.mxu0 0.0
      %1561 = vmatpush1.msra.mxu0 %v205
      %1562 = vmatprep.subr.mxu0 0.0
      %1563 = vmatpush1.msra.mxu0 %v204
      %1564 = vmatprep.subr.mxu0 0.0
      %1565 = vmatpush1.msra.mxu0 %v203
      %1566 = vmatprep.subr.mxu0 0.0
      %1567 = vmatpush1.msra.mxu0 %v202
      %1568 = vmatprep.subr.mxu0 0.0
      %1569 = vmatpush1.msra.mxu0 %v201
      %1570 = vmatprep.subr.mxu0 0.0
      %1571 = vmatpush1.msra.mxu0 %v200
      %1572 = vmatprep.subr.mxu0 0.0
      %1573 = vmatpush1.msra.mxu0 %v199
      %1574 = vmatprep.subr.mxu0 0.0
      %1575 = vmatpush2.msra.mxu0 0.0
      %1576 = vmatprep.subr.mxu0 0.0
      %1577 = vmatpush2.msra.mxu0 0.0
      %1578 = vmatprep.subr.mxu0 0.0
      %1579 = vmatpush2.msra.mxu0 0.0
      %1580 = vmatprep.subr.mxu0 0.0
      %1581 = vmatpush2.msra.mxu0 0.0
      %1582 = vmatprep.subr.mxu0 0.0
      %1583 = vmatpush2.msra.mxu0 0.0
      %1584 = vmatprep.subr.mxu0 0.0
      %1585 = vmatpush2.msra.mxu0 0.0
      %1586 = vmatprep.subr.mxu0 0.0
      %1587 = vmatpush2.msra.mxu0 0.0
      %1588 = vmatprep.subr.mxu0 0.0
      %1589 = vmatpush2.msra.mxu0 0.0
      %1590 = vmatprep.subr.mxu0 0.0
      %1591 = vmatpush2.msra.mxu0 0.0
      %1592 = vmatprep.subr.mxu0 0.0
      %1593 = vmatpush2.msra.mxu0 0.0
      %1594 = vmatprep.subr.mxu0 0.0
      %1595 = vmatpush2.msra.mxu0 0.0
      %1596 = vmatprep.subr.mxu0 0.0
      %1597 = vmatpush2.msra.mxu0 0.0
      %1598 = vmatprep.subr.mxu0 0.0
      %1599 = vmatpush2.msra.mxu0 0.0
      %1600 = vmatprep.subr.mxu0 0.0
      %1601 = vmatpush2.msra.mxu0 0.0
      %1602 = vmatprep.subr.mxu0 0.0
      %1603 = vmatpush2.msra.mxu0 0.0
      %1604 = vmatprep.subr.mxu0 0.0
      %1605 = vmatpush2.msra.mxu0 0.0
      %1606 = vmatprep.mubr.f32.mxu0 0.0
      %1607 = vmatmul.mubr.f32.gmra.mxu0 %v1540
      %v1608 = vpop.f32.mrf.mxu0
      %v1609 = vadd.f32 0.0, %v1608
      %v1610 = vpop.f32.mrf.mxu0
      %1611 = vdwg.mxu0
      %v1613 = vrot.slane %v1609, 6
      %v1615 = vadd.f32 %v717, %v1613
      %v1616 = vtanh.pop %v1615
      %1617 = vst.msk [vmem:[#allocation2 + $0x8] sm:$0x4] %vm961, %v1616
      %1618 = vst.msk [vmem:[#allocation2 + $0x3] sm:$0x4] %vm963, %v1616
      %v1620 = vrot.slane %v1616, 2
      %v1621 = vsel %vm720, %v1620, 0
      %1623 = vmatprep.subr.mxu0 0.0
      %1624 = vmatpush1.msra.mxu0 0.0
      %1625 = vmatprep.subr.mxu0 0.0
      %1626 = vmatpush1.msra.mxu0 0.0
      %1627 = vmatprep.subr.mxu0 0.0
      %1628 = vmatpush1.msra.mxu0 0.0
      %1629 = vmatprep.subr.mxu0 0.0
      %1630 = vmatpush1.msra.mxu0 0.0
      %1631 = vmatprep.subr.mxu0 0.0
      %1632 = vmatpush1.msra.mxu0 0.0
      %1633 = vmatprep.subr.mxu0 0.0
      %1634 = vmatpush1.msra.mxu0 0.0
      %1635 = vmatprep.subr.mxu0 0.0
      %1636 = vmatpush1.msra.mxu0 0.0
      %1637 = vmatprep.subr.mxu0 0.0
      %1638 = vmatpush1.msra.mxu0 0.0
      %1639 = vmatprep.subr.mxu0 0.0
      %1640 = vmatpush1.msra.mxu0 %v206
      %1641 = vmatprep.subr.mxu0 0.0
      %1642 = vmatpush1.msra.mxu0 %v205
      %1643 = vmatprep.subr.mxu0 0.0
      %1644 = vmatpush1.msra.mxu0 %v204
      %1645 = vmatprep.subr.mxu0 0.0
      %1646 = vmatpush1.msra.mxu0 %v203
      %1647 = vmatprep.subr.mxu0 0.0
      %1648 = vmatpush1.msra.mxu0 %v202
      %1649 = vmatprep.subr.mxu0 0.0
      %1650 = vmatpush1.msra.mxu0 %v201
      %1651 = vmatprep.subr.mxu0 0.0
      %1652 = vmatpush1.msra.mxu0 %v200
      %1653 = vmatprep.subr.mxu0 0.0
      %1654 = vmatpush1.msra.mxu0 %v199
      %1655 = vmatprep.subr.mxu0 0.0
      %1656 = vmatpush2.msra.mxu0 0.0
      %1657 = vmatprep.subr.mxu0 0.0
      %1658 = vmatpush2.msra.mxu0 0.0
      %1659 = vmatprep.subr.mxu0 0.0
      %1660 = vmatpush2.msra.mxu0 0.0
      %1661 = vmatprep.subr.mxu0 0.0
      %1662 = vmatpush2.msra.mxu0 0.0
      %1663 = vmatprep.subr.mxu0 0.0
      %1664 = vmatpush2.msra.mxu0 0.0
      %1665 = vmatprep.subr.mxu0 0.0
      %1666 = vmatpush2.msra.mxu0 0.0
      %1667 = vmatprep.subr.mxu0 0.0
      %1668 = vmatpush2.msra.mxu0 0.0
      %1669 = vmatprep.subr.mxu0 0.0
      %1670 = vmatpush2.msra.mxu0 0.0
      %1671 = vmatprep.subr.mxu0 0.0
      %1672 = vmatpush2.msra.mxu0 0.0
      %1673 = vmatprep.subr.mxu0 0.0
      %1674 = vmatpush2.msra.mxu0 0.0
      %1675 = vmatprep.subr.mxu0 0.0
      %1676 = vmatpush2.msra.mxu0 0.0
      %1677 = vmatprep.subr.mxu0 0.0
      %1678 = vmatpush2.msra.mxu0 0.0
      %1679 = vmatprep.subr.mxu0 0.0
      %1680 = vmatpush2.msra.mxu0 0.0
      %1681 = vmatprep.subr.mxu0 0.0
      %1682 = vmatpush2.msra.mxu0 0.0
      %1683 = vmatprep.subr.mxu0 0.0
      %1684 = vmatpush2.msra.mxu0 0.0
      %1685 = vmatprep.subr.mxu0 0.0
      %1686 = vmatpush2.msra.mxu0 0.0
      %1687 = vmatprep.mubr.f32.mxu0 0.0
      %1688 = vmatmul.mubr.f32.gmra.mxu0 %v1621
      %v1689 = vpop.f32.mrf.mxu0
      %v1690 = vadd.f32 0.0, %v1689
      %v1691 = vpop.f32.mrf.mxu0
      %1692 = vdwg.mxu0
      %v1694 = vrot.slane %v1690, 5
      %v1696 = vadd.f32 %v717, %v1694
      %v1697 = vtanh.pop %v1696
      %1698 = vst.msk [vmem:[#allocation2 + $0x8] sm:$0x8] %vm1044, %v1697
      %1699 = vst.msk [vmem:[#allocation2 + $0x1] sm:$0x8] %vm1046, %v1697
      %v1701 = vrot.slane %v1697, 3
      %v1702 = vsel %vm720, %v1701, 0
      %1704 = vmatprep.subr.mxu0 0.0
      %1705 = vmatpush1.msra.mxu0 0.0
      %1706 = vmatprep.subr.mxu0 0.0
      %1707 = vmatpush1.msra.mxu0 0.0
      %1708 = vmatprep.subr.mxu0 0.0
      %1709 = vmatpush1.msra.mxu0 0.0
      %1710 = vmatprep.subr.mxu0 0.0
      %1711 = vmatpush1.msra.mxu0 0.0
      %1712 = vmatprep.subr.mxu0 0.0
      %1713 = vmatpush1.msra.mxu0 0.0
      %1714 = vmatprep.subr.mxu0 0.0
      %1715 = vmatpush1.msra.mxu0 0.0
      %1716 = vmatprep.subr.mxu0 0.0
      %1717 = vmatpush1.msra.mxu0 0.0
      %1718 = vmatprep.subr.mxu0 0.0
      %1719 = vmatpush1.msra.mxu0 0.0
      %1720 = vmatprep.subr.mxu0 0.0
      %1721 = vmatpush1.msra.mxu0 %v206
      %1722 = vmatprep.subr.mxu0 0.0
      %1723 = vmatpush1.msra.mxu0 %v205
      %1724 = vmatprep.subr.mxu0 0.0
      %1725 = vmatpush1.msra.mxu0 %v204
      %1726 = vmatprep.subr.mxu0 0.0
      %1727 = vmatpush1.msra.mxu0 %v203
      %1728 = vmatprep.subr.mxu0 0.0
      %1729 = vmatpush1.msra.mxu0 %v202
      %1730 = vmatprep.subr.mxu0 0.0
      %1731 = vmatpush1.msra.mxu0 %v201
      %1732 = vmatprep.subr.mxu0 0.0
      %1733 = vmatpush1.msra.mxu0 %v200
      %1734 = vmatprep.subr.mxu0 0.0
      %1735 = vmatpush1.msra.mxu0 %v199
      %1736 = vmatprep.subr.mxu0 0.0
      %1737 = vmatpush2.msra.mxu0 0.0
      %1738 = vmatprep.subr.mxu0 0.0
      %1739 = vmatpush2.msra.mxu0 0.0
      %1740 = vmatprep.subr.mxu0 0.0
      %1741 = vmatpush2.msra.mxu0 0.0
      %1742 = vmatprep.subr.mxu0 0.0
      %1743 = vmatpush2.msra.mxu0 0.0
      %1744 = vmatprep.subr.mxu0 0.0
      %1745 = vmatpush2.msra.mxu0 0.0
      %1746 = vmatprep.subr.mxu0 0.0
      %1747 = vmatpush2.msra.mxu0 0.0
      %1748 = vmatprep.subr.mxu0 0.0
      %1749 = vmatpush2.msra.mxu0 0.0
      %1750 = vmatprep.subr.mxu0 0.0
      %1751 = vmatpush2.msra.mxu0 0.0
      %1752 = vmatprep.subr.mxu0 0.0
      %1753 = vmatpush2.msra.mxu0 0.0
      %1754 = vmatprep.subr.mxu0 0.0
      %1755 = vmatpush2.msra.mxu0 0.0
      %1756 = vmatprep.subr.mxu0 0.0
      %1757 = vmatpush2.msra.mxu0 0.0
      %1758 = vmatprep.subr.mxu0 0.0
      %1759 = vmatpush2.msra.mxu0 0.0
      %1760 = vmatprep.subr.mxu0 0.0
      %1761 = vmatpush2.msra.mxu0 0.0
      %1762 = vmatprep.subr.mxu0 0.0
      %1763 = vmatpush2.msra.mxu0 0.0
      %1764 = vmatprep.subr.mxu0 0.0
      %1765 = vmatpush2.msra.mxu0 0.0
      %1766 = vmatprep.subr.mxu0 0.0
      %1767 = vmatpush2.msra.mxu0 0.0
      %1768 = vmatprep.mubr.f32.mxu0 0.0
      %1769 = vmatmul.mubr.f32.gmra.mxu0 %v1702
      %v1770 = vpop.f32.mrf.mxu0
      %v1771 = vadd.f32 0.0, %v1770
      %v1772 = vpop.f32.mrf.mxu0
      %1773 = vdwg.mxu0
      %v1775 = vrot.slane %v1771, 4
      %v1777 = vadd.f32 %v717, %v1775
      %v1778 = vtanh.pop %v1777
      %1779 = vst.msk [vmem:[#allocation2 + $0x8] sm:$0x10] %vm1127, %v1778
      %1780 = vst.msk [vmem:[#allocation2 - $0x1] sm:$0x10] %vm1129, %v1778
      %v1782 = vrot.slane %v1778, 4
      %v1783 = vsel %vm720, %v1782, 0
      %1785 = vmatprep.subr.mxu0 0.0
      %1786 = vmatpush1.msra.mxu0 0.0
      %1787 = vmatprep.subr.mxu0 0.0
      %1788 = vmatpush1.msra.mxu0 0.0
      %1789 = vmatprep.subr.mxu0 0.0
      %1790 = vmatpush1.msra.mxu0 0.0
      %1791 = vmatprep.subr.mxu0 0.0
      %1792 = vmatpush1.msra.mxu0 0.0
      %1793 = vmatprep.subr.mxu0 0.0
      %1794 = vmatpush1.msra.mxu0 0.0
      %1795 = vmatprep.subr.mxu0 0.0
      %1796 = vmatpush1.msra.mxu0 0.0
      %1797 = vmatprep.subr.mxu0 0.0
      %1798 = vmatpush1.msra.mxu0 0.0
      %1799 = vmatprep.subr.mxu0 0.0
      %1800 = vmatpush1.msra.mxu0 0.0
      %1801 = vmatprep.subr.mxu0 0.0
      %1802 = vmatpush1.msra.mxu0 %v206
      %1803 = vmatprep.subr.mxu0 0.0
      %1804 = vmatpush1.msra.mxu0 %v205
      %1805 = vmatprep.subr.mxu0 0.0
      %1806 = vmatpush1.msra.mxu0 %v204
      %1807 = vmatprep.subr.mxu0 0.0
      %1808 = vmatpush1.msra.mxu0 %v203
      %1809 = vmatprep.subr.mxu0 0.0
      %1810 = vmatpush1.msra.mxu0 %v202
      %1811 = vmatprep.subr.mxu0 0.0
      %1812 = vmatpush1.msra.mxu0 %v201
      %1813 = vmatprep.subr.mxu0 0.0
      %1814 = vmatpush1.msra.mxu0 %v200
      %1815 = vmatprep.subr.mxu0 0.0
      %1816 = vmatpush1.msra.mxu0 %v199
      %1817 = vmatprep.subr.mxu0 0.0
      %1818 = vmatpush2.msra.mxu0 0.0
      %1819 = vmatprep.subr.mxu0 0.0
      %1820 = vmatpush2.msra.mxu0 0.0
      %1821 = vmatprep.subr.mxu0 0.0
      %1822 = vmatpush2.msra.mxu0 0.0
      %1823 = vmatprep.subr.mxu0 0.0
      %1824 = vmatpush2.msra.mxu0 0.0
      %1825 = vmatprep.subr.mxu0 0.0
      %1826 = vmatpush2.msra.mxu0 0.0
      %1827 = vmatprep.subr.mxu0 0.0
      %1828 = vmatpush2.msra.mxu0 0.0
      %1829 = vmatprep.subr.mxu0 0.0
      %1830 = vmatpush2.msra.mxu0 0.0
      %1831 = vmatprep.subr.mxu0 0.0
      %1832 = vmatpush2.msra.mxu0 0.0
      %1833 = vmatprep.subr.mxu0 0.0
      %1834 = vmatpush2.msra.mxu0 0.0
      %1835 = vmatprep.subr.mxu0 0.0
      %1836 = vmatpush2.msra.mxu0 0.0
      %1837 = vmatprep.subr.mxu0 0.0
      %1838 = vmatpush2.msra.mxu0 0.0
      %1839 = vmatprep.subr.mxu0 0.0
      %1840 = vmatpush2.msra.mxu0 0.0
      %1841 = vmatprep.subr.mxu0 0.0
      %1842 = vmatpush2.msra.mxu0 0.0
      %1843 = vmatprep.subr.mxu0 0.0
      %1844 = vmatpush2.msra.mxu0 0.0
      %1845 = vmatprep.subr.mxu0 0.0
      %1846 = vmatpush2.msra.mxu0 0.0
      %1847 = vmatprep.subr.mxu0 0.0
      %1848 = vmatpush2.msra.mxu0 0.0
      %1849 = vmatprep.mubr.f32.mxu0 0.0
      %1850 = vmatmul.mubr.f32.gmra.mxu0 %v1783
      %v1851 = vpop.f32.mrf.mxu0
      %v1852 = vadd.f32 0.0, %v1851
      %v1853 = vpop.f32.mrf.mxu0
      %1854 = vdwg.mxu0
      %v1856 = vrot.slane %v1852, 3
      %v1858 = vadd.f32 %v717, %v1856
      %v1859 = vtanh.pop %v1858
      %1860 = vst.msk [vmem:[#allocation2 + $0x8] sm:$0x20] %vm1210, %v1859
      %1861 = vst.msk [vmem:[#allocation2 - $0x3] sm:$0x20] %vm1212, %v1859
      %v1863 = vrot.slane %v1859, 5
      %v1864 = vsel %vm720, %v1863, 0
      %1866 = vmatprep.subr.mxu0 0.0
      %1867 = vmatpush1.msra.mxu0 0.0
      %1868 = vmatprep.subr.mxu0 0.0
      %1869 = vmatpush1.msra.mxu0 0.0
      %1870 = vmatprep.subr.mxu0 0.0
      %1871 = vmatpush1.msra.mxu0 0.0
      %1872 = vmatprep.subr.mxu0 0.0
      %1873 = vmatpush1.msra.mxu0 0.0
      %1874 = vmatprep.subr.mxu0 0.0
      %1875 = vmatpush1.msra.mxu0 0.0
      %1876 = vmatprep.subr.mxu0 0.0
      %1877 = vmatpush1.msra.mxu0 0.0
      %1878 = vmatprep.subr.mxu0 0.0
      %1879 = vmatpush1.msra.mxu0 0.0
      %1880 = vmatprep.subr.mxu0 0.0
      %1881 = vmatpush1.msra.mxu0 0.0
      %1882 = vmatprep.subr.mxu0 0.0
      %1883 = vmatpush1.msra.mxu0 %v206
      %1884 = vmatprep.subr.mxu0 0.0
      %1885 = vmatpush1.msra.mxu0 %v205
      %1886 = vmatprep.subr.mxu0 0.0
      %1887 = vmatpush1.msra.mxu0 %v204
      %1888 = vmatprep.subr.mxu0 0.0
      %1889 = vmatpush1.msra.mxu0 %v203
      %1890 = vmatprep.subr.mxu0 0.0
      %1891 = vmatpush1.msra.mxu0 %v202
      %1892 = vmatprep.subr.mxu0 0.0
      %1893 = vmatpush1.msra.mxu0 %v201
      %1894 = vmatprep.subr.mxu0 0.0
      %1895 = vmatpush1.msra.mxu0 %v200
      %1896 = vmatprep.subr.mxu0 0.0
      %1897 = vmatpush1.msra.mxu0 %v199
      %1898 = vmatprep.subr.mxu0 0.0
      %1899 = vmatpush2.msra.mxu0 0.0
      %1900 = vmatprep.subr.mxu0 0.0
      %1901 = vmatpush2.msra.mxu0 0.0
      %1902 = vmatprep.subr.mxu0 0.0
      %1903 = vmatpush2.msra.mxu0 0.0
      %1904 = vmatprep.subr.mxu0 0.0
      %1905 = vmatpush2.msra.mxu0 0.0
      %1906 = vmatprep.subr.mxu0 0.0
      %1907 = vmatpush2.msra.mxu0 0.0
      %1908 = vmatprep.subr.mxu0 0.0
      %1909 = vmatpush2.msra.mxu0 0.0
      %1910 = vmatprep.subr.mxu0 0.0
      %1911 = vmatpush2.msra.mxu0 0.0
      %1912 = vmatprep.subr.mxu0 0.0
      %1913 = vmatpush2.msra.mxu0 0.0
      %1914 = vmatprep.subr.mxu0 0.0
      %1915 = vmatpush2.msra.mxu0 0.0
      %1916 = vmatprep.subr.mxu0 0.0
      %1917 = vmatpush2.msra.mxu0 0.0
      %1918 = vmatprep.subr.mxu0 0.0
      %1919 = vmatpush2.msra.mxu0 0.0
      %1920 = vmatprep.subr.mxu0 0.0
      %1921 = vmatpush2.msra.mxu0 0.0
      %1922 = vmatprep.subr.mxu0 0.0
      %1923 = vmatpush2.msra.mxu0 0.0
      %1924 = vmatprep.subr.mxu0 0.0
      %1925 = vmatpush2.msra.mxu0 0.0
      %1926 = vmatprep.subr.mxu0 0.0
      %1927 = vmatpush2.msra.mxu0 0.0
      %1928 = vmatprep.subr.mxu0 0.0
      %1929 = vmatpush2.msra.mxu0 0.0
      %1930 = vmatprep.mubr.f32.mxu0 0.0
      %1931 = vmatmul.mubr.f32.gmra.mxu0 %v1864
      %v1932 = vpop.f32.mrf.mxu0
      %v1933 = vadd.f32 0.0, %v1932
      %v1934 = vpop.f32.mrf.mxu0
      %1935 = vdwg.mxu0
      %v1937 = vrot.slane %v1933, 2
      %v1939 = vadd.f32 %v717, %v1937
      %v1940 = vtanh.pop %v1939
      %1941 = vst.msk [vmem:[#allocation2 + $0x8] sm:$0x40] %vm1293, %v1940
      %1942 = vst.msk [vmem:[#allocation2 - $0x5] sm:$0x40] %vm1295, %v1940
      %v1944 = vrot.slane %v1940, 6
      %v1945 = vsel %vm720, %v1944, 0
      %1947 = vmatprep.subr.mxu0 0.0
      %1948 = vmatpush1.msra.mxu0 0.0
      %1949 = vmatprep.subr.mxu0 0.0
      %1950 = vmatpush1.msra.mxu0 0.0
      %1951 = vmatprep.subr.mxu0 0.0
      %1952 = vmatpush1.msra.mxu0 0.0
      %1953 = vmatprep.subr.mxu0 0.0
      %1954 = vmatpush1.msra.mxu0 0.0
      %1955 = vmatprep.subr.mxu0 0.0
      %1956 = vmatpush1.msra.mxu0 0.0
      %1957 = vmatprep.subr.mxu0 0.0
      %1958 = vmatpush1.msra.mxu0 0.0
      %1959 = vmatprep.subr.mxu0 0.0
      %1960 = vmatpush1.msra.mxu0 0.0
      %1961 = vmatprep.subr.mxu0 0.0
      %1962 = vmatpush1.msra.mxu0 0.0
      %1963 = vmatprep.subr.mxu0 0.0
      %1964 = vmatpush1.msra.mxu0 %v206
      %1965 = vmatprep.subr.mxu0 0.0
      %1966 = vmatpush1.msra.mxu0 %v205
      %1967 = vmatprep.subr.mxu0 0.0
      %1968 = vmatpush1.msra.mxu0 %v204
      %1969 = vmatprep.subr.mxu0 0.0
      %1970 = vmatpush1.msra.mxu0 %v203
      %1971 = vmatprep.subr.mxu0 0.0
      %1972 = vmatpush1.msra.mxu0 %v202
      %1973 = vmatprep.subr.mxu0 0.0
      %1974 = vmatpush1.msra.mxu0 %v201
      %1975 = vmatprep.subr.mxu0 0.0
      %1976 = vmatpush1.msra.mxu0 %v200
      %1977 = vmatprep.subr.mxu0 0.0
      %1978 = vmatpush1.msra.mxu0 %v199
      %1979 = vmatprep.subr.mxu0 0.0
      %1980 = vmatpush2.msra.mxu0 0.0
      %1981 = vmatprep.subr.mxu0 0.0
      %1982 = vmatpush2.msra.mxu0 0.0
      %1983 = vmatprep.subr.mxu0 0.0
      %1984 = vmatpush2.msra.mxu0 0.0
      %1985 = vmatprep.subr.mxu0 0.0
      %1986 = vmatpush2.msra.mxu0 0.0
      %1987 = vmatprep.subr.mxu0 0.0
      %1988 = vmatpush2.msra.mxu0 0.0
      %1989 = vmatprep.subr.mxu0 0.0
      %1990 = vmatpush2.msra.mxu0 0.0
      %1991 = vmatprep.subr.mxu0 0.0
      %1992 = vmatpush2.msra.mxu0 0.0
      %1993 = vmatprep.subr.mxu0 0.0
      %1994 = vmatpush2.msra.mxu0 0.0
      %1995 = vmatprep.subr.mxu0 0.0
      %1996 = vmatpush2.msra.mxu0 0.0
      %1997 = vmatprep.subr.mxu0 0.0
      %1998 = vmatpush2.msra.mxu0 0.0
      %1999 = vmatprep.subr.mxu0 0.0
      %2000 = vmatpush2.msra.mxu0 0.0
      %2001 = vmatprep.subr.mxu0 0.0
      %2002 = vmatpush2.msra.mxu0 0.0
      %2003 = vmatprep.subr.mxu0 0.0
      %2004 = vmatpush2.msra.mxu0 0.0
      %2005 = vmatprep.subr.mxu0 0.0
      %2006 = vmatpush2.msra.mxu0 0.0
      %2007 = vmatprep.subr.mxu0 0.0
      %2008 = vmatpush2.msra.mxu0 0.0
      %2009 = vmatprep.subr.mxu0 0.0
      %2010 = vmatpush2.msra.mxu0 0.0
      %2011 = vmatprep.mubr.f32.mxu0 0.0
      %2012 = vmatmul.mubr.f32.gmra.mxu0 %v1945
      %v2013 = vpop.f32.mrf.mxu0
      %v2014 = vadd.f32 0.0, %v2013
      %v2015 = vpop.f32.mrf.mxu0
      %2016 = vdwg.mxu0
      %v2018 = vrot.slane %v2014, 1
      %v2020 = vadd.f32 %v717, %v2018
      %v2021 = vtanh.pop %v2020
      %2022 = vst.msk [vmem:[#allocation2 + $0x8] sm:$0x80] %vm1376, %v2021
      %2023 = vst.msk [vmem:[#allocation2 - $0x7] sm:$0x80] %vm1378, %v2021
      %v2024 = vld [vmem:[#allocation2] sm:$0xff]
      %v2025 = vld [vmem:[#allocation2 + $0x8] sm:$0xff]
      %v2026 = vlaneseq
      %v2027 = vshrl.u32 %v2026, 7
      %v2028 = vsub.s32 0, %v2027
      %v2029 = vrot.slane %v192, %v2028
      %v2031 = vsel %vm720, %v2024, 0
      %v2034 = vsel %vm720, %v2025, 0
      %2036 = vmatprep.subr.mxu0 0.0
      %2037 = vmatpush1.msra.mxu0 0.0
      %2038 = vmatprep.subr.mxu0 0.0
      %2039 = vmatpush1.msra.mxu0 0.0
      %2040 = vmatprep.subr.mxu0 0.0
      %2041 = vmatpush1.msra.mxu0 0.0
      %2042 = vmatprep.subr.mxu0 0.0
      %2043 = vmatpush1.msra.mxu0 0.0
      %2044 = vmatprep.subr.mxu0 0.0
      %2045 = vmatpush1.msra.mxu0 0.0
      %2046 = vmatprep.subr.mxu0 0.0
      %2047 = vmatpush1.msra.mxu0 0.0
      %2048 = vmatprep.subr.mxu0 0.0
      %2049 = vmatpush1.msra.mxu0 0.0
      %2050 = vmatprep.subr.mxu0 0.0
      %2051 = vmatpush1.msra.mxu0 0.0
      %2052 = vmatprep.subr.mxu0 0.0
      %2053 = vmatpush1.msra.mxu0 %v214
      %2054 = vmatprep.subr.mxu0 0.0
      %2055 = vmatpush1.msra.mxu0 %v213
      %2056 = vmatprep.subr.mxu0 0.0
      %2057 = vmatpush1.msra.mxu0 %v212
      %2058 = vmatprep.subr.mxu0 0.0
      %2059 = vmatpush1.msra.mxu0 %v211
      %2060 = vmatprep.subr.mxu0 0.0
      %2061 = vmatpush1.msra.mxu0 %v210
      %2062 = vmatprep.subr.mxu0 0.0
      %2063 = vmatpush1.msra.mxu0 %v209
      %2064 = vmatprep.subr.mxu0 0.0
      %2065 = vmatpush1.msra.mxu0 %v208
      %2066 = vmatprep.subr.mxu0 0.0
      %2067 = vmatpush1.msra.mxu0 %v207
      %2068 = vmatprep.subr.mxu0 0.0
      %2069 = vmatpush2.msra.mxu0 0.0
      %2070 = vmatprep.subr.mxu0 0.0
      %2071 = vmatpush2.msra.mxu0 0.0
      %2072 = vmatprep.subr.mxu0 0.0
      %2073 = vmatpush2.msra.mxu0 0.0
      %2074 = vmatprep.subr.mxu0 0.0
      %2075 = vmatpush2.msra.mxu0 0.0
      %2076 = vmatprep.subr.mxu0 0.0
      %2077 = vmatpush2.msra.mxu0 0.0
      %2078 = vmatprep.subr.mxu0 0.0
      %2079 = vmatpush2.msra.mxu0 0.0
      %2080 = vmatprep.subr.mxu0 0.0
      %2081 = vmatpush2.msra.mxu0 0.0
      %2082 = vmatprep.subr.mxu0 0.0
      %2083 = vmatpush2.msra.mxu0 0.0
      %2084 = vmatprep.subr.mxu0 0.0
      %2085 = vmatpush2.msra.mxu0 0.0
      %2086 = vmatprep.subr.mxu0 0.0
      %2087 = vmatpush2.msra.mxu0 0.0
      %2088 = vmatprep.subr.mxu0 0.0
      %2089 = vmatpush2.msra.mxu0 0.0
      %2090 = vmatprep.subr.mxu0 0.0
      %2091 = vmatpush2.msra.mxu0 0.0
      %2092 = vmatprep.subr.mxu0 0.0
      %2093 = vmatpush2.msra.mxu0 0.0
      %2094 = vmatprep.subr.mxu0 0.0
      %2095 = vmatpush2.msra.mxu0 0.0
      %2096 = vmatprep.subr.mxu0 0.0
      %2097 = vmatpush2.msra.mxu0 0.0
      %2098 = vmatprep.subr.mxu0 0.0
      %2099 = vmatpush2.msra.mxu0 0.0
      %2100 = vmatprep.mubr.f32.mxu0 0.0
      %2101 = vmatmul.mubr.f32.gmra.mxu0 %v2031
      %v2102 = vpop.f32.mrf.mxu0
      %v2103 = vadd.f32 %v2029, %v2102
      %v2104 = vpop.f32.mrf.mxu0
      %2105 = vmatprep.mubr.f32.mxu0 0.0
      %2106 = vmatmul.mubr.f32.gmra.mxu0 %v2034
      %v2107 = vpop.f32.mrf.mxu0
      %v2108 = vadd.f32 %v2029, %v2107
      %v2109 = vpop.f32.mrf.mxu0
      %2110 = vdwg.mxu0
      %v2111 = vsel %vm472, %v2103, -inf
      %2112 = vmax.xlane.f32.xlu0 %v2111
      %v2113 = vpop.xlane.xlu0 %2112
      %v2114 = vsel %vm472, %v2108, -inf
      %2115 = vmax.xlane.f32.xlu0 %v2114
      %v2116 = vpop.xlane.xlu0 %2115
      %v2117 = vsub.f32 %v2103, %v2113
      %v2118 = vsub.f32 %v2108, %v2116
      %v2119 = vmul.f32 %v2117, 1.442695
      %v2120 = vpow.pop %v2119
      %v2121 = vmul.f32 %v2118, 1.442695
      %v2122 = vpow.pop %v2121
      %v2123 = vsel %vm472, %v2120, 0.0
      %2124 = vadd.xlane.f32.xlu0 %v2123
      %v2125 = vpop.xlane.xlu0 %2124
      %v2126 = vsel %vm472, %v2122, 0.0
      %2127 = vadd.xlane.f32.xlu0 %v2126
      %v2128 = vpop.xlane.xlu0 %2127
      %v2129 = vrcp.pop %v2125
      %v2130 = vrcp.pop %v2128
      %v2131 = vmul.f32 %v2120, %v2129
      %v2132 = vmul.f32 %v2122, %v2130
      %vm2133 = vcmask 228448
      %v2134 = vsel %vm2133, %v2103, -inf
      %2135 = vmax.xlane.f32.xlu0 %v2134
      %v2136 = vpop.xlane.xlu0 %2135
      %v2137 = vsel %vm2133, %v2108, -inf
      %2138 = vmax.xlane.f32.xlu0 %v2137
      %v2139 = vpop.xlane.xlu0 %2138
      %v2140 = vsub.f32 %v2103, %v2136
      %v2141 = vsub.f32 %v2108, %v2139
      %v2142 = vmul.f32 %v2140, 1.442695
      %v2143 = vpow.pop %v2142
      %v2144 = vmul.f32 %v2141, 1.442695
      %v2145 = vpow.pop %v2144
      %2148 = vrot.lane.b32.xlu0 %v2143, 116
      %v2149 = vpop.permute.xlu0 %2148
      %2150 = vrot.lane.b32.xlu0 %v2145, 116
      %v2151 = vpop.permute.xlu0 %2150
      %v2154 = vsel %vm550, %v2149, 0.0
      %2155 = vadd.xlane.f32.xlu0 %v2154
      %v2156 = vpop.xlane.xlu0 %2155
      %v2157 = vsel %vm550, %v2151, 0.0
      %2158 = vadd.xlane.f32.xlu0 %v2157
      %v2159 = vpop.xlane.xlu0 %2158
      %v2160 = vrcp.pop %v2156
      %v2161 = vrcp.pop %v2159
      %v2162 = vmul.f32 %v2143, %v2160
      %v2163 = vmul.f32 %v2145, %v2161
      %v2164 = vmul.f32 %v231, %v231
      %v2165 = vmul.f32 %v232, %v232
      %2168 = vrot.lane.b32.xlu0 %v2164, 109
      %v2169 = vpop.permute.xlu0 %2168
      %2170 = vrot.lane.b32.xlu0 %v2165, 109
      %v2171 = vpop.permute.xlu0 %2170
      %v2174 = vsel %vm252, %v2169, 0.0
      %2175 = vadd.xlane.f32.xlu0 %v2174
      %v2176 = vpop.xlane.xlu0 %2175
      %v2177 = vsel %vm252, %v2171, 0.0
      %2178 = vadd.xlane.f32.xlu0 %v2177
      %v2179 = vpop.xlane.xlu0 %2178
      %2180 = vrot.lane.b32.xlu0 %v231, 109
      %v2181 = vpop.permute.xlu0 %2180
      %2182 = vrot.lane.b32.xlu0 %v232, 109
      %v2183 = vpop.permute.xlu0 %2182
      %v2184 = vsel %vm252, %v2181, 0
      %v2186 = vsel %vm252, %v2183, 0
      %2188 = vmatprep.subr.mxu0 0.0
      %2189 = vmatpush1.msra.mxu0 0.0
      %2190 = vmatprep.subr.mxu0 0.0
      %2191 = vmatpush1.msra.mxu0 0.0
      %2192 = vmatprep.subr.mxu0 0.0
      %2193 = vmatpush1.msra.mxu0 0.0
      %2194 = vmatprep.subr.mxu0 0.0
      %2195 = vmatpush1.msra.mxu0 0.0
      %2196 = vmatprep.subr.mxu0 0.0
      %2197 = vmatpush1.msra.mxu0 0.0
      %2198 = vmatprep.subr.mxu0 0.0
      %2199 = vmatpush1.msra.mxu0 0.0
      %2200 = vmatprep.subr.mxu0 0.0
      %2201 = vmatpush1.msra.mxu0 0.0
      %2202 = vmatprep.subr.mxu0 0.0
      %2203 = vmatpush1.msra.mxu0 0.0
      %2204 = vmatprep.subr.mxu0 0.0
      %2205 = vmatpush1.msra.mxu0 0.0
      %2206 = vmatprep.subr.mxu0 0.0
      %2207 = vmatpush1.msra.mxu0 0.0
      %2208 = vmatprep.subr.mxu0 0.0
      %2209 = vmatpush1.msra.mxu0 0.0
      %2210 = vmatprep.subr.mxu0 0.0
      %2211 = vmatpush1.msra.mxu0 0.0
      %2212 = vmatprep.subr.mxu0 0.0
      %2213 = vmatpush1.msra.mxu0 0.0
      %2214 = vmatprep.subr.mxu0 0.0
      %2215 = vmatpush1.msra.mxu0 0.0
      %2216 = vmatprep.subr.mxu0 0.0
      %2217 = vmatpush1.msra.mxu0 0.0
      %2218 = vmatprep.subr.mxu0 0.0
      %2219 = vmatpush1.msra.mxu0 %v258
      %2220 = vmatprep.subr.mxu0 0.0
      %2221 = vmatpush2.msra.mxu0 0.0
      %2222 = vmatprep.subr.mxu0 0.0
      %2223 = vmatpush2.msra.mxu0 0.0
      %2224 = vmatprep.subr.mxu0 0.0
      %2225 = vmatpush2.msra.mxu0 0.0
      %2226 = vmatprep.subr.mxu0 0.0
      %2227 = vmatpush2.msra.mxu0 0.0
      %2228 = vmatprep.subr.mxu0 0.0
      %2229 = vmatpush2.msra.mxu0 0.0
      %2230 = vmatprep.subr.mxu0 0.0
      %2231 = vmatpush2.msra.mxu0 0.0
      %2232 = vmatprep.subr.mxu0 0.0
      %2233 = vmatpush2.msra.mxu0 0.0
      %2234 = vmatprep.subr.mxu0 0.0
      %2235 = vmatpush2.msra.mxu0 0.0
      %2236 = vmatprep.subr.mxu0 0.0
      %2237 = vmatpush2.msra.mxu0 0.0
      %2238 = vmatprep.subr.mxu0 0.0
      %2239 = vmatpush2.msra.mxu0 0.0
      %2240 = vmatprep.subr.mxu0 0.0
      %2241 = vmatpush2.msra.mxu0 0.0
      %2242 = vmatprep.subr.mxu0 0.0
      %2243 = vmatpush2.msra.mxu0 0.0
      %2244 = vmatprep.subr.mxu0 0.0
      %2245 = vmatpush2.msra.mxu0 0.0
      %2246 = vmatprep.subr.mxu0 0.0
      %2247 = vmatpush2.msra.mxu0 0.0
      %2248 = vmatprep.subr.mxu0 0.0
      %2249 = vmatpush2.msra.mxu0 0.0
      %2250 = vmatprep.subr.mxu0 0.0
      %2251 = vmatpush2.msra.mxu0 0.0
      %2252 = vmatprep.mubr.f32.mxu0 0.0
      %2253 = vmatmul.mubr.f32.gmra.mxu0 %v2184
      %v2254 = vpop.f32.mrf.mxu0
      %v2255 = vadd.f32 0.0, %v2254
      %v2256 = vpop.f32.mrf.mxu0
      %2257 = vmatprep.mubr.f32.mxu0 0.0
      %2258 = vmatmul.mubr.f32.gmra.mxu0 %v2186
      %v2259 = vpop.f32.mrf.mxu0
      %v2260 = vadd.f32 0.0, %v2259
      %v2261 = vpop.f32.mrf.mxu0
      %2262 = vdwg.mxu0
      %v2263 = vadd.f32 %v2176, %v251
      %v2264 = vadd.f32 %v2179, %v251
      %v2265 = vmul.f32 %v2255, 2.0
      %v2266 = vmul.f32 %v2260, 2.0
      %v2267 = vsub.f32 %v2263, %v2265
      %v2268 = vsub.f32 %v2264, %v2266
      %v2269 = vsub.f32 0.0, %v2267
      %v2270 = vsub.f32 0.0, %v2268
      %v2271 = vmul.f32 %v2269, %v334
      %v2272 = vmul.f32 %v2270, %v334
      %v2273 = vsel %vm550, %v2271, -inf
      %2274 = vmax.xlane.f32.xlu0 %v2273
      %v2275 = vpop.xlane.xlu0 %2274
      %v2276 = vsel %vm550, %v2272, -inf
      %2277 = vmax.xlane.f32.xlu0 %v2276
      %v2278 = vpop.xlane.xlu0 %2277
      %v2279 = vsub.f32 %v2271, %v2275
      %v2280 = vsub.f32 %v2272, %v2278
      %v2281 = vmul.f32 %v2279, 1.442695
      %v2282 = vpow.pop %v2281
      %v2283 = vmul.f32 %v2280, 1.442695
      %v2284 = vpow.pop %v2283
      %v2285 = vsel %vm550, %v2282, 0.0
      %2286 = vadd.xlane.f32.xlu0 %v2285
      %v2287 = vpop.xlane.xlu0 %2286
      %v2288 = vsel %vm550, %v2284, 0.0
      %2289 = vadd.xlane.f32.xlu0 %v2288
      %v2290 = vpop.xlane.xlu0 %2289
      %v2291 = vrcp.pop %v2287
      %v2292 = vrcp.pop %v2290
      %v2293 = vmul.f32 %v2282, %v2291
      %v2294 = vmul.f32 %v2284, %v2292
      %2295 = vset.pattern.permute.xlu0 21
      %2296 = vperm.xlu0 %2295, %v231
      %v2297 = vpop.permute.xlu0 %2296
      %2299 = vset.pattern.permute.xlu0 21
      %2300 = vperm.xlu0 %2299, %v232
      %v2301 = vpop.permute.xlu0 %2300
      %v2303 = vsub.f32 %v2297, %v354
      %v2304 = vsub.f32 %v2301, %v354
      %v2305 = vand.u32 2147483647, %v2303
      %vm2306 = vcmp.le.f32.partialorder %v2305, 0.7853982
      %vm2307 = vcmp.lt.s32.totalorder %v2303, 0
      %v2308 = vand.u32 %v2303, 2139095040
      %v2309 = vshrl.u32 %v2308, 23
      %v2310 = vsub.s32 %v2309, 127
      %v2311 = vand.u32 2147483647, %v2303
      %v2312 = vand.u32 %v2311, 8388607
      %v2313 = vor.u32 %v2312, 8388608
      %v2314 = vsub.s32 0, %v2313
      %v2315 = vadd.s32 %v2310, 1
      %vm2316 = vcmp.gt.s32.totalorder %v2315, 0
      %v2317 = vsel %vm2316, %v2315, 0
      %v2318 = vshrl.u32 %v2317, 5
      %v2319 = vand.u32 %v2317, 31
      %v2320 = vsub.s32 32, %v2319
      %v2321 = vshrl.u32 683565275, %v2320
      %v2322 = vshll.u32 683565275, %v2319
      %v2323 = vshrl.u32 2475754826, %v2320
      %v2324 = vor.u32 %v2322, %v2323
      %v2325 = vshll.u32 2475754826, %v2319
      %v2326 = vshrl.u32 2131351028, %v2320
      %v2327 = vor.u32 %v2325, %v2326
      %v2328 = vshll.u32 2131351028, %v2319
      %v2329 = vshrl.u32 2102212464, %v2320
      %v2330 = vor.u32 %v2328, %v2329
      %v2331 = vshll.u32 2102212464, %v2319
      %v2332 = vshrl.u32 920167782, %v2320
      %v2333 = vor.u32 %v2331, %v2332
      %v2334 = vshll.u32 920167782, %v2319
      %v2335 = vshrl.u32 1326507024, %v2320
      %v2336 = vor.u32 %v2334, %v2335
      %vm2337 = vcmp.lt.s32.totalorder %v2318, 1
      %vm2338 = vcmp.lt.s32.totalorder %v2318, 2
      %vm2339 = vcmp.lt.s32.totalorder %v2318, 3
      %vm2340 = vcmp.lt.s32.totalorder %v2318, 4
      %v2341 = vsel %vm2337, %v2321, %v2324
      %v2342 = vsel %vm2340, %v2330, 2102212464
      %v2343 = vsel %vm2339, %v2327, %v2342
      %v2344 = vsel %vm2338, %v2341, %v2343
      %v2345 = vsel %vm2337, %v2324, %v2327
      %v2346 = vsel %vm2340, %v2333, 920167782
      %v2347 = vsel %vm2339, %v2330, %v2346
      %v2348 = vsel %vm2338, %v2345, %v2347
      %v2349 = vsel %vm2337, %v2327, %v2330
      %v2350 = vsel %vm2340, %v2336, 1326507024
      %v2351 = vsel %vm2339, %v2333, %v2350
      %v2352 = vsel %vm2338, %v2349, %v2351
      %v2353 = vshll.u32 %v2313, 8
      %v2354 = vmul.u32.u64.compose %v2353, %v2352
      %v2355 = vextract.low.u32 %v2354
      %v2356 = vextract.high.u32 %v2354
      %v2357 = vmul.u32.u64.compose %v2353, %v2348
      %v2358 = vextract.low.u32 %v2357
      %v2359 = vextract.high.u32 %v2357
      %v2360 = vmul.u32 %v2353, %v2344
      %v2361 = vadd.s32 %v2356, %v2358
      %vm2362 = vc.u32 %v2356, %v2358
      %v2363 = vadd.s32 %v2359, 1
      %v2364 = vsel %vm2362, %v2363, %v2359
      %v2365 = vadd.s32 %v2360, %v2364
      %v2366 = vadd.s32 %v2365, 536870912
      %v2367 = vshrl.u32 %v2366, 30
      %v2368 = vshll.u32 %v2367, 30
      %v2369 = vsub.s32 %v2365, %v2368
      %vm2370 = vcmp.lt.s32.totalorder %v2369, 0
      %v2371 = vsub.s32 0, %v2369
      %v2372 = vsel %vm2370, %v2371, %v2369
      %v2373 = vclz %v2372
      %v2374 = vsub.s32 %v2373, 2
      %vm2375 = vcmp.gt.s32.totalorder 0, %v2374
      %v2376 = vsel %vm2375, 0, %v2374
      %v2377 = vsub.s32 32, %v2376
      %v2378 = vshll.u32 %v2369, %v2376
      %v2379 = vshrl.u32 %v2361, %v2377
      %v2380 = vor.u32 %v2378, %v2379
      %v2381 = vsub.s32 4294967266, %v2376
      %v2382 = vadd.s32 %v2381, 127
      %v2383 = vshll.u32 %v2382, 23
      %v2384 = vor.u32 4788187, %v2383
      %v2385 = vand.u32 2147483647, %v2384
      %v2387 = vcvt.s32.f32 %v2380
      %v2388 = vmul.f32 %v2387, %v2385
      %v2389 = vxor.u32 %v2388, 2147483648
      %v2390 = vsel %vm2307, %v2389, %v2388
      %v2391 = vsub.s32 4, %v2367
      %v2392 = vsel %vm2307, %v2391, %v2367
      %v2393 = vsel %vm2306, %v2303, %v2390
      %v2394 = vsel %vm2306, 0, %v2392
      %v2395 = vcosq.f32.pop %v2393
      %v2396 = vsinq.f32.pop %v2393
      %vm2397 = vweird.f32 %v2303
      %v2398 = vand.u32 %v2394, 3
      %vm2399 = vcmp.lt.s32.totalorder %v2398, 2
      %vm2400 = vcmp.eq.s32.totalorder %v2398, 0
      %v2401 = vxor.u32 %v2396, 2147483648
      %v2402 = vsel %vm2400, %v2395, %v2401
      %vm2403 = vcmp.eq.s32.totalorder %v2398, 2
      %v2404 = vxor.u32 %v2395, 2147483648
      %v2405 = vsel %vm2403, %v2404, %v2396
      %v2406 = vsel %vm2399, %v2402, %v2405
      %v2407 = vsel %vm2397, nan, %v2406
      %v2408 = vand.u32 2147483647, %v2304
      %vm2409 = vcmp.le.f32.partialorder %v2408, 0.7853982
      %vm2410 = vcmp.lt.s32.totalorder %v2304, 0
      %v2411 = vand.u32 %v2304, 2139095040
      %v2412 = vshrl.u32 %v2411, 23
      %v2413 = vsub.s32 %v2412, 127
      %v2414 = vand.u32 2147483647, %v2304
      %v2415 = vand.u32 %v2414, 8388607
      %v2416 = vor.u32 %v2415, 8388608
      %v2417 = vsub.s32 0, %v2416
      %v2418 = vadd.s32 %v2413, 1
      %vm2419 = vcmp.gt.s32.totalorder %v2418, 0
      %v2420 = vsel %vm2419, %v2418, 0
      %v2421 = vshrl.u32 %v2420, 5
      %v2422 = vand.u32 %v2420, 31
      %v2423 = vsub.s32 32, %v2422
      %v2424 = vshrl.u32 683565275, %v2423
      %v2425 = vshll.u32 683565275, %v2422
      %v2426 = vshrl.u32 2475754826, %v2423
      %v2427 = vor.u32 %v2425, %v2426
      %v2428 = vshll.u32 2475754826, %v2422
      %v2429 = vshrl.u32 2131351028, %v2423
      %v2430 = vor.u32 %v2428, %v2429
      %v2431 = vshll.u32 2131351028, %v2422
      %v2432 = vshrl.u32 2102212464, %v2423
      %v2433 = vor.u32 %v2431, %v2432
      %v2434 = vshll.u32 2102212464, %v2422
      %v2435 = vshrl.u32 920167782, %v2423
      %v2436 = vor.u32 %v2434, %v2435
      %v2437 = vshll.u32 920167782, %v2422
      %v2438 = vshrl.u32 1326507024, %v2423
      %v2439 = vor.u32 %v2437, %v2438
      %vm2440 = vcmp.lt.s32.totalorder %v2421, 1
      %vm2441 = vcmp.lt.s32.totalorder %v2421, 2
      %vm2442 = vcmp.lt.s32.totalorder %v2421, 3
      %vm2443 = vcmp.lt.s32.totalorder %v2421, 4
      %v2444 = vsel %vm2440, %v2424, %v2427
      %v2445 = vsel %vm2443, %v2433, 2102212464
      %v2446 = vsel %vm2442, %v2430, %v2445
      %v2447 = vsel %vm2441, %v2444, %v2446
      %v2448 = vsel %vm2440, %v2427, %v2430
      %v2449 = vsel %vm2443, %v2436, 920167782
      %v2450 = vsel %vm2442, %v2433, %v2449
      %v2451 = vsel %vm2441, %v2448, %v2450
      %v2452 = vsel %vm2440, %v2430, %v2433
      %v2453 = vsel %vm2443, %v2439, 1326507024
      %v2454 = vsel %vm2442, %v2436, %v2453
      %v2455 = vsel %vm2441, %v2452, %v2454
      %v2456 = vshll.u32 %v2416, 8
      %v2457 = vmul.u32.u64.compose %v2456, %v2455
      %v2458 = vextract.low.u32 %v2457
      %v2459 = vextract.high.u32 %v2457
      %v2460 = vmul.u32.u64.compose %v2456, %v2451
      %v2461 = vextract.low.u32 %v2460
      %v2462 = vextract.high.u32 %v2460
      %v2463 = vmul.u32 %v2456, %v2447
      %v2464 = vadd.s32 %v2459, %v2461
      %vm2465 = vc.u32 %v2459, %v2461
      %v2466 = vadd.s32 %v2462, 1
      %v2467 = vsel %vm2465, %v2466, %v2462
      %v2468 = vadd.s32 %v2463, %v2467
      %v2469 = vadd.s32 %v2468, 536870912
      %v2470 = vshrl.u32 %v2469, 30
      %v2471 = vshll.u32 %v2470, 30
      %v2472 = vsub.s32 %v2468, %v2471
      %vm2473 = vcmp.lt.s32.totalorder %v2472, 0
      %v2474 = vsub.s32 0, %v2472
      %v2475 = vsel %vm2473, %v2474, %v2472
      %v2476 = vclz %v2475
      %v2477 = vsub.s32 %v2476, 2
      %vm2478 = vcmp.gt.s32.totalorder 0, %v2477
      %v2479 = vsel %vm2478, 0, %v2477
      %v2480 = vsub.s32 32, %v2479
      %v2481 = vshll.u32 %v2472, %v2479
      %v2482 = vshrl.u32 %v2464, %v2480
      %v2483 = vor.u32 %v2481, %v2482
      %v2484 = vsub.s32 4294967266, %v2479
      %v2485 = vadd.s32 %v2484, 127
      %v2486 = vshll.u32 %v2485, 23
      %v2487 = vor.u32 4788187, %v2486
      %v2488 = vand.u32 2147483647, %v2487
      %v2490 = vcvt.s32.f32 %v2483
      %v2491 = vmul.f32 %v2490, %v2488
      %v2492 = vxor.u32 %v2491, 2147483648
      %v2493 = vsel %vm2410, %v2492, %v2491
      %v2494 = vsub.s32 4, %v2470
      %v2495 = vsel %vm2410, %v2494, %v2470
      %v2496 = vsel %vm2409, %v2304, %v2493
      %v2497 = vsel %vm2409, 0, %v2495
      %v2498 = vcosq.f32.pop %v2496
      %v2499 = vsinq.f32.pop %v2496
      %vm2500 = vweird.f32 %v2304
      %v2501 = vand.u32 %v2497, 3
      %vm2502 = vcmp.lt.s32.totalorder %v2501, 2
      %vm2503 = vcmp.eq.s32.totalorder %v2501, 0
      %v2504 = vxor.u32 %v2499, 2147483648
      %v2505 = vsel %vm2503, %v2498, %v2504
      %vm2506 = vcmp.eq.s32.totalorder %v2501, 2
      %v2507 = vxor.u32 %v2498, 2147483648
      %v2508 = vsel %vm2506, %v2507, %v2499
      %v2509 = vsel %vm2502, %v2505, %v2508
      %v2510 = vsel %vm2500, nan, %v2509
      %v2511 = vmul.f32 %v2407, 20.0
      %v2512 = vmul.f32 %v2510, 20.0
      %v2513 = vsel %vm472, %v2511, -inf
      %2514 = vmax.xlane.f32.xlu0 %v2513
      %v2515 = vpop.xlane.xlu0 %2514
      %v2516 = vsel %vm472, %v2512, -inf
      %2517 = vmax.xlane.f32.xlu0 %v2516
      %v2518 = vpop.xlane.xlu0 %2517
      %v2519 = vsub.f32 %v2511, %v2515
      %v2520 = vsub.f32 %v2512, %v2518
      %v2521 = vmul.f32 %v2519, 1.442695
      %v2522 = vpow.pop %v2521
      %v2523 = vmul.f32 %v2520, 1.442695
      %v2524 = vpow.pop %v2523
      %v2525 = vsel %vm472, %v2522, 0.0
      %2526 = vadd.xlane.f32.xlu0 %v2525
      %v2527 = vpop.xlane.xlu0 %2526
      %v2528 = vsel %vm472, %v2524, 0.0
      %2529 = vadd.xlane.f32.xlu0 %v2528
      %v2530 = vpop.xlane.xlu0 %2529
      %v2531 = vrcp.pop %v2527
      %v2532 = vrcp.pop %v2530
      %v2533 = vmul.f32 %v2522, %v2531
      %v2534 = vmul.f32 %v2524, %v2532
      %2535 = vst.msk [vmem:[#allocation3] sm:$0xff] %vm472, %v2131
      %2536 = vst.msk [vmem:[#allocation3 + $0x8] sm:$0xff] %vm472, %v2132
      %2537 = vst.msk [vmem:[#allocation3] sm:$0xff] %vm2133, %v2162
      %2538 = vst.msk [vmem:[#allocation3 + $0x8] sm:$0xff] %vm2133, %v2163
      %2539 = vrot.lane.b32.xlu0 %v2024, 28
      %v2540 = vpop.permute.xlu0 %2539
      %2541 = vrot.lane.b32.xlu0 %v2025, 28
      %v2542 = vpop.permute.xlu0 %2541
      %vm2545 = vcmask 752864
      %2546 = vst.msk [vmem:[#allocation3] sm:$0xff] %vm2545, %v2540
      %2547 = vst.msk [vmem:[#allocation3 + $0x8] sm:$0xff] %vm2545, %v2542
      %2550 = vrot.lane.b32.xlu0 %v2293, 92
      %v2551 = vpop.permute.xlu0 %2550
      %2552 = vrot.lane.b32.xlu0 %v2294, 92
      %v2553 = vpop.permute.xlu0 %2552
      %vm2556 = vcmask 884448
      %2557 = vst.msk [vmem:[#allocation3] sm:$0xff] %vm2556, %v2551
      %2558 = vst.msk [vmem:[#allocation3 + $0x8] sm:$0xff] %vm2556, %v2553
      %2561 = vrot.lane.b32.xlu0 %v2533, 108
      %v2562 = vpop.permute.xlu0 %2561
      %2563 = vrot.lane.b32.xlu0 %v2534, 108
      %v2564 = vpop.permute.xlu0 %2563
      %vm2567 = vcmask 982880
      %2568 = vst.msk [vmem:[#allocation3] sm:$0xff] %vm2567, %v2562
      %2569 = vst.msk [vmem:[#allocation3 + $0x8] sm:$0xff] %vm2567, %v2564
      %vm2570 = vcmask 1048512
      %2571 = vst.msk [vmem:[#allocation3] sm:$0xff] %vm2570, 0.0
      %2572 = vst.msk [vmem:[#allocation3 + $0x8] sm:$0xff] %vm2570, 0.0
      %v2573 = vld [vmem:[#allocation3] sm:$0xff]
      %v2574 = vld [vmem:[#allocation3 + $0x8] sm:$0xff]
      %2575 = vmatprep.subr.mxu0 0.0
      %2576 = vmatpush1.msra.mxu0 %v230
      %2577 = vmatprep.subr.mxu0 0.0
      %2578 = vmatpush1.msra.mxu0 %v229
      %2579 = vmatprep.subr.mxu0 0.0
      %2580 = vmatpush1.msra.mxu0 %v228
      %2581 = vmatprep.subr.mxu0 0.0
      %2582 = vmatpush1.msra.mxu0 %v227
      %2583 = vmatprep.subr.mxu0 0.0
      %2584 = vmatpush1.msra.mxu0 %v226
      %2585 = vmatprep.subr.mxu0 0.0
      %2586 = vmatpush1.msra.mxu0 %v225
      %2587 = vmatprep.subr.mxu0 0.0
      %2588 = vmatpush1.msra.mxu0 %v224
      %2589 = vmatprep.subr.mxu0 0.0
      %2590 = vmatpush1.msra.mxu0 %v223
      %2591 = vmatprep.subr.mxu0 0.0
      %2592 = vmatpush1.msra.mxu0 %v222
      %2593 = vmatprep.subr.mxu0 0.0
      %2594 = vmatpush1.msra.mxu0 %v221
      %2595 = vmatprep.subr.mxu0 0.0
      %2596 = vmatpush1.msra.mxu0 %v220
      %2597 = vmatprep.subr.mxu0 0.0
      %2598 = vmatpush1.msra.mxu0 %v219
      %2599 = vmatprep.subr.mxu0 0.0
      %2600 = vmatpush1.msra.mxu0 %v218
      %2601 = vmatprep.subr.mxu0 0.0
      %2602 = vmatpush1.msra.mxu0 %v217
      %2603 = vmatprep.subr.mxu0 0.0
      %2604 = vmatpush1.msra.mxu0 %v216
      %2605 = vmatprep.subr.mxu0 0.0
      %2606 = vmatpush1.msra.mxu0 %v215
      %2607 = vmatprep.subr.mxu0 0.0
      %2608 = vmatpush2.msra.mxu0 0.0
      %2609 = vmatprep.subr.mxu0 0.0
      %2610 = vmatpush2.msra.mxu0 0.0
      %2611 = vmatprep.subr.mxu0 0.0
      %2612 = vmatpush2.msra.mxu0 0.0
      %2613 = vmatprep.subr.mxu0 0.0
      %2614 = vmatpush2.msra.mxu0 0.0
      %2615 = vmatprep.subr.mxu0 0.0
      %2616 = vmatpush2.msra.mxu0 0.0
      %2617 = vmatprep.subr.mxu0 0.0
      %2618 = vmatpush2.msra.mxu0 0.0
      %2619 = vmatprep.subr.mxu0 0.0
      %2620 = vmatpush2.msra.mxu0 0.0
      %2621 = vmatprep.subr.mxu0 0.0
      %2622 = vmatpush2.msra.mxu0 0.0
      %2623 = vmatprep.subr.mxu0 0.0
      %2624 = vmatpush2.msra.mxu0 0.0
      %2625 = vmatprep.subr.mxu0 0.0
      %2626 = vmatpush2.msra.mxu0 0.0
      %2627 = vmatprep.subr.mxu0 0.0
      %2628 = vmatpush2.msra.mxu0 0.0
      %2629 = vmatprep.subr.mxu0 0.0
      %2630 = vmatpush2.msra.mxu0 0.0
      %2631 = vmatprep.subr.mxu0 0.0
      %2632 = vmatpush2.msra.mxu0 0.0
      %2633 = vmatprep.subr.mxu0 0.0
      %2634 = vmatpush2.msra.mxu0 0.0
      %2635 = vmatprep.subr.mxu0 0.0
      %2636 = vmatpush2.msra.mxu0 0.0
      %2637 = vmatprep.subr.mxu0 0.0
      %2638 = vmatpush2.msra.mxu0 0.0
      %2639 = vmatprep.mubr.f32.mxu0 0.0
      %2640 = vmatmul.mubr.f32.gmra.mxu0 %v2573
      %v2641 = vpop.f32.mrf.mxu0
      %v2642 = vadd.f32 0.0, %v2641
      %v2643 = vpop.f32.mrf.mxu0
      %2644 = vmatprep.mubr.f32.mxu0 0.0
      %2645 = vmatmul.mubr.f32.gmra.mxu0 %v2574
      %v2646 = vpop.f32.mrf.mxu0
      %v2647 = vadd.f32 0.0, %v2646
      %v2648 = vpop.f32.mrf.mxu0
      %2649 = vdwg.mxu0
      %2650 = vmatprep.subr.mxu0 0.0
      %2651 = vmatpush1.xpose.msra.mxu0 0.0
      %2652 = vmatprep.subr.mxu0 0.0
      %2653 = vmatpush1.xpose.msra.mxu0 0.0
      %2654 = vmatprep.subr.mxu0 0.0
      %2655 = vmatpush1.xpose.msra.mxu0 0.0
      %2656 = vmatprep.subr.mxu0 0.0
      %2657 = vmatpush1.xpose.msra.mxu0 0.0
      %2658 = vmatprep.subr.mxu0 0.0
      %2659 = vmatpush1.xpose.msra.mxu0 0.0
      %2660 = vmatprep.subr.mxu0 0.0
      %2661 = vmatpush1.xpose.msra.mxu0 0.0
      %2662 = vmatprep.subr.mxu0 0.0
      %2663 = vmatpush1.xpose.msra.mxu0 0.0
      %2664 = vmatprep.subr.mxu0 0.0
      %2665 = vmatpush1.xpose.msra.mxu0 0.0
      %2666 = vmatprep.subr.mxu0 0.0
      %2667 = vmatpush1.xpose.msra.mxu0 0.0
      %2668 = vmatprep.subr.mxu0 0.0
      %2669 = vmatpush1.xpose.msra.mxu0 0.0
      %2670 = vmatprep.subr.mxu0 0.0
      %2671 = vmatpush1.xpose.msra.mxu0 0.0
      %2672 = vmatprep.subr.mxu0 0.0
      %2673 = vmatpush1.xpose.msra.mxu0 0.0
      %2674 = vmatprep.subr.mxu0 0.0
      %2675 = vmatpush1.xpose.msra.mxu0 0.0
      %2676 = vmatprep.subr.mxu0 0.0
      %2677 = vmatpush1.xpose.msra.mxu0 0.0
      %2678 = vmatprep.subr.mxu0 0.0
      %2679 = vmatpush1.xpose.msra.mxu0 %v2574
      %2680 = vmatprep.subr.mxu0 0.0
      %2681 = vmatpush1.xpose.msra.mxu0 %v2573
      %2682 = vmatprep.subr.mxu0 0.0
      %2683 = vmatpush2.xpose.msra.mxu0 0.0
      %2684 = vmatprep.subr.mxu0 0.0
      %2685 = vmatpush2.xpose.msra.mxu0 0.0
      %2686 = vmatprep.subr.mxu0 0.0
      %2687 = vmatpush2.xpose.msra.mxu0 0.0
      %2688 = vmatprep.subr.mxu0 0.0
      %2689 = vmatpush2.xpose.msra.mxu0 0.0
      %2690 = vmatprep.subr.mxu0 0.0
      %2691 = vmatpush2.xpose.msra.mxu0 0.0
      %2692 = vmatprep.subr.mxu0 0.0
      %2693 = vmatpush2.xpose.msra.mxu0 0.0
      %2694 = vmatprep.subr.mxu0 0.0
      %2695 = vmatpush2.xpose.msra.mxu0 0.0
      %2696 = vmatprep.subr.mxu0 0.0
      %2697 = vmatpush2.xpose.msra.mxu0 0.0
      %2698 = vmatprep.subr.mxu0 0.0
      %2699 = vmatpush2.xpose.msra.mxu0 0.0
      %2700 = vmatprep.subr.mxu0 0.0
      %2701 = vmatpush2.xpose.msra.mxu0 0.0
      %2702 = vmatprep.subr.mxu0 0.0
      %2703 = vmatpush2.xpose.msra.mxu0 0.0
      %2704 = vmatprep.subr.mxu0 0.0
      %2705 = vmatpush2.xpose.msra.mxu0 0.0
      %2706 = vmatprep.subr.mxu0 0.0
      %2707 = vmatpush2.xpose.msra.mxu0 0.0
      %2708 = vmatprep.subr.mxu0 0.0
      %2709 = vmatpush2.xpose.msra.mxu0 0.0
      %2710 = vmatprep.subr.mxu0 0.0
      %2711 = vmatpush2.xpose.msra.mxu0 0.0
      %2712 = vmatprep.subr.mxu0 0.0
      %2713 = vmatpush2.xpose.msra.mxu0 0.0
      %2714 = vmatprep.mubr.f32.mxu0 0.0
      %2715 = vmatmul.mubr.f32.gmra.mxu0 %v2642
      %v2716 = vpop.f32.mrf.mxu0
      %v2717 = vadd.f32 0.0, %v2716
      %v2718 = vpop.f32.mrf.mxu0
      %2719 = vmatprep.mubr.f32.mxu0 0.0
      %2720 = vmatmul.mubr.f32.gmra.mxu0 %v2647
      %v2721 = vpop.f32.mrf.mxu0
      %v2722 = vadd.f32 0.0, %v2721
      %v2723 = vpop.f32.mrf.mxu0
      %2724 = vdwg.mxu0
      %v2725 = vmul.f32 %v2717, 0.125
      %v2726 = vmul.f32 %v2722, 0.125
      %v2727 = vxor.u32 %v2725, 2147483648
      %v2728 = vxor.u32 %v2726, 2147483648
      %v2729 = vmul.f32 %v2727, 1.442695
      %v2730 = vpow.pop %v2729
      %v2731 = vmul.f32 %v2728, 1.442695
      %v2732 = vpow.pop %v2731
      %v2733 = vadd.f32 %v2730, 1.0
      %v2734 = vadd.f32 %v2732, 1.0
      %v2735 = vrcp.pop %v2733
      %v2736 = vmul.f32 1.0, %v2735
      %v2737 = vrcp.pop %v2734
      %v2738 = vmul.f32 1.0, %v2737
      %v2739 = vld [vmem:[%s185] sm:$0xff]
      %v2740 = vld [vmem:[%s185 + $0x8] sm:$0xff]
      %v2741 = vmax.f32 %v2736, 1e-06
      %v2742 = vmax.f32 %v2738, 1e-06
      %v2743 = vmin.f32 %v2741, 0.999999
      %v2744 = vmin.f32 %v2742, 0.999999
      %vm2745 = vcmp.gt.f32.partialorder %v2739, 0.2
      %vm2746 = vcmp.gt.f32.partialorder %v2740, 0.2
      %v2747 = vsel %vm2745, 1, 0
      %v2748 = vsel %vm2746, 1, 0
      %v2749 = vcvt.s32.f32 %v2747
      %v2750 = vcvt.s32.f32 %v2748
      %v2751 = vsub.f32 1.0, %v2749
      %v2752 = vsub.f32 1.0, %v2750
      %v2753 = vlog2.pop %v2743
      %v2754 = vmul.f32 %v2753, 0.6931472
      %v2755 = vlog2.pop %v2744
      %v2756 = vmul.f32 %v2755, 0.6931472
      %v2757 = vsub.f32 0.0, %v2754
      %v2758 = vsub.f32 0.0, %v2756
      %v2759 = vmul.f32 %v2757, %v2739
      %v2760 = vmul.f32 %v2758, %v2740
      %v2761 = vmul.f32 %v2759, %v2749
      %v2762 = vmul.f32 %v2760, %v2750
      %v2763 = vsel %vm550, %v2761, 0.0
      %v2764 = vsel %vm550, %v2762, 0.0
      %v2765 = vadd.f32 %v2763, %v2764
      %2766 = vadd.xlane.f32.xlu0 %v2765
      %v2767 = vpop.xlane.xlu0 %2766
      %v2768 = vrot.slane %v2767, 4
      %v2769 = vadd.f32 %v2767, %v2768
      %v2770 = vrot.slane %v2769, 2
      %v2771 = vadd.f32 %v2769, %v2770
      %v2772 = vrot.slane %v2771, 1
      %v2773 = vadd.f32 %v2771, %v2772
      %s2774 = vtos %v2773
      %v2775 = vsel %vm550, %v2749, 0.0
      %v2776 = vsel %vm550, %v2750, 0.0
      %v2777 = vadd.f32 %v2775, %v2776
      %2778 = vadd.xlane.f32.xlu0 %v2777
      %v2779 = vpop.xlane.xlu0 %2778
      %v2780 = vrot.slane %v2779, 4
      %v2781 = vadd.f32 %v2779, %v2780
      %v2782 = vrot.slane %v2781, 2
      %v2783 = vadd.f32 %v2781, %v2782
      %v2784 = vrot.slane %v2783, 1
      %v2785 = vadd.f32 %v2783, %v2784
      %s2786 = vtos %v2785
      %v2787 = vsub.f32 1.0, %v2743
      %v2788 = vsub.f32 1.0, %v2744
      %v2789 = vlog2.pop %v2787
      %v2790 = vmul.f32 %v2789, 0.6931472
      %v2791 = vlog2.pop %v2788
      %v2792 = vmul.f32 %v2791, 0.6931472
      %v2793 = vsub.f32 0.0, %v2790
      %v2794 = vsub.f32 0.0, %v2792
      %v2795 = vmul.f32 %v2793, %v2751
      %v2796 = vmul.f32 %v2794, %v2752
      %v2797 = vsel %vm550, %v2795, 0.0
      %v2798 = vsel %vm550, %v2796, 0.0
      %v2799 = vadd.f32 %v2797, %v2798
      %2800 = vadd.xlane.f32.xlu0 %v2799
      %v2801 = vpop.xlane.xlu0 %2800
      %v2802 = vrot.slane %v2801, 4
      %v2803 = vadd.f32 %v2801, %v2802
      %v2804 = vrot.slane %v2803, 2
      %v2805 = vadd.f32 %v2803, %v2804
      %v2806 = vrot.slane %v2805, 1
      %v2807 = vadd.f32 %v2805, %v2806
      %s2808 = vtos %v2807
      %v2809 = vsel %vm550, %v2751, 0.0
      %v2810 = vsel %vm550, %v2752, 0.0
      %v2811 = vadd.f32 %v2809, %v2810
      %2812 = vadd.xlane.f32.xlu0 %v2811
      %v2813 = vpop.xlane.xlu0 %2812
      %v2814 = vrot.slane %v2813, 4
      %v2815 = vadd.f32 %v2813, %v2814
      %v2816 = vrot.slane %v2815, 2
      %v2817 = vadd.f32 %v2815, %v2816
      %v2818 = vrot.slane %v2817, 1
      %v2819 = vadd.f32 %v2817, %v2818
      %s2820 = vtos %v2819
      %v2821 = vsel %vm550, %v2736, -inf
      %v2822 = vsel %vm550, %v2738, -inf
      %v2823 = vmax.f32 %v2821, %v2822
      %v2824 = vrot.slane %v2823, 4
      %v2825 = vmax.f32 %v2823, %v2824
      %v2826 = vrot.slane %v2825, 2
      %v2827 = vmax.f32 %v2825, %v2826
      %v2828 = vrot.slane %v2827, 1
      %v2829 = vmax.f32 %v2827, %v2828
      %v2830 = vsel %vm550, %v2739, -inf
      %v2831 = vsel %vm550, %v2740, -inf
      %v2832 = vmax.f32 %v2830, %v2831
      %v2833 = vrot.slane %v2832, 4
      %v2834 = vmax.f32 %v2832, %v2833
      %v2835 = vrot.slane %v2834, 2
      %v2836 = vmax.f32 %v2834, %v2835
      %v2837 = vrot.slane %v2836, 1
      %v2838 = vmax.f32 %v2836, %v2837
      %v2839 = vmax.f32 %v2829, 1e-06
      %v2840 = vmin.f32 %v2839, 0.999999
      %vm2841 = vcmp.gt.f32.partialorder %v2838, 0.2
      %v2842 = vsel %vm2841, 1, 0
      %v2843 = vcvt.s32.f32 %v2842
      %v2844 = vsub.f32 1.0, %v2843
      %v2845 = vlog2.pop %v2840
      %v2846 = vmul.f32 %v2845, 0.6931472
      %v2847 = vsub.f32 0.0, %v2846
      %v2848 = vmul.f32 %v2847, %v2838
      %v2849 = vmul.f32 %v2848, %v2843
      %vm2850 = vcmask 122880
      %v2851 = vsel %vm2850, %v2849, 0.0
      %2852 = vadd.xlane.f32.xlu0 %v2851
      %v2853 = vpop.xlane.xlu0 %2852
      %v2854 = vrot.slane %v2853, 4
      %v2855 = vadd.f32 %v2853, %v2854
      %v2856 = vrot.slane %v2855, 2
      %v2857 = vadd.f32 %v2855, %v2856
      %v2858 = vrot.slane %v2857, 1
      %v2859 = vadd.f32 %v2857, %v2858
      %s2860 = vtos %v2859
      %v2861 = vsel %vm2850, %v2843, 0.0
      %2862 = vadd.xlane.f32.xlu0 %v2861
      %v2863 = vpop.xlane.xlu0 %2862
      %v2864 = vrot.slane %v2863, 4
      %v2865 = vadd.f32 %v2863, %v2864
      %v2866 = vrot.slane %v2865, 2
      %v2867 = vadd.f32 %v2865, %v2866
      %v2868 = vrot.slane %v2867, 1
      %v2869 = vadd.f32 %v2867, %v2868
      %s2870 = vtos %v2869
      %v2871 = vsub.f32 1.0, %v2840
      %v2872 = vlog2.pop %v2871
      %v2873 = vmul.f32 %v2872, 0.6931472
      %v2874 = vsub.f32 0.0, %v2873
      %v2875 = vmul.f32 %v2874, %v2844
      %v2876 = vsel %vm2850, %v2875, 0.0
      %2877 = vadd.xlane.f32.xlu0 %v2876
      %v2878 = vpop.xlane.xlu0 %2877
      %v2879 = vrot.slane %v2878, 4
      %v2880 = vadd.f32 %v2878, %v2879
      %v2881 = vrot.slane %v2880, 2
      %v2882 = vadd.f32 %v2880, %v2881
      %v2883 = vrot.slane %v2882, 1
      %v2884 = vadd.f32 %v2882, %v2883
      %s2885 = vtos %v2884
      %v2886 = vsel %vm2850, %v2844, 0.0
      %2887 = vadd.xlane.f32.xlu0 %v2886
      %v2888 = vpop.xlane.xlu0 %2887
      %v2889 = vrot.slane %v2888, 4
      %v2890 = vadd.f32 %v2888, %v2889
      %v2891 = vrot.slane %v2890, 2
      %v2892 = vadd.f32 %v2890, %v2891
      %v2893 = vrot.slane %v2892, 1
      %v2894 = vadd.f32 %v2892, %v2893
      %s2895 = vtos %v2894
      %2896 = vmax.xlane.f32.xlu0 %v2821
      %v2897 = vpop.xlane.xlu0 %2896
      %2898 = vmax.xlane.f32.xlu0 %v2822
      %v2899 = vpop.xlane.xlu0 %2898
      %2900 = vmax.xlane.f32.xlu0 %v2830
      %v2901 = vpop.xlane.xlu0 %2900
      %2902 = vmax.xlane.f32.xlu0 %v2831
      %v2903 = vpop.xlane.xlu0 %2902
      %v2904 = vmax.f32 %v2897, 1e-06
      %v2905 = vmax.f32 %v2899, 1e-06
      %v2906 = vmin.f32 %v2904, 0.999999
      %v2907 = vmin.f32 %v2905, 0.999999
      %vm2908 = vcmp.gt.f32.partialorder %v2901, 0.2
      %vm2909 = vcmp.gt.f32.partialorder %v2903, 0.2
      %v2910 = vsel %vm2908, 1, 0
      %v2911 = vsel %vm2909, 1, 0
      %v2912 = vcvt.s32.f32 %v2910
      %v2913 = vcvt.s32.f32 %v2911
      %v2914 = vsub.f32 1.0, %v2912
      %v2915 = vsub.f32 1.0, %v2913
      %v2916 = vlog2.pop %v2906
      %v2917 = vmul.f32 %v2916, 0.6931472
      %v2918 = vlog2.pop %v2907
      %v2919 = vmul.f32 %v2918, 0.6931472
      %v2920 = vsub.f32 0.0, %v2917
      %v2921 = vsub.f32 0.0, %v2919
      %v2922 = vmul.f32 %v2920, %v2901
      %v2923 = vmul.f32 %v2921, %v2903
      %v2924 = vmul.f32 %v2922, %v2912
      %v2925 = vmul.f32 %v2923, %v2913
      %vm2926 = vcmask 7168
      %v2927 = vsel %vm2926, %v2924, 0.0
      %v2928 = vsel %vm2926, %v2925, 0.0
      %v2929 = vadd.f32 %v2927, %v2928
      %2930 = vadd.xlane.f32.xlu0 %v2929
      %v2931 = vpop.xlane.xlu0 %2930
      %v2932 = vrot.slane %v2931, 4
      %v2933 = vadd.f32 %v2931, %v2932
      %v2934 = vrot.slane %v2933, 2
      %v2935 = vadd.f32 %v2933, %v2934
      %v2936 = vrot.slane %v2935, 1
      %v2937 = vadd.f32 %v2935, %v2936
      %s2938 = vtos %v2937
      %v2939 = vsel %vm2926, %v2912, 0.0
      %v2940 = vsel %vm2926, %v2913, 0.0
      %v2941 = vadd.f32 %v2939, %v2940
      %2942 = vadd.xlane.f32.xlu0 %v2941
      %v2943 = vpop.xlane.xlu0 %2942
      %v2944 = vrot.slane %v2943, 4
      %v2945 = vadd.f32 %v2943, %v2944
      %v2946 = vrot.slane %v2945, 2
      %v2947 = vadd.f32 %v2945, %v2946
      %v2948 = vrot.slane %v2947, 1
      %v2949 = vadd.f32 %v2947, %v2948
      %s2950 = vtos %v2949
      %v2951 = vsub.f32 1.0, %v2906
      %v2952 = vsub.f32 1.0, %v2907
      %v2953 = vlog2.pop %v2951
      %v2954 = vmul.f32 %v2953, 0.6931472
      %v2955 = vlog2.pop %v2952
      %v2956 = vmul.f32 %v2955, 0.6931472
      %v2957 = vsub.f32 0.0, %v2954
      %v2958 = vsub.f32 0.0, %v2956
      %v2959 = vmul.f32 %v2957, %v2914
      %v2960 = vmul.f32 %v2958, %v2915
      %v2961 = vsel %vm2926, %v2959, 0.0
      %v2962 = vsel %vm2926, %v2960, 0.0
      %v2963 = vadd.f32 %v2961, %v2962
      %2964 = vadd.xlane.f32.xlu0 %v2963
      %v2965 = vpop.xlane.xlu0 %2964
      %v2966 = vrot.slane %v2965, 4
      %v2967 = vadd.f32 %v2965, %v2966
      %v2968 = vrot.slane %v2967, 2
      %v2969 = vadd.f32 %v2967, %v2968
      %v2970 = vrot.slane %v2969, 1
      %v2971 = vadd.f32 %v2969, %v2970
      %s2972 = vtos %v2971
      %v2973 = vsel %vm2926, %v2914, 0.0
      %v2974 = vsel %vm2926, %v2915, 0.0
      %v2975 = vadd.f32 %v2973, %v2974
      %2976 = vadd.xlane.f32.xlu0 %v2975
      %v2977 = vpop.xlane.xlu0 %2976
      %v2978 = vrot.slane %v2977, 4
      %v2979 = vadd.f32 %v2977, %v2978
      %v2980 = vrot.slane %v2979, 2
      %v2981 = vadd.f32 %v2979, %v2980
      %v2982 = vrot.slane %v2981, 1
      %v2983 = vadd.f32 %v2981, %v2982
      %s2984 = vtos %v2983
      %v2985 = vmax.f32 %v2573, 1e-06
      %v2986 = vmax.f32 %v2574, 1e-06
      %v2987 = vmin.f32 %v2985, 0.999999
      %v2988 = vmin.f32 %v2986, 0.999999
      %v2989 = vlog2.pop %v2987
      %v2990 = vmul.f32 %v2989, 0.6931472
      %v2991 = vlog2.pop %v2988
      %v2992 = vmul.f32 %v2991, 0.6931472
      %v2993 = vsub.f32 0.0, %v2990
      %v2994 = vsub.f32 0.0, %v2992
      %2997 = vrot.lane.b32.xlu0 %v2573, 48
      %v2998 = vpop.permute.xlu0 %2997
      %2999 = vrot.lane.b32.xlu0 %v2574, 48
      %v3000 = vpop.permute.xlu0 %2999
      %v3003 = vmul.f32 %v2993, %v2998
      %v3004 = vmul.f32 %v2994, %v3000
      %3007 = vrot.lane.b32.xlu0 %v3003, 116
      %v3008 = vpop.permute.xlu0 %3007
      %3009 = vrot.lane.b32.xlu0 %v3004, 116
      %v3010 = vpop.permute.xlu0 %3009
      %v3013 = vsel %vm550, %v3008, 0.0
      %v3014 = vsel %vm550, %v3010, 0.0
      %v3015 = vadd.f32 %v3013, %v3014
      %3016 = vadd.xlane.f32.xlu0 %v3015
      %v3017 = vpop.xlane.xlu0 %3016
      %v3018 = vrot.slane %v3017, 4
      %v3019 = vadd.f32 %v3017, %v3018
      %v3020 = vrot.slane %v3019, 2
      %v3021 = vadd.f32 %v3019, %v3020
      %v3022 = vrot.slane %v3021, 1
      %v3023 = vadd.f32 %v3021, %v3022
      %s3024 = vtos %v3023
      %3025 = vrot.lane.b32.xlu0 %v2573, 20
      %v3026 = vpop.permute.xlu0 %3025
      %3027 = vrot.lane.b32.xlu0 %v2574, 20
      %v3028 = vpop.permute.xlu0 %3027
      %v3031 = vmul.f32 %v2993, %v3026
      %v3032 = vmul.f32 %v2994, %v3028
      %v3033 = vsel %vm472, %v3031, 0.0
      %v3034 = vsel %vm472, %v3032, 0.0
      %v3035 = vadd.f32 %v3033, %v3034
      %3036 = vadd.xlane.f32.xlu0 %v3035
      %v3037 = vpop.xlane.xlu0 %3036
      %v3038 = vrot.slane %v3037, 4
      %v3039 = vadd.f32 %v3037, %v3038
      %v3040 = vrot.slane %v3039, 2
      %v3041 = vadd.f32 %v3039, %v3040
      %v3042 = vrot.slane %v3041, 1
      %v3043 = vadd.f32 %v3041, %v3042
      %s3044 = vtos %v3043
      %v3045 = vstv %s2774
      %vm3046 = vcmask 0
      %3047 = vst.msk [vmem:[%s188] sm:$0x1] %vm3046, %v3045
      %v3048 = vstv %s2786
      %vm3049 = vcmask 8200
      %3050 = vst.msk [vmem:[%s188] sm:$0x1] %vm3049, %v3048
      %v3051 = vstv %s2808
      %vm3052 = vcmask 16400
      %3053 = vst.msk [vmem:[%s188] sm:$0x1] %vm3052, %v3051
      %v3054 = vstv %s2820
      %vm3055 = vcmask 24600
      %3056 = vst.msk [vmem:[%s188] sm:$0x1] %vm3055, %v3054
      %v3057 = vstv %s2860
      %vm3058 = vcmask 32800
      %3059 = vst.msk [vmem:[%s188] sm:$0x1] %vm3058, %v3057
      %v3060 = vstv %s2870
      %vm3061 = vcmask 41000
      %3062 = vst.msk [vmem:[%s188] sm:$0x1] %vm3061, %v3060
      %v3063 = vstv %s2885
      %vm3064 = vcmask 49200
      %3065 = vst.msk [vmem:[%s188] sm:$0x1] %vm3064, %v3063
      %v3066 = vstv %s2895
      %vm3067 = vcmask 57400
      %3068 = vst.msk [vmem:[%s188] sm:$0x1] %vm3067, %v3066
      %v3069 = vstv %s2938
      %vm3070 = vcmask 65600
      %3071 = vst.msk [vmem:[%s188] sm:$0x1] %vm3070, %v3069
      %v3072 = vstv %s2950
      %vm3073 = vcmask 73800
      %3074 = vst.msk [vmem:[%s188] sm:$0x1] %vm3073, %v3072
      %v3075 = vstv %s2972
      %vm3076 = vcmask 82000
      %3077 = vst.msk [vmem:[%s188] sm:$0x1] %vm3076, %v3075
      %v3078 = vstv %s2984
      %vm3079 = vcmask 90200
      %3080 = vst.msk [vmem:[%s188] sm:$0x1] %vm3079, %v3078
      %v3081 = vstv %s3024
      %vm3082 = vcmask 98400
      %3083 = vst.msk [vmem:[%s188] sm:$0x1] %vm3082, %v3081
      %v3084 = vstv %s3044
      %vm3085 = vcmask 106600
      %3086 = vst.msk [vmem:[%s188] sm:$0x1] %vm3085, %v3084
      %p3087 = scmp.lt.s32.totalorder %s14, 1
      %s3088 = scalar_select %p3087, %s14, 1
      %s3089 = scalar_lea.vmem %s3, %s3088
      // Predicated region
      $region33: #{loop_module_forward.1} parent=31 // pred_check
        %p3090 = pneg %p105
      $region34: #{loop_module_forward.1} parent=31 // pred_check_branch
        %3092 = sbr.rel (%p3090) target = $region36
      $region35: #{loop_module_forward.1} parent=31 // pred_region
        _
      $region36: #{loop_module_forward.1} parent=31 // pred_fallthru
        _
    $region32: #{loop_module_forward.1} parent=5 // pred_fallthru
      _
    %p3093 = scmp.le.s32.totalorder 2, %s9
    // Predicated region
    $region37: #{loop_module_forward.1} parent=5 // pred_check
      %p3094 = pneg %p3093
    $region38: #{loop_module_forward.1} parent=5 // pred_check_branch
      %3096 = sbr.rel (%p3094) target = $region40
    $region39: #{loop_module_forward.1} parent=5 // pred_region
      %s3097 = ssub.s32 %s9, 2
      // Predicated region
      $region41: #{loop_module_forward.1} parent=39 // pred_check
        %p3098 = pneg %p111
      $region42: #{loop_module_forward.1} parent=39 // pred_check_branch
        %3100 = sbr.rel (%p3098) target = $region44
      $region43: #{loop_module_forward.1} parent=39 // pred_region
        %p3101 = scmp.lt.s32.totalorder %s15, 1
        %s3102 = scalar_select %p3101, %s15, 1
        %s3103 = scalar_lea.vmem %s3, %s3102
      $region44: #{loop_module_forward.1} parent=39 // pred_fallthru
        _
    $region40: #{loop_module_forward.1} parent=5 // pred_fallthru
      _
  $region6: #{loop_module_forward.1} parent=0 // loop_footer
    %s13 = sadd.s32 1, %s9
  $region7: #{loop_module_forward.1} parent=0 // loop_footer_branch
    %8 = sbr.rel target = $region3
  $region8: #{loop_module_forward.1} parent=0 // loop_exit
    _

</llo_original>
